<compile_context>
chip_gen: v5e
topology: v5e:2x2
jax: 0.10.0
libtpu: 0.0.40
codegen_flags: <defaults>
</compile_context>

<pallas_src>
import functools

import jax
import jax.numpy as jnp
from jax import lax
from jax.experimental import pallas as pl
from jax.experimental.pallas import tpu as pltpu

# ---- module-consistent (small) sizes --------------------------------------
EMBEDDING_DIM = 100      # fixed by the module
VOCAB_LEN = 64           # synthetic vocab (len(itos) not available here)
PAD = 0
LATENT = 16              # latent_size (module default 50, kept small)
HIDDEN = 32              # hidden_size (module default 512, kept small)
SEQ = 8
BATCH = 2

# ---- TPU-friendly padded sizes (padding is zeros -> numerics unchanged) ----
D_PAD = 128              # embedding dim padded to one lane tile
VOCAB_PAD = 128          # vocab padded so one-hot/logits are lane-dense
B_PAD = 8                # batch padded to one sublane tile

# ---- packed-slab layouts (all row offsets are multiples of 8) -------------
# slab_a: width 128 (== D_PAD == 4*HIDDEN), VMEM auto-DMA
EMB_R0 = 0                                  # (128, 128) embedding table
WHHF_R0 = EMB_R0 + VOCAB_PAD                # (32, 128)  encoder fwd W_hh
WMULV_R0 = WHHF_R0 + HIDDEN                 # (64, 32)   context->[mu|logvar]
BMULV_R0 = WMULV_R0 + 2 * HIDDEN            # (1, 32)
WFC_R0 = BMULV_R0 + 8                       # (16, 16)   fc
BFC_R0 = WFC_R0 + 2 * LATENT                # (1, 16)
SLAB_A_ROWS = BFC_R0 + 8                    # = 256

# slab_b: width 256 (== 8*HIDDEN), VMEM auto-DMA
WIHENC_R0 = 0                               # (128, 256) [fwd|bwd] W_ih
BENC_R0 = WIHENC_R0 + D_PAD                 # (1, 256)   [fwd|bwd] b_ih + b_hh
SLAB_B_ROWS = BENC_R0 + 8                   # = 136

# dec_slab: width 256 (== 4*2*HIDDEN), HBM -> manual async copy
WIHDX_R0 = 0                                # (128, 256) decoder W_ih (x part)
WIHDZ_R0 = WIHDX_R0 + D_PAD                 # (16, 256)  decoder W_ih (z part)
WHHD_R0 = WIHDZ_R0 + LATENT                 # (64, 256)  decoder W_hh
BDEC_R0 = WHHD_R0 + 2 * HIDDEN              # (1, 256)   decoder b_ih + b_hh
WOUT_R0 = BDEC_R0 + 8                       # (64, 128)  output2vocab weight
BOUT_R0 = WOUT_R0 + 2 * HIDDEN              # (1, 128)   output2vocab bias
DEC_ROWS = BOUT_R0 + 8                      # = 288


# ---------------------------------------------------------------------------
# In-kernel LSTM cell: gx already holds x@W_ih + b (plus any time-invariant
# contribution); only the small h@W_hh matmul remains on the serial path.
# ---------------------------------------------------------------------------
def _lstm_cell(gx, h, c, w_hh):
    hh = h.shape[-1]
    g = gx + jnp.dot(h, w_hh, preferred_element_type=jnp.float32)   # (Bp, 4*hh)
    i = jax.nn.sigmoid(g[:, 0 * hh:1 * hh])
    f = jax.nn.sigmoid(g[:, 1 * hh:2 * hh])
    gg = jnp.tanh(g[:, 2 * hh:3 * hh])
    o = jax.nn.sigmoid(g[:, 3 * hh:4 * hh])
    c_new = f * c + i * gg
    h_new = o * jnp.tanh(c_new)
    return h_new, c_new


# ---------------------------------------------------------------------------
# Single fused kernel for the whole forward pass.
# ---------------------------------------------------------------------------
def _vae_kernel(ids_ref, slab_a_ref, slab_b_ref, eps_ref, dec_hbm_ref,
                logits_ref, kld_ref,
                dec_ref, dec_sem, h_all_ref, *, t_enc, t_dec, batch):
    f32 = jnp.float32
    Bp, H, Hd, L = B_PAD, HIDDEN, 2 * HIDDEN, LATENT
    n_enc = t_enc * Bp
    n_dec = t_dec * Bp
    n_all = n_enc + n_dec

    # ---- kick off the decoder-weight DMA; it overlaps everything up to the
    # ---- decoder block (embedding lookup, encoder recurrence, reparam) -----
    dec_cp = pltpu.make_async_copy(dec_hbm_ref, dec_ref, dec_sem)
    dec_cp.start()

    # ---- embedding lookup for both sequences at once: one-hot @ table ------
    onehot = (ids_ref[...] ==
              lax.broadcasted_iota(jnp.int32, (n_all, VOCAB_PAD), 1)).astype(f32)
    emb = slab_a_ref[EMB_R0:EMB_R0 + VOCAB_PAD, :]                 # (Vp, Dp)
    x_all = jnp.dot(onehot, emb, preferred_element_type=f32)       # (n_all, Dp)
    x_enc = x_all[0:n_enc, :]
    x_dec = x_all[n_enc:n_all, :]

    # ---- encoder: hoisted input projection for BOTH directions -------------
    w_ih_enc = slab_b_ref[WIHENC_R0:WIHENC_R0 + D_PAD, :]          # (Dp, 8H)
    b_enc = slab_b_ref[BENC_R0:BENC_R0 + 1, :]                     # (1, 8H)
    gx_enc = jnp.dot(x_enc, w_ih_enc, preferred_element_type=f32) + b_enc

    w_hh_f = slab_a_ref[WHHF_R0:WHHF_R0 + H, :]                    # (H, 4H)
    h = jnp.zeros((Bp, H), f32)
    c = jnp.zeros((Bp, H), f32)
    for t in range(t_enc):                                         # forward dir
        h, c = _lstm_cell(gx_enc[t * Bp:(t + 1) * Bp, 0:4 * H], h, c, w_hh_f)
    h_fwd_last = h

    # backward dir: states[:, -1, H:] is ONE zero-state step on x_{T-1};
    # h0 = c0 = 0 => h@W_hh == 0 and f*c == 0, so the cell collapses to this:
    gb = gx_enc[(t_enc - 1) * Bp:t_enc * Bp, 4 * H:8 * H]          # (Bp, 4H)
    i_b = jax.nn.sigmoid(gb[:, 0 * H:1 * H])
    g_b = jnp.tanh(gb[:, 2 * H:3 * H])
    o_b = jax.nn.sigmoid(gb[:, 3 * H:4 * H])
    h_bwd_last = o_b * jnp.tanh(i_b * g_b)

    context = jnp.concatenate([h_fwd_last, h_bwd_last], axis=-1)   # (Bp, 2H)

    # ---- reparametrize ([mu | logvar] in one fused matmul) + KLD -----------
    w_mulv = slab_a_ref[WMULV_R0:WMULV_R0 + 2 * H, 0:2 * L]        # (2H, 2L)
    b_mulv = slab_a_ref[BMULV_R0:BMULV_R0 + 1, 0:2 * L]            # (1, 2L)
    mulv = jnp.dot(context, w_mulv, preferred_element_type=f32) + b_mulv
    mu = mulv[:, 0:L]
    logvar = mulv[:, L:2 * L]
    std = jnp.exp(0.5 * logvar)
    z = mu + eps_ref[...] * std

    # padded batch rows must not contribute to the KLD sum
    bmask = (lax.broadcasted_iota(jnp.int32, (Bp, 1), 0) < batch).astype(f32)
    kld_row = -0.5 * jnp.sum(logvar - mu * mu - jnp.exp(logvar) + 1.0,
                             axis=-1, keepdims=True)               # (Bp, 1)
    kld_ref[...] = jnp.sum(kld_row * bmask, axis=0, keepdims=True)  # (1, 1)

    # ---- decoder ------------------------------------------------------------
    w_fc = slab_a_ref[WFC_R0:WFC_R0 + L, 0:L]
    b_fc = slab_a_ref[BFC_R0:BFC_R0 + 1, 0:L]
    z_fc = jax.nn.relu(jnp.dot(z, w_fc, preferred_element_type=f32) + b_fc)

    # decoder weights must be resident now (DMA was hidden behind the encoder)
    dec_cp.wait()

    w_ih_dec_z = dec_ref[WIHDZ_R0:WIHDZ_R0 + L, :]                 # (L, 4Hd)
    w_ih_dec_x = dec_ref[WIHDX_R0:WIHDX_R0 + D_PAD, :]             # (Dp, 4Hd)
    b_dec = dec_ref[BDEC_R0:BDEC_R0 + 1, :]                        # (1, 4Hd)

    # time-invariant z contribution to the gates (replaces concat([x, z]))
    gz = jnp.dot(z_fc, w_ih_dec_z, preferred_element_type=f32)     # (Bp, 4Hd)
    gx_dec = (jnp.dot(x_dec, w_ih_dec_x, preferred_element_type=f32)
              + b_dec
              + jnp.concatenate([gz] * t_dec, axis=0))             # (n_dec, 4Hd)

    w_hh_d = dec_ref[WHHD_R0:WHHD_R0 + Hd, :]                      # (Hd, 4Hd)
    hd = jnp.zeros((Bp, Hd), f32)
    cd = jnp.zeros((Bp, Hd), f32)
    for t in range(t_dec):
        hd, cd = _lstm_cell(gx_dec[t * Bp:(t + 1) * Bp, :], hd, cd, w_hh_d)
        h_all_ref[t * Bp:(t + 1) * Bp, :] = hd                     # VMEM scratch

    # vocab projection: single lane-dense (n_dec, 128) store
    w_out = dec_ref[WOUT_R0:WOUT_R0 + Hd, 0:VOCAB_PAD]             # (Hd, Vp)
    b_out = dec_ref[BOUT_R0:BOUT_R0 + 1, 0:VOCAB_PAD]              # (1, Vp)
    logits = (jnp.dot(h_all_ref[...], w_out, preferred_element_type=f32)
              + b_out)                                             # (n_dec, Vp)
    logits_ref[...] = logits.reshape(t_dec, Bp, VOCAB_PAD)


def _fused_forward(params, ids, eps, t_enc, t_dec, batch):
    kernel = functools.partial(_vae_kernel, t_enc=t_enc, t_dec=t_dec,
                               batch=batch)
    vmem = pl.BlockSpec(memory_space=pltpu.MemorySpace.VMEM)
    return pl.pallas_call(
        kernel,
        out_shape=(jax.ShapeDtypeStruct((t_dec, B_PAD, VOCAB_PAD), jnp.float32),
                   jax.ShapeDtypeStruct((1, 1), jnp.float32)),
        in_specs=[vmem, vmem, vmem, vmem,
                  pl.BlockSpec(memory_space=pl.ANY)],     # decoder slab in HBM
        out_specs=(vmem, vmem),
        scratch_shapes=[
            pltpu.VMEM((DEC_ROWS, 8 * HIDDEN), jnp.float32),   # decoder slab
            pltpu.SemaphoreType.DMA,                           # its DMA sem
            pltpu.VMEM((t_dec * B_PAD, 2 * HIDDEN), jnp.float32),  # h_all
        ],
    )(ids, params["slab_a"], params["slab_b"], eps, params["dec_slab"])


# ---------------------------------------------------------------------------
# Deterministic parameter init, emitted directly in kernel layout: three
# pre-transposed, zero-padded, tile-aligned slabs.
# ---------------------------------------------------------------------------
def init_params(key):
    ks = jax.random.split(key, 24)

    def u(k, shape, fan):
        bound = 1.0 / jnp.sqrt(jnp.float32(fan))
        return jax.random.uniform(k, shape, jnp.float32, -bound, bound)

    H, Hd, L = HIDDEN, 2 * HIDDEN, LATENT
    D, Dp, V, Vp = EMBEDDING_DIM, D_PAD, VOCAB_LEN, VOCAB_PAD

    # embedding (padding_idx row zeroed), padded to (Vp, Dp)
    emb = jax.random.normal(ks[0], (V, D), jnp.float32)
    emb = emb.at[PAD].set(0.0)
    emb = jnp.pad(emb, ((0, Vp - V), (0, Dp - D)))

    # bidirectional encoder LSTM: pack [forward | backward] input projections.
    # The backward-direction W_hh is mathematically unused for states[:, -1, H:]
    # (single zero-state step), so it is not materialized at all.
    w_ih_f = jnp.pad(u(ks[1], (D, 4 * H), H), ((0, Dp - D), (0, 0)))
    w_ih_b = jnp.pad(u(ks[2], (D, 4 * H), H), ((0, Dp - D), (0, 0)))
    w_ih_enc = jnp.concatenate([w_ih_f, w_ih_b], axis=1)           # (Dp, 8H)
    w_hh_f = u(ks[3], (H, 4 * H), H)
    b_enc = jnp.concatenate(
        [u(ks[5], (1, 4 * H), H) + u(ks[6], (1, 4 * H), H),        # fwd b_ih+b_hh
         u(ks[7], (1, 4 * H), H) + u(ks[8], (1, 4 * H), H)],       # bwd b_ih+b_hh
        axis=1)

    # decoder LSTM over concat([x, z_]): split input projection into x / z parts
    w_ih_dec = u(ks[9], (D + L, 4 * Hd), Hd)
    w_ih_dec_x = jnp.pad(w_ih_dec[:D], ((0, Dp - D), (0, 0)))      # (Dp, 4Hd)
    w_ih_dec_z = w_ih_dec[D:]                                      # (L, 4Hd)
    w_hh_dec = u(ks[10], (Hd, 4 * Hd), Hd)
    b_dec = u(ks[11], (1, 4 * Hd), Hd) + u(ks[12], (1, 4 * Hd), Hd)

    # context -> [mu | logvar] (fused), fc, vocab projection (padded to 128)
    w_mulv = jnp.concatenate([u(ks[13], (2 * H, L), 2 * H),
                              u(ks[15], (2 * H, L), 2 * H)], axis=1)
    b_mulv = jnp.concatenate([u(ks[14], (1, L), 2 * H),
                              u(ks[16], (1, L), 2 * H)], axis=1)
    w_fc = u(ks[17], (L, L), L)
    b_fc = u(ks[18], (1, L), L)
    w_out = jnp.pad(u(ks[19], (Hd, V), Hd), ((0, 0), (0, Vp - V)))
    b_out = jnp.pad(u(ks[20], (1, V), Hd), ((0, 0), (0, Vp - V)))

    def _place(slab, arr, r0):
        r, c = arr.shape
        return slab.at[r0:r0 + r, 0:c].set(arr)

    slab_a = jnp.zeros((SLAB_A_ROWS, D_PAD), jnp.float32)
    slab_a = _place(slab_a, emb, EMB_R0)
    slab_a = _place(slab_a, w_hh_f, WHHF_R0)
    slab_a = _place(slab_a, w_mulv, WMULV_R0)
    slab_a = _place(slab_a, b_mulv, BMULV_R0)
    slab_a = _place(slab_a, w_fc, WFC_R0)
    slab_a = _place(slab_a, b_fc, BFC_R0)

    slab_b = jnp.zeros((SLAB_B_ROWS, 8 * H), jnp.float32)
    slab_b = _place(slab_b, w_ih_enc, WIHENC_R0)
    slab_b = _place(slab_b, b_enc, BENC_R0)

    dec_slab = jnp.zeros((DEC_ROWS, 4 * Hd), jnp.float32)
    dec_slab = _place(dec_slab, w_ih_dec_x, WIHDX_R0)
    dec_slab = _place(dec_slab, w_ih_dec_z, WIHDZ_R0)
    dec_slab = _place(dec_slab, w_hh_dec, WHHD_R0)
    dec_slab = _place(dec_slab, b_dec, BDEC_R0)
    dec_slab = _place(dec_slab, w_out, WOUT_R0)
    dec_slab = _place(dec_slab, b_out, BOUT_R0)

    return dict(slab_a=slab_a, slab_b=slab_b, dec_slab=dec_slab)


# ---------------------------------------------------------------------------
# Forward, mirroring LSTM_VAE.forward(encoder_input, decoder_input).
# ---------------------------------------------------------------------------
def _prep_ids(ids):
    b, t = ids.shape
    ids_t = jnp.transpose(ids, (1, 0)).astype(jnp.int32)           # (T, B)
    ids_t = jnp.pad(ids_t, ((0, 0), (0, B_PAD - b)), constant_values=PAD)
    return ids_t.reshape(t * B_PAD, 1)


@jax.jit
def lstm_vae_forward(params, encoder_input, decoder_input, noise_key):
    b, t_enc = encoder_input.shape
    _, t_dec = decoder_input.shape

    eps = jax.random.normal(noise_key, (b, LATENT), jnp.float32)   # randn_like
    eps = jnp.pad(eps, ((0, B_PAD - b), (0, 0)))

    ids = jnp.concatenate([_prep_ids(encoder_input),
                           _prep_ids(decoder_input)], axis=0)      # (n_all, 1)

    logits_pad, kld = _fused_forward(params, ids, eps, t_enc, t_dec, b)
    # kernel writes time-major, batch/vocab padded -> strip padding, batch-first
    logits = jnp.transpose(logits_pad[:, :b, :VOCAB_LEN], (1, 0, 2))
    return logits, None, kld[0, 0]


if __name__ == "__main__":
    key = jax.random.PRNGKey(0)
    pkey, ekey, dkey, nkey = jax.random.split(key, 4)

    params = init_params(pkey)
    encoder_input = jax.random.randint(ekey, (BATCH, SEQ), 0, VOCAB_LEN,
                                       dtype=jnp.int32)
    decoder_input = jax.random.randint(dkey, (BATCH, SEQ), 0, VOCAB_LEN,
                                       dtype=jnp.int32)

    logits, _, kld = lstm_vae_forward(params, encoder_input, decoder_input, nkey)
    jax.block_until_ready((logits, kld))

    assert logits.shape == (BATCH, SEQ, VOCAB_LEN)
    assert logits.dtype == jnp.float32
    assert kld.shape == ()
    assert bool(jnp.all(jnp.isfinite(logits))) and bool(jnp.isfinite(kld))
    print("KERNEL_OK")
</pallas_src>

<mosaic_0001>
module attributes {stable_mosaic.version = 11 : i64} {
  func.func @_vae_kernel(%arg0: memref<128x1xi32, #tpu.memory_space<vmem>>, %arg1: memref<272x128xf32, #tpu.memory_space<vmem>>, %arg2: memref<136x256xf32, #tpu.memory_space<vmem>>, %arg3: memref<8x16xf32, #tpu.memory_space<vmem>>, %arg4: memref<288x256xf32, #tpu.memory_space<any>>, %arg5: memref<8x8x128xf32, #tpu.memory_space<vmem>>, %arg6: memref<1x1xf32, #tpu.memory_space<vmem>>, %arg7: memref<288x256xf32, #tpu.memory_space<vmem>>, %arg8: memref<!tpu.dma_semaphore, #tpu.memory_space<semaphore_mem>>, %arg9: memref<64x64xf32, #tpu.memory_space<vmem>>) attributes {dimension_semantics = [], scalar_prefetch = 0 : i64, scratch_operands = 3 : i64, tpu.core_type = #tpu.core_type<tc>} {
    tpu.enqueue_dma source(%arg4 : memref<288x256xf32, #tpu.memory_space<any>>) target(%arg7 : memref<288x256xf32, #tpu.memory_space<vmem>>) target_semaphore(%arg8 : memref<!tpu.dma_semaphore, #tpu.memory_space<semaphore_mem>>)
    %c0 = arith.constant 0 : index
    %c0_0 = arith.constant 0 : index
    %0 = vector.load %arg0[%c0, %c0_0] : memref<128x1xi32, #tpu.memory_space<vmem>>, vector<128x1xi32>
    %1 = tpu.iota {dimensions = array<i32: 1>} : vector<128x128xi32>
    %2 = vector.broadcast %0 : vector<128x1xi32> to vector<128x128xi32>
    %3 = arith.cmpi eq, %2, %1 : vector<128x128xi32>
    %4 = arith.extui %3 : vector<128x128xi1> to vector<128x128xi32>
    %5 = arith.sitofp %4 : vector<128x128xi32> to vector<128x128xf32>
    %c0_1 = arith.constant 0 : index
    %c0_2 = arith.constant 0 : index
    %6 = vector.load %arg1[%c0_1, %c0_2] : memref<272x128xf32, #tpu.memory_space<vmem>>, vector<128x128xf32>
    %cst = arith.constant dense<0.000000e+00> : vector<128x128xf32>
    %7 = tpu.matmul %5, %6, %cst {dimension_numbers = #tpu.dot_dimension_numbers<[1], [0], [0], [1], [0, 0, 1, 1], [], []>} : vector<128x128xf32>, vector<128x128xf32>, vector<128x128xf32> -> vector<128x128xf32>
    %8 = vector.extract_strided_slice %7 {offsets = [0, 0], sizes = [64, 128], strides = [1, 1]} : vector<128x128xf32> to vector<64x128xf32>
    %9 = vector.extract_strided_slice %7 {offsets = [64, 0], sizes = [64, 128], strides = [1, 1]} : vector<128x128xf32> to vector<64x128xf32>
    %c0_3 = arith.constant 0 : index
    %c0_4 = arith.constant 0 : index
    %10 = vector.load %arg2[%c0_3, %c0_4] : memref<136x256xf32, #tpu.memory_space<vmem>>, vector<128x256xf32>
    %c128 = arith.constant 128 : index
    %c0_5 = arith.constant 0 : index
    %11 = vector.load %arg2[%c128, %c0_5] : memref<136x256xf32, #tpu.memory_space<vmem>>, vector<1x256xf32>
    %cst_6 = arith.constant dense<0.000000e+00> : vector<64x256xf32>
    %12 = tpu.matmul %8, %10, %cst_6 {dimension_numbers = #tpu.dot_dimension_numbers<[1], [0], [0], [1], [0, 0, 1, 1], [], []>} : vector<64x128xf32>, vector<128x256xf32>, vector<64x256xf32> -> vector<64x256xf32>
    %13 = vector.broadcast %11 : vector<1x256xf32> to vector<64x256xf32>
    %14 = arith.addf %12, %13 : vector<64x256xf32>
    %c128_7 = arith.constant 128 : index
    %c0_8 = arith.constant 0 : index
    %15 = vector.load %arg1[%c128_7, %c0_8] : memref<272x128xf32, #tpu.memory_space<vmem>>, vector<32x128xf32>
    %cst_9 = arith.constant 0.000000e+00 : f32
    %16 = vector.broadcast %cst_9 : f32 to vector<8x32xf32>
    %cst_10 = arith.constant 0.000000e+00 : f32
    %17 = vector.broadcast %cst_10 : f32 to vector<8x32xf32>
    %18 = vector.extract_strided_slice %14 {offsets = [0, 0], sizes = [8, 128], strides = [1, 1]} : vector<64x256xf32> to vector<8x128xf32>
    %cst_11 = arith.constant dense<0.000000e+00> : vector<8x128xf32>
    %19 = tpu.matmul %16, %15, %cst_11 {dimension_numbers = #tpu.dot_dimension_numbers<[1], [0], [0], [1], [0, 0, 1, 1], [], []>} : vector<8x32xf32>, vector<32x128xf32>, vector<8x128xf32> -> vector<8x128xf32>
    %20 = arith.addf %18, %19 : vector<8x128xf32>
    %21 = vector.extract_strided_slice %20 {offsets = [0, 0], sizes = [8, 32], strides = [1, 1]} : vector<8x128xf32> to vector<8x32xf32>
    %22 = arith.negf %21 : vector<8x32xf32>
    %23 = math.exp %22 : vector<8x32xf32>
    %cst_12 = arith.constant 1.000000e+00 : f32
    %24 = vector.broadcast %cst_12 : f32 to vector<8x32xf32>
    %25 = arith.addf %24, %23 : vector<8x32xf32>
    %26 = arith.divf %24, %25 : vector<8x32xf32>
    %27 = vector.extract_strided_slice %20 {offsets = [0, 32], sizes = [8, 32], strides = [1, 1]} : vector<8x128xf32> to vector<8x32xf32>
    %28 = arith.negf %27 : vector<8x32xf32>
    %29 = math.exp %28 : vector<8x32xf32>
    %cst_13 = arith.constant 1.000000e+00 : f32
    %30 = vector.broadcast %cst_13 : f32 to vector<8x32xf32>
    %31 = arith.addf %30, %29 : vector<8x32xf32>
    %32 = arith.divf %30, %31 : vector<8x32xf32>
    %33 = vector.extract_strided_slice %20 {offsets = [0, 64], sizes = [8, 32], strides = [1, 1]} : vector<8x128xf32> to vector<8x32xf32>
    %34 = math.tanh %33 : vector<8x32xf32>
    %35 = vector.extract_strided_slice %20 {offsets = [0, 96], sizes = [8, 32], strides = [1, 1]} : vector<8x128xf32> to vector<8x32xf32>
    %36 = arith.negf %35 : vector<8x32xf32>
    %37 = math.exp %36 : vector<8x32xf32>
    %cst_14 = arith.constant 1.000000e+00 : f32
    %38 = vector.broadcast %cst_14 : f32 to vector<8x32xf32>
    %39 = arith.addf %38, %37 : vector<8x32xf32>
    %40 = arith.divf %38, %39 : vector<8x32xf32>
    %41 = arith.mulf %32, %17 : vector<8x32xf32>
    %42 = arith.mulf %26, %34 : vector<8x32xf32>
    %43 = arith.addf %41, %42 : vector<8x32xf32>
    %44 = math.tanh %43 : vector<8x32xf32>
    %45 = arith.mulf %40, %44 : vector<8x32xf32>
    %46 = vector.extract_strided_slice %14 {offsets = [8, 0], sizes = [8, 128], strides = [1, 1]} : vector<64x256xf32> to vector<8x128xf32>
    %cst_15 = arith.constant dense<0.000000e+00> : vector<8x128xf32>
    %47 = tpu.matmul %45, %15, %cst_15 {dimension_numbers = #tpu.dot_dimension_numbers<[1], [0], [0], [1], [0, 0, 1, 1], [], []>} : vector<8x32xf32>, vector<32x128xf32>, vector<8x128xf32> -> vector<8x128xf32>
    %48 = arith.addf %46, %47 : vector<8x128xf32>
    %49 = vector.extract_strided_slice %48 {offsets = [0, 0], sizes = [8, 32], strides = [1, 1]} : vector<8x128xf32> to vector<8x32xf32>
    %50 = arith.negf %49 : vector<8x32xf32>
    %51 = math.exp %50 : vector<8x32xf32>
    %cst_16 = arith.constant 1.000000e+00 : f32
    %52 = vector.broadcast %cst_16 : f32 to vector<8x32xf32>
    %53 = arith.addf %52, %51 : vector<8x32xf32>
    %54 = arith.divf %52, %53 : vector<8x32xf32>
    %55 = vector.extract_strided_slice %48 {offsets = [0, 32], sizes = [8, 32], strides = [1, 1]} : vector<8x128xf32> to vector<8x32xf32>
    %56 = arith.negf %55 : vector<8x32xf32>
    %57 = math.exp %56 : vector<8x32xf32>
    %cst_17 = arith.constant 1.000000e+00 : f32
    %58 = vector.broadcast %cst_17 : f32 to vector<8x32xf32>
    %59 = arith.addf %58, %57 : vector<8x32xf32>
    %60 = arith.divf %58, %59 : vector<8x32xf32>
    %61 = vector.extract_strided_slice %48 {offsets = [0, 64], sizes = [8, 32], strides = [1, 1]} : vector<8x128xf32> to vector<8x32xf32>
    %62 = math.tanh %61 : vector<8x32xf32>
    %63 = vector.extract_strided_slice %48 {offsets = [0, 96], sizes = [8, 32], strides = [1, 1]} : vector<8x128xf32> to vector<8x32xf32>
    %64 = arith.negf %63 : vector<8x32xf32>
    %65 = math.exp %64 : vector<8x32xf32>
    %cst_18 = arith.constant 1.000000e+00 : f32
    %66 = vector.broadcast %cst_18 : f32 to vector<8x32xf32>
    %67 = arith.addf %66, %65 : vector<8x32xf32>
    %68 = arith.divf %66, %67 : vector<8x32xf32>
    %69 = arith.mulf %60, %43 : vector<8x32xf32>
    %70 = arith.mulf %54, %62 : vector<8x32xf32>
    %71 = arith.addf %69, %70 : vector<8x32xf32>
    %72 = math.tanh %71 : vector<8x32xf32>
    %73 = arith.mulf %68, %72 : vector<8x32xf32>
    %74 = vector.extract_strided_slice %14 {offsets = [16, 0], sizes = [8, 128], strides = [1, 1]} : vector<64x256xf32> to vector<8x128xf32>
    %cst_19 = arith.constant dense<0.000000e+00> : vector<8x128xf32>
    %75 = tpu.matmul %73, %15, %cst_19 {dimension_numbers = #tpu.dot_dimension_numbers<[1], [0], [0], [1], [0, 0, 1, 1], [], []>} : vector<8x32xf32>, vector<32x128xf32>, vector<8x128xf32> -> vector<8x128xf32>
    %76 = arith.addf %74, %75 : vector<8x128xf32>
    %77 = vector.extract_strided_slice %76 {offsets = [0, 0], sizes = [8, 32], strides = [1, 1]} : vector<8x128xf32> to vector<8x32xf32>
    %78 = arith.negf %77 : vector<8x32xf32>
    %79 = math.exp %78 : vector<8x32xf32>
    %cst_20 = arith.constant 1.000000e+00 : f32
    %80 = vector.broadcast %cst_20 : f32 to vector<8x32xf32>
    %81 = arith.addf %80, %79 : vector<8x32xf32>
    %82 = arith.divf %80, %81 : vector<8x32xf32>
    %83 = vector.extract_strided_slice %76 {offsets = [0, 32], sizes = [8, 32], strides = [1, 1]} : vector<8x128xf32> to vector<8x32xf32>
    %84 = arith.negf %83 : vector<8x32xf32>
    %85 = math.exp %84 : vector<8x32xf32>
    %cst_21 = arith.constant 1.000000e+00 : f32
    %86 = vector.broadcast %cst_21 : f32 to vector<8x32xf32>
    %87 = arith.addf %86, %85 : vector<8x32xf32>
    %88 = arith.divf %86, %87 : vector<8x32xf32>
    %89 = vector.extract_strided_slice %76 {offsets = [0, 64], sizes = [8, 32], strides = [1, 1]} : vector<8x128xf32> to vector<8x32xf32>
    %90 = math.tanh %89 : vector<8x32xf32>
    %91 = vector.extract_strided_slice %76 {offsets = [0, 96], sizes = [8, 32], strides = [1, 1]} : vector<8x128xf32> to vector<8x32xf32>
    %92 = arith.negf %91 : vector<8x32xf32>
    %93 = math.exp %92 : vector<8x32xf32>
    %cst_22 = arith.constant 1.000000e+00 : f32
    %94 = vector.broadcast %cst_22 : f32 to vector<8x32xf32>
    %95 = arith.addf %94, %93 : vector<8x32xf32>
    %96 = arith.divf %94, %95 : vector<8x32xf32>
    %97 = arith.mulf %88, %71 : vector<8x32xf32>
    %98 = arith.mulf %82, %90 : vector<8x32xf32>
    %99 = arith.addf %97, %98 : vector<8x32xf32>
    %100 = math.tanh %99 : vector<8x32xf32>
    %101 = arith.mulf %96, %100 : vector<8x32xf32>
    %102 = vector.extract_strided_slice %14 {offsets = [24, 0], sizes = [8, 128], strides = [1, 1]} : vector<64x256xf32> to vector<8x128xf32>
    %cst_23 = arith.constant dense<0.000000e+00> : vector<8x128xf32>
    %103 = tpu.matmul %101, %15, %cst_23 {dimension_numbers = #tpu.dot_dimension_numbers<[1], [0], [0], [1], [0, 0, 1, 1], [], []>} : vector<8x32xf32>, vector<32x128xf32>, vector<8x128xf32> -> vector<8x128xf32>
    %104 = arith.addf %102, %103 : vector<8x128xf32>
    %105 = vector.extract_strided_slice %104 {offsets = [0, 0], sizes = [8, 32], strides = [1, 1]} : vector<8x128xf32> to vector<8x32xf32>
    %106 = arith.negf %105 : vector<8x32xf32>
    %107 = math.exp %106 : vector<8x32xf32>
    %cst_24 = arith.constant 1.000000e+00 : f32
    %108 = vector.broadcast %cst_24 : f32 to vector<8x32xf32>
    %109 = arith.addf %108, %107 : vector<8x32xf32>
    %110 = arith.divf %108, %109 : vector<8x32xf32>
    %111 = vector.extract_strided_slice %104 {offsets = [0, 32], sizes = [8, 32], strides = [1, 1]} : vector<8x128xf32> to vector<8x32xf32>
    %112 = arith.negf %111 : vector<8x32xf32>
    %113 = math.exp %112 : vector<8x32xf32>
    %cst_25 = arith.constant 1.000000e+00 : f32
    %114 = vector.broadcast %cst_25 : f32 to vector<8x32xf32>
    %115 = arith.addf %114, %113 : vector<8x32xf32>
    %116 = arith.divf %114, %115 : vector<8x32xf32>
    %117 = vector.extract_strided_slice %104 {offsets = [0, 64], sizes = [8, 32], strides = [1, 1]} : vector<8x128xf32> to vector<8x32xf32>
    %118 = math.tanh %117 : vector<8x32xf32>
    %119 = vector.extract_strided_slice %104 {offsets = [0, 96], sizes = [8, 32], strides = [1, 1]} : vector<8x128xf32> to vector<8x32xf32>
    %120 = arith.negf %119 : vector<8x32xf32>
    %121 = math.exp %120 : vector<8x32xf32>
    %cst_26 = arith.constant 1.000000e+00 : f32
    %122 = vector.broadcast %cst_26 : f32 to vector<8x32xf32>
    %123 = arith.addf %122, %121 : vector<8x32xf32>
    %124 = arith.divf %122, %123 : vector<8x32xf32>
    %125 = arith.mulf %116, %99 : vector<8x32xf32>
    %126 = arith.mulf %110, %118 : vector<8x32xf32>
    %127 = arith.addf %125, %126 : vector<8x32xf32>
    %128 = math.tanh %127 : vector<8x32xf32>
    %129 = arith.mulf %124, %128 : vector<8x32xf32>
    %130 = vector.extract_strided_slice %14 {offsets = [32, 0], sizes = [8, 128], strides = [1, 1]} : vector<64x256xf32> to vector<8x128xf32>
    %cst_27 = arith.constant dense<0.000000e+00> : vector<8x128xf32>
    %131 = tpu.matmul %129, %15, %cst_27 {dimension_numbers = #tpu.dot_dimension_numbers<[1], [0], [0], [1], [0, 0, 1, 1], [], []>} : vector<8x32xf32>, vector<32x128xf32>, vector<8x128xf32> -> vector<8x128xf32>
    %132 = arith.addf %130, %131 : vector<8x128xf32>
    %133 = vector.extract_strided_slice %132 {offsets = [0, 0], sizes = [8, 32], strides = [1, 1]} : vector<8x128xf32> to vector<8x32xf32>
    %134 = arith.negf %133 : vector<8x32xf32>
    %135 = math.exp %134 : vector<8x32xf32>
    %cst_28 = arith.constant 1.000000e+00 : f32
    %136 = vector.broadcast %cst_28 : f32 to vector<8x32xf32>
    %137 = arith.addf %136, %135 : vector<8x32xf32>
    %138 = arith.divf %136, %137 : vector<8x32xf32>
    %139 = vector.extract_strided_slice %132 {offsets = [0, 32], sizes = [8, 32], strides = [1, 1]} : vector<8x128xf32> to vector<8x32xf32>
    %140 = arith.negf %139 : vector<8x32xf32>
    %141 = math.exp %140 : vector<8x32xf32>
    %cst_29 = arith.constant 1.000000e+00 : f32
    %142 = vector.broadcast %cst_29 : f32 to vector<8x32xf32>
    %143 = arith.addf %142, %141 : vector<8x32xf32>
    %144 = arith.divf %142, %143 : vector<8x32xf32>
    %145 = vector.extract_strided_slice %132 {offsets = [0, 64], sizes = [8, 32], strides = [1, 1]} : vector<8x128xf32> to vector<8x32xf32>
    %146 = math.tanh %145 : vector<8x32xf32>
    %147 = vector.extract_strided_slice %132 {offsets = [0, 96], sizes = [8, 32], strides = [1, 1]} : vector<8x128xf32> to vector<8x32xf32>
    %148 = arith.negf %147 : vector<8x32xf32>
    %149 = math.exp %148 : vector<8x32xf32>
    %cst_30 = arith.constant 1.000000e+00 : f32
    %150 = vector.broadcast %cst_30 : f32 to vector<8x32xf32>
    %151 = arith.addf %150, %149 : vector<8x32xf32>
    %152 = arith.divf %150, %151 : vector<8x32xf32>
    %153 = arith.mulf %144, %127 : vector<8x32xf32>
    %154 = arith.mulf %138, %146 : vector<8x32xf32>
    %155 = arith.addf %153, %154 : vector<8x32xf32>
    %156 = math.tanh %155 : vector<8x32xf32>
    %157 = arith.mulf %152, %156 : vector<8x32xf32>
    %158 = vector.extract_strided_slice %14 {offsets = [40, 0], sizes = [8, 128], strides = [1, 1]} : vector<64x256xf32> to vector<8x128xf32>
    %cst_31 = arith.constant dense<0.000000e+00> : vector<8x128xf32>
    %159 = tpu.matmul %157, %15, %cst_31 {dimension_numbers = #tpu.dot_dimension_numbers<[1], [0], [0], [1], [0, 0, 1, 1], [], []>} : vector<8x32xf32>, vector<32x128xf32>, vector<8x128xf32> -> vector<8x128xf32>
    %160 = arith.addf %158, %159 : vector<8x128xf32>
    %161 = vector.extract_strided_slice %160 {offsets = [0, 0], sizes = [8, 32], strides = [1, 1]} : vector<8x128xf32> to vector<8x32xf32>
    %162 = arith.negf %161 : vector<8x32xf32>
    %163 = math.exp %162 : vector<8x32xf32>
    %cst_32 = arith.constant 1.000000e+00 : f32
    %164 = vector.broadcast %cst_32 : f32 to vector<8x32xf32>
    %165 = arith.addf %164, %163 : vector<8x32xf32>
    %166 = arith.divf %164, %165 : vector<8x32xf32>
    %167 = vector.extract_strided_slice %160 {offsets = [0, 32], sizes = [8, 32], strides = [1, 1]} : vector<8x128xf32> to vector<8x32xf32>
    %168 = arith.negf %167 : vector<8x32xf32>
    %169 = math.exp %168 : vector<8x32xf32>
    %cst_33 = arith.constant 1.000000e+00 : f32
    %170 = vector.broadcast %cst_33 : f32 to vector<8x32xf32>
    %171 = arith.addf %170, %169 : vector<8x32xf32>
    %172 = arith.divf %170, %171 : vector<8x32xf32>
    %173 = vector.extract_strided_slice %160 {offsets = [0, 64], sizes = [8, 32], strides = [1, 1]} : vector<8x128xf32> to vector<8x32xf32>
    %174 = math.tanh %173 : vector<8x32xf32>
    %175 = vector.extract_strided_slice %160 {offsets = [0, 96], sizes = [8, 32], strides = [1, 1]} : vector<8x128xf32> to vector<8x32xf32>
    %176 = arith.negf %175 : vector<8x32xf32>
    %177 = math.exp %176 : vector<8x32xf32>
    %cst_34 = arith.constant 1.000000e+00 : f32
    %178 = vector.broadcast %cst_34 : f32 to vector<8x32xf32>
    %179 = arith.addf %178, %177 : vector<8x32xf32>
    %180 = arith.divf %178, %179 : vector<8x32xf32>
    %181 = arith.mulf %172, %155 : vector<8x32xf32>
    %182 = arith.mulf %166, %174 : vector<8x32xf32>
    %183 = arith.addf %181, %182 : vector<8x32xf32>
    %184 = math.tanh %183 : vector<8x32xf32>
    %185 = arith.mulf %180, %184 : vector<8x32xf32>
    %186 = vector.extract_strided_slice %14 {offsets = [48, 0], sizes = [8, 128], strides = [1, 1]} : vector<64x256xf32> to vector<8x128xf32>
    %cst_35 = arith.constant dense<0.000000e+00> : vector<8x128xf32>
    %187 = tpu.matmul %185, %15, %cst_35 {dimension_numbers = #tpu.dot_dimension_numbers<[1], [0], [0], [1], [0, 0, 1, 1], [], []>} : vector<8x32xf32>, vector<32x128xf32>, vector<8x128xf32> -> vector<8x128xf32>
    %188 = arith.addf %186, %187 : vector<8x128xf32>
    %189 = vector.extract_strided_slice %188 {offsets = [0, 0], sizes = [8, 32], strides = [1, 1]} : vector<8x128xf32> to vector<8x32xf32>
    %190 = arith.negf %189 : vector<8x32xf32>
    %191 = math.exp %190 : vector<8x32xf32>
    %cst_36 = arith.constant 1.000000e+00 : f32
    %192 = vector.broadcast %cst_36 : f32 to vector<8x32xf32>
    %193 = arith.addf %192, %191 : vector<8x32xf32>
    %194 = arith.divf %192, %193 : vector<8x32xf32>
    %195 = vector.extract_strided_slice %188 {offsets = [0, 32], sizes = [8, 32], strides = [1, 1]} : vector<8x128xf32> to vector<8x32xf32>
    %196 = arith.negf %195 : vector<8x32xf32>
    %197 = math.exp %196 : vector<8x32xf32>
    %cst_37 = arith.constant 1.000000e+00 : f32
    %198 = vector.broadcast %cst_37 : f32 to vector<8x32xf32>
    %199 = arith.addf %198, %197 : vector<8x32xf32>
    %200 = arith.divf %198, %199 : vector<8x32xf32>
    %201 = vector.extract_strided_slice %188 {offsets = [0, 64], sizes = [8, 32], strides = [1, 1]} : vector<8x128xf32> to vector<8x32xf32>
    %202 = math.tanh %201 : vector<8x32xf32>
    %203 = vector.extract_strided_slice %188 {offsets = [0, 96], sizes = [8, 32], strides = [1, 1]} : vector<8x128xf32> to vector<8x32xf32>
    %204 = arith.negf %203 : vector<8x32xf32>
    %205 = math.exp %204 : vector<8x32xf32>
    %cst_38 = arith.constant 1.000000e+00 : f32
    %206 = vector.broadcast %cst_38 : f32 to vector<8x32xf32>
    %207 = arith.addf %206, %205 : vector<8x32xf32>
    %208 = arith.divf %206, %207 : vector<8x32xf32>
    %209 = arith.mulf %200, %183 : vector<8x32xf32>
    %210 = arith.mulf %194, %202 : vector<8x32xf32>
    %211 = arith.addf %209, %210 : vector<8x32xf32>
    %212 = math.tanh %211 : vector<8x32xf32>
    %213 = arith.mulf %208, %212 : vector<8x32xf32>
    %214 = vector.extract_strided_slice %14 {offsets = [56, 0], sizes = [8, 128], strides = [1, 1]} : vector<64x256xf32> to vector<8x128xf32>
    %cst_39 = arith.constant dense<0.000000e+00> : vector<8x128xf32>
    %215 = tpu.matmul %213, %15, %cst_39 {dimension_numbers = #tpu.dot_dimension_numbers<[1], [0], [0], [1], [0, 0, 1, 1], [], []>} : vector<8x32xf32>, vector<32x128xf32>, vector<8x128xf32> -> vector<8x128xf32>
    %216 = arith.addf %214, %215 : vector<8x128xf32>
    %217 = vector.extract_strided_slice %216 {offsets = [0, 0], sizes = [8, 32], strides = [1, 1]} : vector<8x128xf32> to vector<8x32xf32>
    %218 = arith.negf %217 : vector<8x32xf32>
    %219 = math.exp %218 : vector<8x32xf32>
    %cst_40 = arith.constant 1.000000e+00 : f32
    %220 = vector.broadcast %cst_40 : f32 to vector<8x32xf32>
    %221 = arith.addf %220, %219 : vector<8x32xf32>
    %222 = arith.divf %220, %221 : vector<8x32xf32>
    %223 = vector.extract_strided_slice %216 {offsets = [0, 32], sizes = [8, 32], strides = [1, 1]} : vector<8x128xf32> to vector<8x32xf32>
    %224 = arith.negf %223 : vector<8x32xf32>
    %225 = math.exp %224 : vector<8x32xf32>
    %cst_41 = arith.constant 1.000000e+00 : f32
    %226 = vector.broadcast %cst_41 : f32 to vector<8x32xf32>
    %227 = arith.addf %226, %225 : vector<8x32xf32>
    %228 = arith.divf %226, %227 : vector<8x32xf32>
    %229 = vector.extract_strided_slice %216 {offsets = [0, 64], sizes = [8, 32], strides = [1, 1]} : vector<8x128xf32> to vector<8x32xf32>
    %230 = math.tanh %229 : vector<8x32xf32>
    %231 = vector.extract_strided_slice %216 {offsets = [0, 96], sizes = [8, 32], strides = [1, 1]} : vector<8x128xf32> to vector<8x32xf32>
    %232 = arith.negf %231 : vector<8x32xf32>
    %233 = math.exp %232 : vector<8x32xf32>
    %cst_42 = arith.constant 1.000000e+00 : f32
    %234 = vector.broadcast %cst_42 : f32 to vector<8x32xf32>
    %235 = arith.addf %234, %233 : vector<8x32xf32>
    %236 = arith.divf %234, %235 : vector<8x32xf32>
    %237 = arith.mulf %228, %211 : vector<8x32xf32>
    %238 = arith.mulf %222, %230 : vector<8x32xf32>
    %239 = arith.addf %237, %238 : vector<8x32xf32>
    %240 = math.tanh %239 : vector<8x32xf32>
    %241 = arith.mulf %236, %240 : vector<8x32xf32>
    %242 = vector.extract_strided_slice %14 {offsets = [56, 128], sizes = [8, 128], strides = [1, 1]} : vector<64x256xf32> to vector<8x128xf32>
    %243 = vector.extract_strided_slice %242 {offsets = [0, 0], sizes = [8, 32], strides = [1, 1]} : vector<8x128xf32> to vector<8x32xf32>
    %244 = arith.negf %243 : vector<8x32xf32>
    %245 = math.exp %244 : vector<8x32xf32>
    %cst_43 = arith.constant 1.000000e+00 : f32
    %246 = vector.broadcast %cst_43 : f32 to vector<8x32xf32>
    %247 = arith.addf %246, %245 : vector<8x32xf32>
    %248 = arith.divf %246, %247 : vector<8x32xf32>
    %249 = vector.extract_strided_slice %242 {offsets = [0, 64], sizes = [8, 32], strides = [1, 1]} : vector<8x128xf32> to vector<8x32xf32>
    %250 = math.tanh %249 : vector<8x32xf32>
    %251 = vector.extract_strided_slice %242 {offsets = [0, 96], sizes = [8, 32], strides = [1, 1]} : vector<8x128xf32> to vector<8x32xf32>
    %252 = arith.negf %251 : vector<8x32xf32>
    %253 = math.exp %252 : vector<8x32xf32>
    %cst_44 = arith.constant 1.000000e+00 : f32
    %254 = vector.broadcast %cst_44 : f32 to vector<8x32xf32>
    %255 = arith.addf %254, %253 : vector<8x32xf32>
    %256 = arith.divf %254, %255 : vector<8x32xf32>
    %257 = arith.mulf %248, %250 : vector<8x32xf32>
    %258 = math.tanh %257 : vector<8x32xf32>
    %259 = arith.mulf %256, %258 : vector<8x32xf32>
    %260 = tpu.concatenate %241, %259 in 1 : vector<8x32xf32>, vector<8x32xf32> -> vector<8x64xf32>
    %c160 = arith.constant 160 : index
    %c0_45 = arith.constant 0 : index
    %261 = vector.load %arg1[%c160, %c0_45] : memref<272x128xf32, #tpu.memory_space<vmem>>, vector<64x32xf32>
    %c224 = arith.constant 224 : index
    %c0_46 = arith.constant 0 : index
    %262 = vector.load %arg1[%c224, %c0_46] : memref<272x128xf32, #tpu.memory_space<vmem>>, vector<1x32xf32>
    %cst_47 = arith.constant dense<0.000000e+00> : vector<8x32xf32>
    %263 = tpu.matmul %260, %261, %cst_47 {dimension_numbers = #tpu.dot_dimension_numbers<[1], [0], [0], [1], [0, 0, 1, 1], [], []>} : vector<8x64xf32>, vector<64x32xf32>, vector<8x32xf32> -> vector<8x32xf32>
    %264 = vector.broadcast %262 : vector<1x32xf32> to vector<8x32xf32>
    %265 = arith.addf %263, %264 : vector<8x32xf32>
    %266 = vector.extract_strided_slice %265 {offsets = [0, 0], sizes = [8, 16], strides = [1, 1]} : vector<8x32xf32> to vector<8x16xf32>
    %267 = vector.extract_strided_slice %265 {offsets = [0, 16], sizes = [8, 16], strides = [1, 1]} : vector<8x32xf32> to vector<8x16xf32>
    %cst_48 = arith.constant 5.000000e-01 : f32
    %268 = vector.broadcast %cst_48 : f32 to vector<8x16xf32>
    %269 = arith.mulf %268, %267 : vector<8x16xf32>
    %270 = math.exp %269 : vector<8x16xf32>
    %c0_49 = arith.constant 0 : index
    %c0_50 = arith.constant 0 : index
    %271 = vector.load %arg3[%c0_49, %c0_50] : memref<8x16xf32, #tpu.memory_space<vmem>>, vector<8x16xf32>
    %272 = arith.mulf %271, %270 : vector<8x16xf32>
    %273 = arith.addf %266, %272 : vector<8x16xf32>
    %274 = tpu.iota {dimensions = array<i32: 0>} : vector<8x1xi32>
    %c2_i32 = arith.constant 2 : i32
    %275 = vector.broadcast %c2_i32 : i32 to vector<8x1xi32>
    %276 = arith.cmpi slt, %274, %275 : vector<8x1xi32>
    %277 = arith.extui %276 : vector<8x1xi1> to vector<8x1xi32>
    %278 = arith.sitofp %277 : vector<8x1xi32> to vector<8x1xf32>
    %279 = arith.mulf %266, %266 : vector<8x16xf32>
    %280 = arith.subf %267, %279 : vector<8x16xf32>
    %281 = math.exp %267 : vector<8x16xf32>
    %282 = arith.subf %280, %281 : vector<8x16xf32>
    %cst_51 = arith.constant 1.000000e+00 : f32
    %283 = vector.broadcast %cst_51 : f32 to vector<8x16xf32>
    %284 = arith.addf %282, %283 : vector<8x16xf32>
    %cst_52 = arith.constant dense<0.000000e+00> : vector<8xf32>
    %285 = vector.multi_reduction <add>, %284, %cst_52 [1] : vector<8x16xf32> to vector<8xf32>
    %286 = vector.shape_cast %285 : vector<8xf32> to vector<8x1xf32>
    %cst_53 = arith.constant -5.000000e-01 : f32
    %287 = vector.broadcast %cst_53 : f32 to vector<8x1xf32>
    %288 = arith.mulf %287, %286 : vector<8x1xf32>
    %289 = arith.mulf %288, %278 : vector<8x1xf32>
    %cst_54 = arith.constant dense<0.000000e+00> : vector<1xf32>
    %290 = vector.multi_reduction <add>, %289, %cst_54 [0] : vector<8x1xf32> to vector<1xf32>
    %291 = vector.shape_cast %290 : vector<1xf32> to vector<1x1xf32>
    %c0_55 = arith.constant 0 : index
    %c0_56 = arith.constant 0 : index
    %292 = vector.load %arg6[%c0_55, %c0_56] : memref<1x1xf32, #tpu.memory_space<vmem>>, vector<1x1xf32>
    tpu.vector_store %arg6[%c0_55, %c0_56], %291 {strides = array<i32>} : memref<1x1xf32, #tpu.memory_space<vmem>>, vector<1x1xf32>,
    %c232 = arith.constant 232 : index
    %c0_57 = arith.constant 0 : index
    %293 = vector.load %arg1[%c232, %c0_57] : memref<272x128xf32, #tpu.memory_space<vmem>>, vector<16x16xf32>
    %c264 = arith.constant 264 : index
    %c0_58 = arith.constant 0 : index
    %294 = vector.load %arg1[%c264, %c0_58] : memref<272x128xf32, #tpu.memory_space<vmem>>, vector<1x16xf32>
    %cst_59 = arith.constant dense<0.000000e+00> : vector<8x16xf32>
    %295 = tpu.matmul %273, %293, %cst_59 {dimension_numbers = #tpu.dot_dimension_numbers<[1], [0], [0], [1], [0, 0, 1, 1], [], []>} : vector<8x16xf32>, vector<16x16xf32>, vector<8x16xf32> -> vector<8x16xf32>
    %296 = vector.broadcast %294 : vector<1x16xf32> to vector<8x16xf32>
    %297 = arith.addf %295, %296 : vector<8x16xf32>
    %cst_60 = arith.constant 0.000000e+00 : f32
    %298 = vector.broadcast %cst_60 : f32 to vector<8x16xf32>
    %299 = arith.maximumf %297, %298 : vector<8x16xf32>
    tpu.wait_dma2 semaphore(%arg8 : memref<!tpu.dma_semaphore, #tpu.memory_space<semaphore_mem>>) src(%arg4 : memref<288x256xf32, #tpu.memory_space<any>>) dst(%arg7 : memref<288x256xf32, #tpu.memory_space<vmem>>)
    %c128_61 = arith.constant 128 : index
    %c0_62 = arith.constant 0 : index
    %300 = vector.load %arg7[%c128_61, %c0_62] : memref<288x256xf32, #tpu.memory_space<vmem>>, vector<16x256xf32>
    %c0_63 = arith.constant 0 : index
    %c0_64 = arith.constant 0 : index
    %301 = vector.load %arg7[%c0_63, %c0_64] : memref<288x256xf32, #tpu.memory_space<vmem>>, vector<128x256xf32>
    %c208 = arith.constant 208 : index
    %c0_65 = arith.constant 0 : index
    %302 = vector.load %arg7[%c208, %c0_65] : memref<288x256xf32, #tpu.memory_space<vmem>>, vector<1x256xf32>
    %cst_66 = arith.constant dense<0.000000e+00> : vector<8x256xf32>
    %303 = tpu.matmul %299, %300, %cst_66 {dimension_numbers = #tpu.dot_dimension_numbers<[1], [0], [0], [1], [0, 0, 1, 1], [], []>} : vector<8x16xf32>, vector<16x256xf32>, vector<8x256xf32> -> vector<8x256xf32>
    %cst_67 = arith.constant dense<0.000000e+00> : vector<64x256xf32>
    %304 = tpu.matmul %9, %301, %cst_67 {dimension_numbers = #tpu.dot_dimension_numbers<[1], [0], [0], [1], [0, 0, 1, 1], [], []>} : vector<64x128xf32>, vector<128x256xf32>, vector<64x256xf32> -> vector<64x256xf32>
    %305 = vector.broadcast %302 : vector<1x256xf32> to vector<64x256xf32>
    %306 = arith.addf %304, %305 : vector<64x256xf32>
    %307 = tpu.concatenate %303, %303, %303, %303, %303, %303, %303, %303 in 0 : vector<8x256xf32>, vector<8x256xf32>, vector<8x256xf32>, vector<8x256xf32>, vector<8x256xf32>, vector<8x256xf32>, vector<8x256xf32>, vector<8x256xf32> -> vector<64x256xf32>
    %308 = arith.addf %306, %307 : vector<64x256xf32>
    %c144 = arith.constant 144 : index
    %c0_68 = arith.constant 0 : index
    %309 = vector.load %arg7[%c144, %c0_68] : memref<288x256xf32, #tpu.memory_space<vmem>>, vector<64x256xf32>
    %cst_69 = arith.constant 0.000000e+00 : f32
    %310 = vector.broadcast %cst_69 : f32 to vector<8x64xf32>
    %cst_70 = arith.constant 0.000000e+00 : f32
    %311 = vector.broadcast %cst_70 : f32 to vector<8x64xf32>
    %312 = vector.extract_strided_slice %308 {offsets = [0, 0], sizes = [8, 256], strides = [1, 1]} : vector<64x256xf32> to vector<8x256xf32>
    %cst_71 = arith.constant dense<0.000000e+00> : vector<8x256xf32>
    %313 = tpu.matmul %310, %309, %cst_71 {dimension_numbers = #tpu.dot_dimension_numbers<[1], [0], [0], [1], [0, 0, 1, 1], [], []>} : vector<8x64xf32>, vector<64x256xf32>, vector<8x256xf32> -> vector<8x256xf32>
    %314 = arith.addf %312, %313 : vector<8x256xf32>
    %315 = vector.extract_strided_slice %314 {offsets = [0, 0], sizes = [8, 64], strides = [1, 1]} : vector<8x256xf32> to vector<8x64xf32>
    %316 = arith.negf %315 : vector<8x64xf32>
    %317 = math.exp %316 : vector<8x64xf32>
    %cst_72 = arith.constant 1.000000e+00 : f32
    %318 = vector.broadcast %cst_72 : f32 to vector<8x64xf32>
    %319 = arith.addf %318, %317 : vector<8x64xf32>
    %320 = arith.divf %318, %319 : vector<8x64xf32>
    %321 = vector.extract_strided_slice %314 {offsets = [0, 64], sizes = [8, 64], strides = [1, 1]} : vector<8x256xf32> to vector<8x64xf32>
    %322 = arith.negf %321 : vector<8x64xf32>
    %323 = math.exp %322 : vector<8x64xf32>
    %cst_73 = arith.constant 1.000000e+00 : f32
    %324 = vector.broadcast %cst_73 : f32 to vector<8x64xf32>
    %325 = arith.addf %324, %323 : vector<8x64xf32>
    %326 = arith.divf %324, %325 : vector<8x64xf32>
    %327 = vector.extract_strided_slice %314 {offsets = [0, 128], sizes = [8, 64], strides = [1, 1]} : vector<8x256xf32> to vector<8x64xf32>
    %328 = math.tanh %327 : vector<8x64xf32>
    %329 = vector.extract_strided_slice %314 {offsets = [0, 192], sizes = [8, 64], strides = [1, 1]} : vector<8x256xf32> to vector<8x64xf32>
    %330 = arith.negf %329 : vector<8x64xf32>
    %331 = math.exp %330 : vector<8x64xf32>
    %cst_74 = arith.constant 1.000000e+00 : f32
    %332 = vector.broadcast %cst_74 : f32 to vector<8x64xf32>
    %333 = arith.addf %332, %331 : vector<8x64xf32>
    %334 = arith.divf %332, %333 : vector<8x64xf32>
    %335 = arith.mulf %326, %311 : vector<8x64xf32>
    %336 = arith.mulf %320, %328 : vector<8x64xf32>
    %337 = arith.addf %335, %336 : vector<8x64xf32>
    %338 = math.tanh %337 : vector<8x64xf32>
    %339 = arith.mulf %334, %338 : vector<8x64xf32>
    %c0_75 = arith.constant 0 : index
    %c0_76 = arith.constant 0 : index
    %340 = vector.load %arg9[%c0_75, %c0_76] : memref<64x64xf32, #tpu.memory_space<vmem>>, vector<8x64xf32>
    tpu.vector_store %arg9[%c0_75, %c0_76], %339 {strides = array<i32>} : memref<64x64xf32, #tpu.memory_space<vmem>>, vector<8x64xf32>,
    %341 = vector.extract_strided_slice %308 {offsets = [8, 0], sizes = [8, 256], strides = [1, 1]} : vector<64x256xf32> to vector<8x256xf32>
    %cst_77 = arith.constant dense<0.000000e+00> : vector<8x256xf32>
    %342 = tpu.matmul %339, %309, %cst_77 {dimension_numbers = #tpu.dot_dimension_numbers<[1], [0], [0], [1], [0, 0, 1, 1], [], []>} : vector<8x64xf32>, vector<64x256xf32>, vector<8x256xf32> -> vector<8x256xf32>
    %343 = arith.addf %341, %342 : vector<8x256xf32>
    %344 = vector.extract_strided_slice %343 {offsets = [0, 0], sizes = [8, 64], strides = [1, 1]} : vector<8x256xf32> to vector<8x64xf32>
    %345 = arith.negf %344 : vector<8x64xf32>
    %346 = math.exp %345 : vector<8x64xf32>
    %cst_78 = arith.constant 1.000000e+00 : f32
    %347 = vector.broadcast %cst_78 : f32 to vector<8x64xf32>
    %348 = arith.addf %347, %346 : vector<8x64xf32>
    %349 = arith.divf %347, %348 : vector<8x64xf32>
    %350 = vector.extract_strided_slice %343 {offsets = [0, 64], sizes = [8, 64], strides = [1, 1]} : vector<8x256xf32> to vector<8x64xf32>
    %351 = arith.negf %350 : vector<8x64xf32>
    %352 = math.exp %351 : vector<8x64xf32>
    %cst_79 = arith.constant 1.000000e+00 : f32
    %353 = vector.broadcast %cst_79 : f32 to vector<8x64xf32>
    %354 = arith.addf %353, %352 : vector<8x64xf32>
    %355 = arith.divf %353, %354 : vector<8x64xf32>
    %356 = vector.extract_strided_slice %343 {offsets = [0, 128], sizes = [8, 64], strides = [1, 1]} : vector<8x256xf32> to vector<8x64xf32>
    %357 = math.tanh %356 : vector<8x64xf32>
    %358 = vector.extract_strided_slice %343 {offsets = [0, 192], sizes = [8, 64], strides = [1, 1]} : vector<8x256xf32> to vector<8x64xf32>
    %359 = arith.negf %358 : vector<8x64xf32>
    %360 = math.exp %359 : vector<8x64xf32>
    %cst_80 = arith.constant 1.000000e+00 : f32
    %361 = vector.broadcast %cst_80 : f32 to vector<8x64xf32>
    %362 = arith.addf %361, %360 : vector<8x64xf32>
    %363 = arith.divf %361, %362 : vector<8x64xf32>
    %364 = arith.mulf %355, %337 : vector<8x64xf32>
    %365 = arith.mulf %349, %357 : vector<8x64xf32>
    %366 = arith.addf %364, %365 : vector<8x64xf32>
    %367 = math.tanh %366 : vector<8x64xf32>
    %368 = arith.mulf %363, %367 : vector<8x64xf32>
    %c8 = arith.constant 8 : index
    %c0_81 = arith.constant 0 : index
    %369 = vector.load %arg9[%c8, %c0_81] : memref<64x64xf32, #tpu.memory_space<vmem>>, vector<8x64xf32>
    tpu.vector_store %arg9[%c8, %c0_81], %368 {strides = array<i32>} : memref<64x64xf32, #tpu.memory_space<vmem>>, vector<8x64xf32>,
    %370 = vector.extract_strided_slice %308 {offsets = [16, 0], sizes = [8, 256], strides = [1, 1]} : vector<64x256xf32> to vector<8x256xf32>
    %cst_82 = arith.constant dense<0.000000e+00> : vector<8x256xf32>
    %371 = tpu.matmul %368, %309, %cst_82 {dimension_numbers = #tpu.dot_dimension_numbers<[1], [0], [0], [1], [0, 0, 1, 1], [], []>} : vector<8x64xf32>, vector<64x256xf32>, vector<8x256xf32> -> vector<8x256xf32>
    %372 = arith.addf %370, %371 : vector<8x256xf32>
    %373 = vector.extract_strided_slice %372 {offsets = [0, 0], sizes = [8, 64], strides = [1, 1]} : vector<8x256xf32> to vector<8x64xf32>
    %374 = arith.negf %373 : vector<8x64xf32>
    %375 = math.exp %374 : vector<8x64xf32>
    %cst_83 = arith.constant 1.000000e+00 : f32
    %376 = vector.broadcast %cst_83 : f32 to vector<8x64xf32>
    %377 = arith.addf %376, %375 : vector<8x64xf32>
    %378 = arith.divf %376, %377 : vector<8x64xf32>
    %379 = vector.extract_strided_slice %372 {offsets = [0, 64], sizes = [8, 64], strides = [1, 1]} : vector<8x256xf32> to vector<8x64xf32>
    %380 = arith.negf %379 : vector<8x64xf32>
    %381 = math.exp %380 : vector<8x64xf32>
    %cst_84 = arith.constant 1.000000e+00 : f32
    %382 = vector.broadcast %cst_84 : f32 to vector<8x64xf32>
    %383 = arith.addf %382, %381 : vector<8x64xf32>
    %384 = arith.divf %382, %383 : vector<8x64xf32>
    %385 = vector.extract_strided_slice %372 {offsets = [0, 128], sizes = [8, 64], strides = [1, 1]} : vector<8x256xf32> to vector<8x64xf32>
    %386 = math.tanh %385 : vector<8x64xf32>
    %387 = vector.extract_strided_slice %372 {offsets = [0, 192], sizes = [8, 64], strides = [1, 1]} : vector<8x256xf32> to vector<8x64xf32>
    %388 = arith.negf %387 : vector<8x64xf32>
    %389 = math.exp %388 : vector<8x64xf32>
    %cst_85 = arith.constant 1.000000e+00 : f32
    %390 = vector.broadcast %cst_85 : f32 to vector<8x64xf32>
    %391 = arith.addf %390, %389 : vector<8x64xf32>
    %392 = arith.divf %390, %391 : vector<8x64xf32>
    %393 = arith.mulf %384, %366 : vector<8x64xf32>
    %394 = arith.mulf %378, %386 : vector<8x64xf32>
    %395 = arith.addf %393, %394 : vector<8x64xf32>
    %396 = math.tanh %395 : vector<8x64xf32>
    %397 = arith.mulf %392, %396 : vector<8x64xf32>
    %c16 = arith.constant 16 : index
    %c0_86 = arith.constant 0 : index
    %398 = vector.load %arg9[%c16, %c0_86] : memref<64x64xf32, #tpu.memory_space<vmem>>, vector<8x64xf32>
    tpu.vector_store %arg9[%c16, %c0_86], %397 {strides = array<i32>} : memref<64x64xf32, #tpu.memory_space<vmem>>, vector<8x64xf32>,
    %399 = vector.extract_strided_slice %308 {offsets = [24, 0], sizes = [8, 256], strides = [1, 1]} : vector<64x256xf32> to vector<8x256xf32>
    %cst_87 = arith.constant dense<0.000000e+00> : vector<8x256xf32>
    %400 = tpu.matmul %397, %309, %cst_87 {dimension_numbers = #tpu.dot_dimension_numbers<[1], [0], [0], [1], [0, 0, 1, 1], [], []>} : vector<8x64xf32>, vector<64x256xf32>, vector<8x256xf32> -> vector<8x256xf32>
    %401 = arith.addf %399, %400 : vector<8x256xf32>
    %402 = vector.extract_strided_slice %401 {offsets = [0, 0], sizes = [8, 64], strides = [1, 1]} : vector<8x256xf32> to vector<8x64xf32>
    %403 = arith.negf %402 : vector<8x64xf32>
    %404 = math.exp %403 : vector<8x64xf32>
    %cst_88 = arith.constant 1.000000e+00 : f32
    %405 = vector.broadcast %cst_88 : f32 to vector<8x64xf32>
    %406 = arith.addf %405, %404 : vector<8x64xf32>
    %407 = arith.divf %405, %406 : vector<8x64xf32>
    %408 = vector.extract_strided_slice %401 {offsets = [0, 64], sizes = [8, 64], strides = [1, 1]} : vector<8x256xf32> to vector<8x64xf32>
    %409 = arith.negf %408 : vector<8x64xf32>
    %410 = math.exp %409 : vector<8x64xf32>
    %cst_89 = arith.constant 1.000000e+00 : f32
    %411 = vector.broadcast %cst_89 : f32 to vector<8x64xf32>
    %412 = arith.addf %411, %410 : vector<8x64xf32>
    %413 = arith.divf %411, %412 : vector<8x64xf32>
    %414 = vector.extract_strided_slice %401 {offsets = [0, 128], sizes = [8, 64], strides = [1, 1]} : vector<8x256xf32> to vector<8x64xf32>
    %415 = math.tanh %414 : vector<8x64xf32>
    %416 = vector.extract_strided_slice %401 {offsets = [0, 192], sizes = [8, 64], strides = [1, 1]} : vector<8x256xf32> to vector<8x64xf32>
    %417 = arith.negf %416 : vector<8x64xf32>
    %418 = math.exp %417 : vector<8x64xf32>
    %cst_90 = arith.constant 1.000000e+00 : f32
    %419 = vector.broadcast %cst_90 : f32 to vector<8x64xf32>
    %420 = arith.addf %419, %418 : vector<8x64xf32>
    %421 = arith.divf %419, %420 : vector<8x64xf32>
    %422 = arith.mulf %413, %395 : vector<8x64xf32>
    %423 = arith.mulf %407, %415 : vector<8x64xf32>
    %424 = arith.addf %422, %423 : vector<8x64xf32>
    %425 = math.tanh %424 : vector<8x64xf32>
    %426 = arith.mulf %421, %425 : vector<8x64xf32>
    %c24 = arith.constant 24 : index
    %c0_91 = arith.constant 0 : index
    %427 = vector.load %arg9[%c24, %c0_91] : memref<64x64xf32, #tpu.memory_space<vmem>>, vector<8x64xf32>
    tpu.vector_store %arg9[%c24, %c0_91], %426 {strides = array<i32>} : memref<64x64xf32, #tpu.memory_space<vmem>>, vector<8x64xf32>,
    %428 = vector.extract_strided_slice %308 {offsets = [32, 0], sizes = [8, 256], strides = [1, 1]} : vector<64x256xf32> to vector<8x256xf32>
    %cst_92 = arith.constant dense<0.000000e+00> : vector<8x256xf32>
    %429 = tpu.matmul %426, %309, %cst_92 {dimension_numbers = #tpu.dot_dimension_numbers<[1], [0], [0], [1], [0, 0, 1, 1], [], []>} : vector<8x64xf32>, vector<64x256xf32>, vector<8x256xf32> -> vector<8x256xf32>
    %430 = arith.addf %428, %429 : vector<8x256xf32>
    %431 = vector.extract_strided_slice %430 {offsets = [0, 0], sizes = [8, 64], strides = [1, 1]} : vector<8x256xf32> to vector<8x64xf32>
    %432 = arith.negf %431 : vector<8x64xf32>
    %433 = math.exp %432 : vector<8x64xf32>
    %cst_93 = arith.constant 1.000000e+00 : f32
    %434 = vector.broadcast %cst_93 : f32 to vector<8x64xf32>
    %435 = arith.addf %434, %433 : vector<8x64xf32>
    %436 = arith.divf %434, %435 : vector<8x64xf32>
    %437 = vector.extract_strided_slice %430 {offsets = [0, 64], sizes = [8, 64], strides = [1, 1]} : vector<8x256xf32> to vector<8x64xf32>
    %438 = arith.negf %437 : vector<8x64xf32>
    %439 = math.exp %438 : vector<8x64xf32>
    %cst_94 = arith.constant 1.000000e+00 : f32
    %440 = vector.broadcast %cst_94 : f32 to vector<8x64xf32>
    %441 = arith.addf %440, %439 : vector<8x64xf32>
    %442 = arith.divf %440, %441 : vector<8x64xf32>
    %443 = vector.extract_strided_slice %430 {offsets = [0, 128], sizes = [8, 64], strides = [1, 1]} : vector<8x256xf32> to vector<8x64xf32>
    %444 = math.tanh %443 : vector<8x64xf32>
    %445 = vector.extract_strided_slice %430 {offsets = [0, 192], sizes = [8, 64], strides = [1, 1]} : vector<8x256xf32> to vector<8x64xf32>
    %446 = arith.negf %445 : vector<8x64xf32>
    %447 = math.exp %446 : vector<8x64xf32>
    %cst_95 = arith.constant 1.000000e+00 : f32
    %448 = vector.broadcast %cst_95 : f32 to vector<8x64xf32>
    %449 = arith.addf %448, %447 : vector<8x64xf32>
    %450 = arith.divf %448, %449 : vector<8x64xf32>
    %451 = arith.mulf %442, %424 : vector<8x64xf32>
    %452 = arith.mulf %436, %444 : vector<8x64xf32>
    %453 = arith.addf %451, %452 : vector<8x64xf32>
    %454 = math.tanh %453 : vector<8x64xf32>
    %455 = arith.mulf %450, %454 : vector<8x64xf32>
    %c32 = arith.constant 32 : index
    %c0_96 = arith.constant 0 : index
    %456 = vector.load %arg9[%c32, %c0_96] : memref<64x64xf32, #tpu.memory_space<vmem>>, vector<8x64xf32>
    tpu.vector_store %arg9[%c32, %c0_96], %455 {strides = array<i32>} : memref<64x64xf32, #tpu.memory_space<vmem>>, vector<8x64xf32>,
    %457 = vector.extract_strided_slice %308 {offsets = [40, 0], sizes = [8, 256], strides = [1, 1]} : vector<64x256xf32> to vector<8x256xf32>
    %cst_97 = arith.constant dense<0.000000e+00> : vector<8x256xf32>
    %458 = tpu.matmul %455, %309, %cst_97 {dimension_numbers = #tpu.dot_dimension_numbers<[1], [0], [0], [1], [0, 0, 1, 1], [], []>} : vector<8x64xf32>, vector<64x256xf32>, vector<8x256xf32> -> vector<8x256xf32>
    %459 = arith.addf %457, %458 : vector<8x256xf32>
    %460 = vector.extract_strided_slice %459 {offsets = [0, 0], sizes = [8, 64], strides = [1, 1]} : vector<8x256xf32> to vector<8x64xf32>
    %461 = arith.negf %460 : vector<8x64xf32>
    %462 = math.exp %461 : vector<8x64xf32>
    %cst_98 = arith.constant 1.000000e+00 : f32
    %463 = vector.broadcast %cst_98 : f32 to vector<8x64xf32>
    %464 = arith.addf %463, %462 : vector<8x64xf32>
    %465 = arith.divf %463, %464 : vector<8x64xf32>
    %466 = vector.extract_strided_slice %459 {offsets = [0, 64], sizes = [8, 64], strides = [1, 1]} : vector<8x256xf32> to vector<8x64xf32>
    %467 = arith.negf %466 : vector<8x64xf32>
    %468 = math.exp %467 : vector<8x64xf32>
    %cst_99 = arith.constant 1.000000e+00 : f32
    %469 = vector.broadcast %cst_99 : f32 to vector<8x64xf32>
    %470 = arith.addf %469, %468 : vector<8x64xf32>
    %471 = arith.divf %469, %470 : vector<8x64xf32>
    %472 = vector.extract_strided_slice %459 {offsets = [0, 128], sizes = [8, 64], strides = [1, 1]} : vector<8x256xf32> to vector<8x64xf32>
    %473 = math.tanh %472 : vector<8x64xf32>
    %474 = vector.extract_strided_slice %459 {offsets = [0, 192], sizes = [8, 64], strides = [1, 1]} : vector<8x256xf32> to vector<8x64xf32>
    %475 = arith.negf %474 : vector<8x64xf32>
    %476 = math.exp %475 : vector<8x64xf32>
    %cst_100 = arith.constant 1.000000e+00 : f32
    %477 = vector.broadcast %cst_100 : f32 to vector<8x64xf32>
    %478 = arith.addf %477, %476 : vector<8x64xf32>
    %479 = arith.divf %477, %478 : vector<8x64xf32>
    %480 = arith.mulf %471, %453 : vector<8x64xf32>
    %481 = arith.mulf %465, %473 : vector<8x64xf32>
    %482 = arith.addf %480, %481 : vector<8x64xf32>
    %483 = math.tanh %482 : vector<8x64xf32>
    %484 = arith.mulf %479, %483 : vector<8x64xf32>
    %c40 = arith.constant 40 : index
    %c0_101 = arith.constant 0 : index
    %485 = vector.load %arg9[%c40, %c0_101] : memref<64x64xf32, #tpu.memory_space<vmem>>, vector<8x64xf32>
    tpu.vector_store %arg9[%c40, %c0_101], %484 {strides = array<i32>} : memref<64x64xf32, #tpu.memory_space<vmem>>, vector<8x64xf32>,
    %486 = vector.extract_strided_slice %308 {offsets = [48, 0], sizes = [8, 256], strides = [1, 1]} : vector<64x256xf32> to vector<8x256xf32>
    %cst_102 = arith.constant dense<0.000000e+00> : vector<8x256xf32>
    %487 = tpu.matmul %484, %309, %cst_102 {dimension_numbers = #tpu.dot_dimension_numbers<[1], [0], [0], [1], [0, 0, 1, 1], [], []>} : vector<8x64xf32>, vector<64x256xf32>, vector<8x256xf32> -> vector<8x256xf32>
    %488 = arith.addf %486, %487 : vector<8x256xf32>
    %489 = vector.extract_strided_slice %488 {offsets = [0, 0], sizes = [8, 64], strides = [1, 1]} : vector<8x256xf32> to vector<8x64xf32>
    %490 = arith.negf %489 : vector<8x64xf32>
    %491 = math.exp %490 : vector<8x64xf32>
    %cst_103 = arith.constant 1.000000e+00 : f32
    %492 = vector.broadcast %cst_103 : f32 to vector<8x64xf32>
    %493 = arith.addf %492, %491 : vector<8x64xf32>
    %494 = arith.divf %492, %493 : vector<8x64xf32>
    %495 = vector.extract_strided_slice %488 {offsets = [0, 64], sizes = [8, 64], strides = [1, 1]} : vector<8x256xf32> to vector<8x64xf32>
    %496 = arith.negf %495 : vector<8x64xf32>
    %497 = math.exp %496 : vector<8x64xf32>
    %cst_104 = arith.constant 1.000000e+00 : f32
    %498 = vector.broadcast %cst_104 : f32 to vector<8x64xf32>
    %499 = arith.addf %498, %497 : vector<8x64xf32>
    %500 = arith.divf %498, %499 : vector<8x64xf32>
    %501 = vector.extract_strided_slice %488 {offsets = [0, 128], sizes = [8, 64], strides = [1, 1]} : vector<8x256xf32> to vector<8x64xf32>
    %502 = math.tanh %501 : vector<8x64xf32>
    %503 = vector.extract_strided_slice %488 {offsets = [0, 192], sizes = [8, 64], strides = [1, 1]} : vector<8x256xf32> to vector<8x64xf32>
    %504 = arith.negf %503 : vector<8x64xf32>
    %505 = math.exp %504 : vector<8x64xf32>
    %cst_105 = arith.constant 1.000000e+00 : f32
    %506 = vector.broadcast %cst_105 : f32 to vector<8x64xf32>
    %507 = arith.addf %506, %505 : vector<8x64xf32>
    %508 = arith.divf %506, %507 : vector<8x64xf32>
    %509 = arith.mulf %500, %482 : vector<8x64xf32>
    %510 = arith.mulf %494, %502 : vector<8x64xf32>
    %511 = arith.addf %509, %510 : vector<8x64xf32>
    %512 = math.tanh %511 : vector<8x64xf32>
    %513 = arith.mulf %508, %512 : vector<8x64xf32>
    %c48 = arith.constant 48 : index
    %c0_106 = arith.constant 0 : index
    %514 = vector.load %arg9[%c48, %c0_106] : memref<64x64xf32, #tpu.memory_space<vmem>>, vector<8x64xf32>
    tpu.vector_store %arg9[%c48, %c0_106], %513 {strides = array<i32>} : memref<64x64xf32, #tpu.memory_space<vmem>>, vector<8x64xf32>,
    %515 = vector.extract_strided_slice %308 {offsets = [56, 0], sizes = [8, 256], strides = [1, 1]} : vector<64x256xf32> to vector<8x256xf32>
    %cst_107 = arith.constant dense<0.000000e+00> : vector<8x256xf32>
    %516 = tpu.matmul %513, %309, %cst_107 {dimension_numbers = #tpu.dot_dimension_numbers<[1], [0], [0], [1], [0, 0, 1, 1], [], []>} : vector<8x64xf32>, vector<64x256xf32>, vector<8x256xf32> -> vector<8x256xf32>
    %517 = arith.addf %515, %516 : vector<8x256xf32>
    %518 = vector.extract_strided_slice %517 {offsets = [0, 0], sizes = [8, 64], strides = [1, 1]} : vector<8x256xf32> to vector<8x64xf32>
    %519 = arith.negf %518 : vector<8x64xf32>
    %520 = math.exp %519 : vector<8x64xf32>
    %cst_108 = arith.constant 1.000000e+00 : f32
    %521 = vector.broadcast %cst_108 : f32 to vector<8x64xf32>
    %522 = arith.addf %521, %520 : vector<8x64xf32>
    %523 = arith.divf %521, %522 : vector<8x64xf32>
    %524 = vector.extract_strided_slice %517 {offsets = [0, 64], sizes = [8, 64], strides = [1, 1]} : vector<8x256xf32> to vector<8x64xf32>
    %525 = arith.negf %524 : vector<8x64xf32>
    %526 = math.exp %525 : vector<8x64xf32>
    %cst_109 = arith.constant 1.000000e+00 : f32
    %527 = vector.broadcast %cst_109 : f32 to vector<8x64xf32>
    %528 = arith.addf %527, %526 : vector<8x64xf32>
    %529 = arith.divf %527, %528 : vector<8x64xf32>
    %530 = vector.extract_strided_slice %517 {offsets = [0, 128], sizes = [8, 64], strides = [1, 1]} : vector<8x256xf32> to vector<8x64xf32>
    %531 = math.tanh %530 : vector<8x64xf32>
    %532 = vector.extract_strided_slice %517 {offsets = [0, 192], sizes = [8, 64], strides = [1, 1]} : vector<8x256xf32> to vector<8x64xf32>
    %533 = arith.negf %532 : vector<8x64xf32>
    %534 = math.exp %533 : vector<8x64xf32>
    %cst_110 = arith.constant 1.000000e+00 : f32
    %535 = vector.broadcast %cst_110 : f32 to vector<8x64xf32>
    %536 = arith.addf %535, %534 : vector<8x64xf32>
    %537 = arith.divf %535, %536 : vector<8x64xf32>
    %538 = arith.mulf %529, %511 : vector<8x64xf32>
    %539 = arith.mulf %523, %531 : vector<8x64xf32>
    %540 = arith.addf %538, %539 : vector<8x64xf32>
    %541 = math.tanh %540 : vector<8x64xf32>
    %542 = arith.mulf %537, %541 : vector<8x64xf32>
    %c56 = arith.constant 56 : index
    %c0_111 = arith.constant 0 : index
    %543 = vector.load %arg9[%c56, %c0_111] : memref<64x64xf32, #tpu.memory_space<vmem>>, vector<8x64xf32>
    tpu.vector_store %arg9[%c56, %c0_111], %542 {strides = array<i32>} : memref<64x64xf32, #tpu.memory_space<vmem>>, vector<8x64xf32>,
    %c216 = arith.constant 216 : index
    %c0_112 = arith.constant 0 : index
    %544 = vector.load %arg7[%c216, %c0_112] : memref<288x256xf32, #tpu.memory_space<vmem>>, vector<64x128xf32>
    %c280 = arith.constant 280 : index
    %c0_113 = arith.constant 0 : index
    %545 = vector.load %arg7[%c280, %c0_113] : memref<288x256xf32, #tpu.memory_space<vmem>>, vector<1x128xf32>
    %c0_114 = arith.constant 0 : index
    %c0_115 = arith.constant 0 : index
    %546 = vector.load %arg9[%c0_114, %c0_115] : memref<64x64xf32, #tpu.memory_space<vmem>>, vector<64x64xf32>
    %cst_116 = arith.constant dense<0.000000e+00> : vector<64x128xf32>
    %547 = tpu.matmul %546, %544, %cst_116 {dimension_numbers = #tpu.dot_dimension_numbers<[1], [0], [0], [1], [0, 0, 1, 1], [], []>} : vector<64x64xf32>, vector<64x128xf32>, vector<64x128xf32> -> vector<64x128xf32>
    %548 = vector.broadcast %545 : vector<1x128xf32> to vector<64x128xf32>
    %549 = arith.addf %547, %548 : vector<64x128xf32>
    %550 = vector.shape_cast %549 : vector<64x128xf32> to vector<8x8x128xf32>
    %c0_117 = arith.constant 0 : index
    %c0_118 = arith.constant 0 : index
    %c0_119 = arith.constant 0 : index
    %551 = vector.load %arg5[%c0_117, %c0_118, %c0_119] : memref<8x8x128xf32, #tpu.memory_space<vmem>>, vector<8x8x128xf32>
    tpu.vector_store %arg5[%c0_117, %c0_118, %c0_119], %550 {strides = array<i32>} : memref<8x8x128xf32, #tpu.memory_space<vmem>>, vector<8x8x128xf32>,
    return
  }
}

</mosaic_0001>

<llo_original>
// kernel: lstm_vae_forward.1
$region0: #{lstm_vae_forward.1}
  #allocation0 [shape = 'u32[]', space=smem, size = 0x4, offset = 0x4, fixed_abs, tag = 'smem constant byte address 0x4 - core index']
  #allocation1 [shape = 'u32[72,128]{1,0:T(1,128)}', space=vmem, size = 0x9000, scoped, tag = 'internal scratch']
  #allocation2 [shape = 'f32[288,256]{1,0:T(8,128)}', space=vmem, size = 0x48000, scoped, tag = 'scratch operand']
  #allocation3 [shape = 's32[1]{0}', space=sflag, size = 0x4, scoped, tag = 'scratch operand']
  #allocation4 [shape = 'f32[64,64]{1,0:T(8,128)}', space=vmem, size = 0x8000, scoped, tag = 'scratch operand']
  #allocation11 [shape = 's32[]', space=sflag, size = 0x4, offset = 0, fixed_abs, tag = 'sflag constant byte address 0x0 - dummy sync flag']
  #allocation12 [shape = 's32[]', space=sflag, size = 0x4, offset = 0, fixed_abs, tag = 'sflag constant byte address 0x0 - dummy sync flag']
  #allocation13 [shape = 'u32[]', space=smem, size = 0x4, offset = 0x44, fixed_abs, tag = 'smem constant byte address 0x44 - assertion arg 0']
  #allocation14 [shape = 'u32[]', space=smem, size = 0x4, offset = 0x48, fixed_abs, tag = 'smem constant byte address 0x48 - assertion arg 1']
  %s0 = inlined_call_operand.vmem [shape: s32[128,1], index: 0, kind: input, shape index: {}]
  %s1 = inlined_call_operand.hbm [shape: f32[272,128], index: 1, kind: input, shape index: {}]
  %s2 = inlined_call_operand.hbm [shape: f32[136,256], index: 2, kind: input, shape index: {}]
  %s3 = inlined_call_operand.vmem [shape: f32[8,16], index: 3, kind: input, shape index: {}]
  %s4 = inlined_call_operand.hbm [shape: f32[288,256], index: 4, kind: input, shape index: {}]
  %s5 = inlined_call_operand.vmem [shape: f32[8,8,128], index: 5, kind: output, shape index: {0}]
  %s6 = inlined_call_operand.hbm [shape: f32[1,1], index: 6, kind: output, shape index: {1}]
  %7 = xla_tuple %s5, %s6
  %s8 = sld [smem:[#allocation0]]
  $region46: #{lstm_vae_forward.1} parent=0
    _
  %s10 = ssub.s32 1, %s8
  %s11 = scalar_select 0, %s10, %s8
  $region1: #{lstm_vae_forward.1} parent=0
    #allocation5 [shape = 'u8[139264]{0}', space=vmem, size = 0x22000, scoped, tag = 'input window, operand 1, single buffered']
    #allocation6 [shape = 's32[1]{0}', space=sflag, size = 0x4, scoped, tag = 'scoped memory for lstm_vae_forward.1']
    #allocation7 [shape = 's32[1]{0}', space=sflag, size = 0x4, scoped, tag = 'scoped memory for lstm_vae_forward.1']
    #allocation8 [shape = 'u8[139264]{0}', space=vmem, size = 0x22000, scoped, tag = 'input window, operand 2, single buffered']
    #allocation9 [shape = 's32[1]{0}', space=sflag, size = 0x4, scoped, tag = 'scoped memory for lstm_vae_forward.1']
    #allocation10 [shape = 'u8[512]{0}', space=vmem, size = 0x400, scoped, tag = 'output window, operand 1, single buffered']
    %12 = vsyncpa [#allocation6], 0
    %13 = vsyncpa [#allocation9], 0
    %14 = vsyncpa [#allocation7], 0
    // Predicated region
    $region2: #{lstm_vae_forward.1} parent=1 // pred_check
      _
    $region3: #{lstm_vae_forward.1} parent=1 // pred_check_branch
      %16 = sbr.rel (0) target = $region5
    $region4: #{lstm_vae_forward.1} parent=1 // pred_region
      _
    $region5: #{lstm_vae_forward.1} parent=1 // pred_fallthru
      _
    // Predicated region
    $region6: #{lstm_vae_forward.1} parent=1 // pred_check
      _
    $region7: #{lstm_vae_forward.1} parent=1 // pred_check_branch
      %18 = sbr.rel (0) target = $region9
    $region8: #{lstm_vae_forward.1} parent=1 // pred_region
      %20 = vsyncadd [#allocation6], 0
      %s21 = sshll.u32 %s1, 4
      %s22 = int_to_ptr.hbm [resolvable:$true] %s21
      %s23 = sshll.u32 [#allocation5], 4
      %s24 = int_to_ptr.vmem [resolvable:$true] %s23
      %29 = dma.hbm_to_vmem [thread:$0]  %s22, 4352, %s24, [#allocation6], 128, 128, 8
    $region9: #{lstm_vae_forward.1} parent=1 // pred_fallthru
      _
    // Predicated region
    $region10: #{lstm_vae_forward.1} parent=1 // pred_check
      _
    $region11: #{lstm_vae_forward.1} parent=1 // pred_check_branch
      %31 = sbr.rel (0) target = $region13
    $region12: #{lstm_vae_forward.1} parent=1 // pred_region
      %33 = vsyncadd [#allocation9], 0
      %s34 = sshll.u32 %s2, 4
      %s35 = int_to_ptr.hbm [resolvable:$true] %s34
      %s36 = sshll.u32 [#allocation8], 4
      %s37 = int_to_ptr.vmem [resolvable:$true] %s36
      %42 = dma.hbm_to_vmem [thread:$0]  %s35, 4352, %s37, [#allocation9], 256, 256, 16
    $region13: #{lstm_vae_forward.1} parent=1 // pred_fallthru
      _
    // Predicated region
    $region14: #{lstm_vae_forward.1} parent=1 // pred_check
      _
    $region15: #{lstm_vae_forward.1} parent=1 // pred_check_branch
      %44 = sbr.rel (0) target = $region17
    $region16: #{lstm_vae_forward.1} parent=1 // pred_region
      _
    $region17: #{lstm_vae_forward.1} parent=1 // pred_fallthru
      _
    // Predicated region
    $region18: #{lstm_vae_forward.1} parent=1 // pred_check
      _
    $region19: #{lstm_vae_forward.1} parent=1 // pred_check_branch
      %46 = sbr.rel (0) target = $region21
    $region20: #{lstm_vae_forward.1} parent=1 // pred_region
      %48 = dma.done [#allocation6], 4352
    $region21: #{lstm_vae_forward.1} parent=1 // pred_fallthru
      _
    // Predicated region
    $region22: #{lstm_vae_forward.1} parent=1 // pred_check
      _
    $region23: #{lstm_vae_forward.1} parent=1 // pred_check_branch
      %50 = sbr.rel (0) target = $region25
    $region24: #{lstm_vae_forward.1} parent=1 // pred_region
      %52 = dma.done [#allocation9], 4352
    $region25: #{lstm_vae_forward.1} parent=1 // pred_fallthru
      _
    // Predicated region
    $region26: #{lstm_vae_forward.1} parent=1 // pred_check
      _
    $region27: #{lstm_vae_forward.1} parent=1 // pred_check_branch
      %54 = sbr.rel target = $region29
    $region28: #{lstm_vae_forward.1} parent=1 // pred_region
      %55 = sst [smem:[#allocation13]] [#allocation12]
      %56 = sst [smem:[#allocation14]] [#allocation11]
    $region29: #{lstm_vae_forward.1} parent=1 // pred_fallthru
      _
    %58 = shalt.err (0)
    %s60 = sshll.u32 %s4, 4
    %s61 = int_to_ptr.hbm [resolvable:$true] %s60
    %s62 = sshll.u32 [#allocation2], 4
    %s63 = int_to_ptr.vmem [resolvable:$true] %s62
    %65 = dma.hbm_to_vmem [thread:$0]  %s61, 9216, %s63, [#allocation3]
    %v66 = vld [vmem:[%s0] sm:$0xff]
    %v67 = vld [vmem:[%s0 + $0x8] sm:$0xff]
    %v68 = vld [vmem:[%s0 + $0x10] sm:$0xff]
    %v69 = vld [vmem:[%s0 + $0x18] sm:$0xff]
    %v70 = vld [vmem:[%s0 + $0x20] sm:$0xff]
    %v71 = vld [vmem:[%s0 + $0x28] sm:$0xff]
    %v72 = vld [vmem:[%s0 + $0x30] sm:$0xff]
    %v73 = vld [vmem:[%s0 + $0x38] sm:$0xff]
    %v74 = vld [vmem:[%s0 + $0x40] sm:$0xff]
    %v75 = vld [vmem:[%s0 + $0x48] sm:$0xff]
    %v76 = vld [vmem:[%s0 + $0x50] sm:$0xff]
    %v77 = vld [vmem:[%s0 + $0x58] sm:$0xff]
    %v78 = vld [vmem:[%s0 + $0x60] sm:$0xff]
    %v79 = vld [vmem:[%s0 + $0x68] sm:$0xff]
    %v80 = vld [vmem:[%s0 + $0x70] sm:$0xff]
    %v81 = vld [vmem:[%s0 + $0x78] sm:$0xff]
    %v82 = vlaneseq
    %v83 = vand.u32 %v82, 127
    %84 = vset.pattern.permute.xlu0 0
    %85 = vperm.xlu0 %84, %v66
    %v86 = vpop.permute.xlu0 %85
    %87 = vset.pattern.permute.xlu0 0
    %88 = vperm.xlu0 %87, %v67
    %v89 = vpop.permute.xlu0 %88
    %90 = vset.pattern.permute.xlu0 0
    %91 = vperm.xlu0 %90, %v68
    %v92 = vpop.permute.xlu0 %91
    %93 = vset.pattern.permute.xlu0 0
    %94 = vperm.xlu0 %93, %v69
    %v95 = vpop.permute.xlu0 %94
    %96 = vset.pattern.permute.xlu0 0
    %97 = vperm.xlu0 %96, %v70
    %v98 = vpop.permute.xlu0 %97
    %99 = vset.pattern.permute.xlu0 0
    %100 = vperm.xlu0 %99, %v71
    %v101 = vpop.permute.xlu0 %100
    %102 = vset.pattern.permute.xlu0 0
    %103 = vperm.xlu0 %102, %v72
    %v104 = vpop.permute.xlu0 %103
    %105 = vset.pattern.permute.xlu0 0
    %106 = vperm.xlu0 %105, %v73
    %v107 = vpop.permute.xlu0 %106
    %108 = vset.pattern.permute.xlu0 0
    %109 = vperm.xlu0 %108, %v74
    %v110 = vpop.permute.xlu0 %109
    %111 = vset.pattern.permute.xlu0 0
    %112 = vperm.xlu0 %111, %v75
    %v113 = vpop.permute.xlu0 %112
    %114 = vset.pattern.permute.xlu0 0
    %115 = vperm.xlu0 %114, %v76
    %v116 = vpop.permute.xlu0 %115
    %117 = vset.pattern.permute.xlu0 0
    %118 = vperm.xlu0 %117, %v77
    %v119 = vpop.permute.xlu0 %118
    %120 = vset.pattern.permute.xlu0 0
    %121 = vperm.xlu0 %120, %v78
    %v122 = vpop.permute.xlu0 %121
    %123 = vset.pattern.permute.xlu0 0
    %124 = vperm.xlu0 %123, %v79
    %v125 = vpop.permute.xlu0 %124
    %126 = vset.pattern.permute.xlu0 0
    %127 = vperm.xlu0 %126, %v80
    %v128 = vpop.permute.xlu0 %127
    %129 = vset.pattern.permute.xlu0 0
    %130 = vperm.xlu0 %129, %v81
    %v131 = vpop.permute.xlu0 %130
    %vm132 = vcmp.eq.s32.totalorder %v86, %v83
    %vm133 = vcmp.eq.s32.totalorder %v89, %v83
    %vm134 = vcmp.eq.s32.totalorder %v92, %v83
    %vm135 = vcmp.eq.s32.totalorder %v95, %v83
    %vm136 = vcmp.eq.s32.totalorder %v98, %v83
    %vm137 = vcmp.eq.s32.totalorder %v101, %v83
    %vm138 = vcmp.eq.s32.totalorder %v104, %v83
    %vm139 = vcmp.eq.s32.totalorder %v107, %v83
    %vm140 = vcmp.eq.s32.totalorder %v110, %v83
    %vm141 = vcmp.eq.s32.totalorder %v113, %v83
    %vm142 = vcmp.eq.s32.totalorder %v116, %v83
    %vm143 = vcmp.eq.s32.totalorder %v119, %v83
    %vm144 = vcmp.eq.s32.totalorder %v122, %v83
    %vm145 = vcmp.eq.s32.totalorder %v125, %v83
    %vm146 = vcmp.eq.s32.totalorder %v128, %v83
    %vm147 = vcmp.eq.s32.totalorder %v131, %v83
    %v148 = vsel %vm132, 1, 0
    %v149 = vsel %vm133, 1, 0
    %v150 = vsel %vm134, 1, 0
    %v151 = vsel %vm135, 1, 0
    %v152 = vsel %vm136, 1, 0
    %v153 = vsel %vm137, 1, 0
    %v154 = vsel %vm138, 1, 0
    %v155 = vsel %vm139, 1, 0
    %v156 = vsel %vm140, 1, 0
    %v157 = vsel %vm141, 1, 0
    %v158 = vsel %vm142, 1, 0
    %v159 = vsel %vm143, 1, 0
    %v160 = vsel %vm144, 1, 0
    %v161 = vsel %vm145, 1, 0
    %v162 = vsel %vm146, 1, 0
    %v163 = vsel %vm147, 1, 0
    %v164 = vcvt.s32.f32 %v148
    %v165 = vcvt.s32.f32 %v149
    %v166 = vcvt.s32.f32 %v150
    %v167 = vcvt.s32.f32 %v151
    %v168 = vcvt.s32.f32 %v152
    %v169 = vcvt.s32.f32 %v153
    %v170 = vcvt.s32.f32 %v154
    %v171 = vcvt.s32.f32 %v155
    %v172 = vcvt.s32.f32 %v156
    %v173 = vcvt.s32.f32 %v157
    %v174 = vcvt.s32.f32 %v158
    %v175 = vcvt.s32.f32 %v159
    %v176 = vcvt.s32.f32 %v160
    %v177 = vcvt.s32.f32 %v161
    %v178 = vcvt.s32.f32 %v162
    %v179 = vcvt.s32.f32 %v163
    %v180 = vld [vmem:[#allocation5] sm:$0xff]
    %v181 = vld [vmem:[#allocation5 + $0x8] sm:$0xff]
    %v182 = vld [vmem:[#allocation5 + $0x10] sm:$0xff]
    %v183 = vld [vmem:[#allocation5 + $0x18] sm:$0xff]
    %v184 = vld [vmem:[#allocation5 + $0x20] sm:$0xff]
    %v185 = vld [vmem:[#allocation5 + $0x28] sm:$0xff]
    %v186 = vld [vmem:[#allocation5 + $0x30] sm:$0xff]
    %v187 = vld [vmem:[#allocation5 + $0x38] sm:$0xff]
    %v188 = vld [vmem:[#allocation5 + $0x40] sm:$0xff]
    %v189 = vld [vmem:[#allocation5 + $0x48] sm:$0xff]
    %v190 = vld [vmem:[#allocation5 + $0x50] sm:$0xff]
    %v191 = vld [vmem:[#allocation5 + $0x58] sm:$0xff]
    %v192 = vld [vmem:[#allocation5 + $0x60] sm:$0xff]
    %v193 = vld [vmem:[#allocation5 + $0x68] sm:$0xff]
    %v194 = vld [vmem:[#allocation5 + $0x70] sm:$0xff]
    %v195 = vld [vmem:[#allocation5 + $0x78] sm:$0xff]
    %196 = vmatpush.msra.mxu0 %v195
    %197 = vmatpush.msra.mxu0 %v194
    %198 = vmatpush.msra.mxu0 %v193
    %199 = vmatpush.msra.mxu0 %v192
    %200 = vmatpush.msra.mxu0 %v191
    %201 = vmatpush.msra.mxu0 %v190
    %202 = vmatpush.msra.mxu0 %v189
    %203 = vmatpush.msra.mxu0 %v188
    %204 = vmatpush.msra.mxu0 %v187
    %205 = vmatpush.msra.mxu0 %v186
    %206 = vmatpush.msra.mxu0 %v185
    %207 = vmatpush.msra.mxu0 %v184
    %208 = vmatpush.msra.mxu0 %v183
    %209 = vmatpush.msra.mxu0 %v182
    %210 = vmatpush.msra.mxu0 %v181
    %211 = vmatpush.msra.mxu0 %v180
    %212 = vmatmul.f32.gmra.mxu0 %v164
    %v213 = vpop.f32.mrf.mxu0
    %v214 = vadd.f32 0.0, %v213
    %215 = vmatmul.f32.gmra.mxu0 %v165
    %v216 = vpop.f32.mrf.mxu0
    %v217 = vadd.f32 0.0, %v216
    %218 = vmatmul.f32.gmra.mxu0 %v166
    %v219 = vpop.f32.mrf.mxu0
    %v220 = vadd.f32 0.0, %v219
    %221 = vmatmul.f32.gmra.mxu0 %v167
    %v222 = vpop.f32.mrf.mxu0
    %v223 = vadd.f32 0.0, %v222
    %224 = vmatmul.f32.gmra.mxu0 %v168
    %v225 = vpop.f32.mrf.mxu0
    %v226 = vadd.f32 0.0, %v225
    %227 = vmatmul.f32.gmra.mxu0 %v169
    %v228 = vpop.f32.mrf.mxu0
    %v229 = vadd.f32 0.0, %v228
    %230 = vmatmul.f32.gmra.mxu0 %v170
    %v231 = vpop.f32.mrf.mxu0
    %v232 = vadd.f32 0.0, %v231
    %233 = vmatmul.f32.gmra.mxu0 %v171
    %v234 = vpop.f32.mrf.mxu0
    %v235 = vadd.f32 0.0, %v234
    %236 = vmatmul.f32.gmra.mxu0 %v172
    %v237 = vpop.f32.mrf.mxu0
    %v238 = vadd.f32 0.0, %v237
    %239 = vmatmul.f32.gmra.mxu0 %v173
    %v240 = vpop.f32.mrf.mxu0
    %v241 = vadd.f32 0.0, %v240
    %242 = vmatmul.f32.gmra.mxu0 %v174
    %v243 = vpop.f32.mrf.mxu0
    %v244 = vadd.f32 0.0, %v243
    %245 = vmatmul.f32.gmra.mxu0 %v175
    %v246 = vpop.f32.mrf.mxu0
    %v247 = vadd.f32 0.0, %v246
    %248 = vmatmul.f32.gmra.mxu0 %v176
    %v249 = vpop.f32.mrf.mxu0
    %v250 = vadd.f32 0.0, %v249
    %251 = vmatmul.f32.gmra.mxu0 %v177
    %v252 = vpop.f32.mrf.mxu0
    %v253 = vadd.f32 0.0, %v252
    %254 = vmatmul.f32.gmra.mxu0 %v178
    %v255 = vpop.f32.mrf.mxu0
    %v256 = vadd.f32 0.0, %v255
    %257 = vmatmul.f32.gmra.mxu0 %v179
    %v258 = vpop.f32.mrf.mxu0
    %v259 = vadd.f32 0.0, %v258
    %260 = vdwg.mxu0
    %v261 = vld [vmem:[#allocation8] sm:$0xff]
    %v262 = vld [vmem:[#allocation8 + $0x8] sm:$0xff]
    %v263 = vld [vmem:[#allocation8 + $0x10] sm:$0xff]
    %v264 = vld [vmem:[#allocation8 + $0x18] sm:$0xff]
    %v265 = vld [vmem:[#allocation8 + $0x20] sm:$0xff]
    %v266 = vld [vmem:[#allocation8 + $0x28] sm:$0xff]
    %v267 = vld [vmem:[#allocation8 + $0x30] sm:$0xff]
    %v268 = vld [vmem:[#allocation8 + $0x38] sm:$0xff]
    %v269 = vld [vmem:[#allocation8 + $0x40] sm:$0xff]
    %v270 = vld [vmem:[#allocation8 + $0x48] sm:$0xff]
    %v271 = vld [vmem:[#allocation8 + $0x50] sm:$0xff]
    %v272 = vld [vmem:[#allocation8 + $0x58] sm:$0xff]
    %v273 = vld [vmem:[#allocation8 + $0x60] sm:$0xff]
    %v274 = vld [vmem:[#allocation8 + $0x68] sm:$0xff]
    %v275 = vld [vmem:[#allocation8 + $0x70] sm:$0xff]
    %v276 = vld [vmem:[#allocation8 + $0x78] sm:$0xff]
    %v277 = vld [vmem:[#allocation8 + $0x80] sm:$0xff]
    %v278 = vld [vmem:[#allocation8 + $0x88] sm:$0xff]
    %v279 = vld [vmem:[#allocation8 + $0x90] sm:$0xff]
    %v280 = vld [vmem:[#allocation8 + $0x98] sm:$0xff]
    %v281 = vld [vmem:[#allocation8 + $0xa0] sm:$0xff]
    %v282 = vld [vmem:[#allocation8 + $0xa8] sm:$0xff]
    %v283 = vld [vmem:[#allocation8 + $0xb0] sm:$0xff]
    %v284 = vld [vmem:[#allocation8 + $0xb8] sm:$0xff]
    %v285 = vld [vmem:[#allocation8 + $0xc0] sm:$0xff]
    %v286 = vld [vmem:[#allocation8 + $0xc8] sm:$0xff]
    %v287 = vld [vmem:[#allocation8 + $0xd0] sm:$0xff]
    %v288 = vld [vmem:[#allocation8 + $0xd8] sm:$0xff]
    %v289 = vld [vmem:[#allocation8 + $0xe0] sm:$0xff]
    %v290 = vld [vmem:[#allocation8 + $0xe8] sm:$0xff]
    %v291 = vld [vmem:[#allocation8 + $0xf0] sm:$0xff]
    %v292 = vld [vmem:[#allocation8 + $0xf8] sm:$0xff]
    %s293 = scalar_lea.vmem [#allocation8], 256
    %v294 = vld [vmem:[%s293] ss:$8 sm:$0x3]
    %v296 = vperm.slane %v294, 0
    %v297 = vperm.slane %v294, 1
    %300 = vmatpush.msra.mxu0 %v291
    %301 = vmatpush.msra.mxu0 %v289
    %302 = vmatpush.msra.mxu0 %v287
    %303 = vmatpush.msra.mxu0 %v285
    %304 = vmatpush.msra.mxu0 %v283
    %305 = vmatpush.msra.mxu0 %v281
    %306 = vmatpush.msra.mxu0 %v279
    %307 = vmatpush.msra.mxu0 %v277
    %308 = vmatpush.msra.mxu0 %v275
    %309 = vmatpush.msra.mxu0 %v273
    %310 = vmatpush.msra.mxu0 %v271
    %311 = vmatpush.msra.mxu0 %v269
    %312 = vmatpush.msra.mxu0 %v267
    %313 = vmatpush.msra.mxu0 %v265
    %314 = vmatpush.msra.mxu0 %v263
    %315 = vmatpush.msra.mxu0 %v261
    %316 = vmatmul.f32.gmra.mxu0 %v214
    %v317 = vpop.f32.mrf.mxu0
    %v318 = vadd.f32 %v296, %v317
    %319 = vmatmul.f32.gmra.mxu0 %v217
    %v320 = vpop.f32.mrf.mxu0
    %v321 = vadd.f32 %v296, %v320
    %322 = vmatmul.f32.gmra.mxu0 %v220
    %v323 = vpop.f32.mrf.mxu0
    %v324 = vadd.f32 %v296, %v323
    %325 = vmatmul.f32.gmra.mxu0 %v223
    %v326 = vpop.f32.mrf.mxu0
    %v327 = vadd.f32 %v296, %v326
    %328 = vmatmul.f32.gmra.mxu0 %v226
    %v329 = vpop.f32.mrf.mxu0
    %v330 = vadd.f32 %v296, %v329
    %331 = vmatmul.f32.gmra.mxu0 %v229
    %v332 = vpop.f32.mrf.mxu0
    %v333 = vadd.f32 %v296, %v332
    %334 = vmatmul.f32.gmra.mxu0 %v232
    %v335 = vpop.f32.mrf.mxu0
    %v336 = vadd.f32 %v296, %v335
    %337 = vmatmul.f32.gmra.mxu0 %v235
    %v338 = vpop.f32.mrf.mxu0
    %v339 = vadd.f32 %v296, %v338
    %340 = vdwg.mxu0
    %341 = vmatpush.msra.mxu0 %v292
    %342 = vmatpush.msra.mxu0 %v290
    %343 = vmatpush.msra.mxu0 %v288
    %344 = vmatpush.msra.mxu0 %v286
    %345 = vmatpush.msra.mxu0 %v284
    %346 = vmatpush.msra.mxu0 %v282
    %347 = vmatpush.msra.mxu0 %v280
    %348 = vmatpush.msra.mxu0 %v278
    %349 = vmatpush.msra.mxu0 %v276
    %350 = vmatpush.msra.mxu0 %v274
    %351 = vmatpush.msra.mxu0 %v272
    %352 = vmatpush.msra.mxu0 %v270
    %353 = vmatpush.msra.mxu0 %v268
    %354 = vmatpush.msra.mxu0 %v266
    %355 = vmatpush.msra.mxu0 %v264
    %356 = vmatpush.msra.mxu0 %v262
    %357 = vmatmul.f32.gmra.mxu0 %v214
    %v358 = vpop.f32.mrf.mxu0
    %359 = vmatmul.f32.gmra.mxu0 %v217
    %v360 = vpop.f32.mrf.mxu0
    %361 = vmatmul.f32.gmra.mxu0 %v220
    %v362 = vpop.f32.mrf.mxu0
    %363 = vmatmul.f32.gmra.mxu0 %v223
    %v364 = vpop.f32.mrf.mxu0
    %365 = vmatmul.f32.gmra.mxu0 %v226
    %v366 = vpop.f32.mrf.mxu0
    %367 = vmatmul.f32.gmra.mxu0 %v229
    %v368 = vpop.f32.mrf.mxu0
    %369 = vmatmul.f32.gmra.mxu0 %v232
    %v370 = vpop.f32.mrf.mxu0
    %371 = vmatmul.f32.gmra.mxu0 %v235
    %v372 = vpop.f32.mrf.mxu0
    %v373 = vadd.f32 %v297, %v372
    %374 = vdwg.mxu0
    %v375 = vld [vmem:[#allocation5 + $0x80] sm:$0xff]
    %v376 = vld [vmem:[#allocation5 + $0x88] sm:$0xff]
    %v377 = vld [vmem:[#allocation5 + $0x90] sm:$0xff]
    %v378 = vld [vmem:[#allocation5 + $0x98] sm:$0xff]
    %vm379 = vcmask 261120
    %v381 = vsel %vm379, 0.0, 0
    %383 = vmatpush.msra.mxu0 0.0
    %384 = vmatpush.msra.mxu0 0.0
    %385 = vmatpush.msra.mxu0 0.0
    %386 = vmatpush.msra.mxu0 0.0
    %387 = vmatpush.msra.mxu0 0.0
    %388 = vmatpush.msra.mxu0 0.0
    %389 = vmatpush.msra.mxu0 0.0
    %390 = vmatpush.msra.mxu0 0.0
    %391 = vmatpush.msra.mxu0 0.0
    %392 = vmatpush.msra.mxu0 0.0
    %393 = vmatpush.msra.mxu0 0.0
    %394 = vmatpush.msra.mxu0 0.0
    %395 = vmatpush.msra.mxu0 %v378
    %396 = vmatpush.msra.mxu0 %v377
    %397 = vmatpush.msra.mxu0 %v376
    %398 = vmatpush.msra.mxu0 %v375
    %399 = vmatmul.f32.gmra.mxu0 %v381
    %v400 = vpop.f32.mrf.mxu0
    %v401 = vadd.f32 0.0, %v400
    %402 = vdwg.mxu0
    %v403 = vadd.f32 %v318, %v401
    %v404 = vxor.u32 %v403, 2147483648
    %v405 = vmul.f32 %v404, 1.442695
    %v406 = vpow.pop %v405
    %v407 = vadd.f32 %v406, 1.0
    %v408 = vrcp.pop %v407
    %v409 = vmul.f32 %v407, %v408
    %v410 = vsub.f32 1.0, %v409
    %v411 = vmul.f32 %v408, %v410
    %v412 = vadd.f32 %v408, %v411
    %vm413 = vweird.f32 %v407
    %vm414 = vweird.f32 %v408
    %vm415 = vmor %vm413, %vm414
    %v416 = vsel %vm415, %v408, %v412
    %v417 = vand.u32 2147483647, %v407
    %vm418 = vcmp.eq.f32.partialorder %v417, 8.507059e+37
    %v419 = vand.u32 %v407, 2147483648
    %v420 = vor.u32 1.1754944e-38, %v419
    %v421 = vsel %vm418, %v420, %v416
    %v422 = vmul.f32 1.0, %v421
    %v423 = vtanh.pop %v403
    %v424 = vmul.f32 %v422, 0.0
    %426 = vrot.lane.b32.xlu0 %v423, 64
    %v427 = vpop.permute.xlu0 %426
    %v429 = vmul.f32 %v422, %v427
    %431 = vrot.lane.b32.xlu0 %v429, 32
    %v432 = vpop.permute.xlu0 %431
    %v434 = vadd.f32 %v424, %v432
    %v435 = vtanh.pop %v434
    %437 = vrot.lane.b32.xlu0 %v435, 64
    %v438 = vpop.permute.xlu0 %437
    %v440 = vmul.f32 %v422, %v438
    %442 = vrot.lane.b32.xlu0 %v440, 32
    %v443 = vpop.permute.xlu0 %442
    %v444 = vsel %vm379, %v443, 0
    %446 = vmatpush.msra.mxu0 0.0
    %447 = vmatpush.msra.mxu0 0.0
    %448 = vmatpush.msra.mxu0 0.0
    %449 = vmatpush.msra.mxu0 0.0
    %450 = vmatpush.msra.mxu0 0.0
    %451 = vmatpush.msra.mxu0 0.0
    %452 = vmatpush.msra.mxu0 0.0
    %453 = vmatpush.msra.mxu0 0.0
    %454 = vmatpush.msra.mxu0 0.0
    %455 = vmatpush.msra.mxu0 0.0
    %456 = vmatpush.msra.mxu0 0.0
    %457 = vmatpush.msra.mxu0 0.0
    %458 = vmatpush.msra.mxu0 %v378
    %459 = vmatpush.msra.mxu0 %v377
    %460 = vmatpush.msra.mxu0 %v376
    %461 = vmatpush.msra.mxu0 %v375
    %462 = vmatmul.f32.gmra.mxu0 %v444
    %v463 = vpop.f32.mrf.mxu0
    %v464 = vadd.f32 0.0, %v463
    %465 = vdwg.mxu0
    %v466 = vadd.f32 %v321, %v464
    %v467 = vxor.u32 %v466, 2147483648
    %v468 = vmul.f32 %v467, 1.442695
    %v469 = vpow.pop %v468
    %v470 = vadd.f32 %v469, 1.0
    %v471 = vrcp.pop %v470
    %v472 = vmul.f32 %v470, %v471
    %v473 = vsub.f32 1.0, %v472
    %v474 = vmul.f32 %v471, %v473
    %v475 = vadd.f32 %v471, %v474
    %vm476 = vweird.f32 %v470
    %vm477 = vweird.f32 %v471
    %vm478 = vmor %vm476, %vm477
    %v479 = vsel %vm478, %v471, %v475
    %v480 = vand.u32 2147483647, %v470
    %vm481 = vcmp.eq.f32.partialorder %v480, 8.507059e+37
    %v482 = vand.u32 %v470, 2147483648
    %v483 = vor.u32 1.1754944e-38, %v482
    %v484 = vsel %vm481, %v483, %v479
    %v485 = vmul.f32 1.0, %v484
    %v486 = vtanh.pop %v466
    %v487 = vmul.f32 %v485, %v434
    %489 = vrot.lane.b32.xlu0 %v486, 64
    %v490 = vpop.permute.xlu0 %489
    %v492 = vmul.f32 %v485, %v490
    %494 = vrot.lane.b32.xlu0 %v492, 32
    %v495 = vpop.permute.xlu0 %494
    %v497 = vadd.f32 %v487, %v495
    %v498 = vtanh.pop %v497
    %500 = vrot.lane.b32.xlu0 %v498, 64
    %v501 = vpop.permute.xlu0 %500
    %v503 = vmul.f32 %v485, %v501
    %505 = vrot.lane.b32.xlu0 %v503, 32
    %v506 = vpop.permute.xlu0 %505
    %v507 = vsel %vm379, %v506, 0
    %509 = vmatpush.msra.mxu0 0.0
    %510 = vmatpush.msra.mxu0 0.0
    %511 = vmatpush.msra.mxu0 0.0
    %512 = vmatpush.msra.mxu0 0.0
    %513 = vmatpush.msra.mxu0 0.0
    %514 = vmatpush.msra.mxu0 0.0
    %515 = vmatpush.msra.mxu0 0.0
    %516 = vmatpush.msra.mxu0 0.0
    %517 = vmatpush.msra.mxu0 0.0
    %518 = vmatpush.msra.mxu0 0.0
    %519 = vmatpush.msra.mxu0 0.0
    %520 = vmatpush.msra.mxu0 0.0
    %521 = vmatpush.msra.mxu0 %v378
    %522 = vmatpush.msra.mxu0 %v377
    %523 = vmatpush.msra.mxu0 %v376
    %524 = vmatpush.msra.mxu0 %v375
    %525 = vmatmul.f32.gmra.mxu0 %v507
    %v526 = vpop.f32.mrf.mxu0
    %v527 = vadd.f32 0.0, %v526
    %528 = vdwg.mxu0
    %v529 = vadd.f32 %v324, %v527
    %v530 = vxor.u32 %v529, 2147483648
    %v531 = vmul.f32 %v530, 1.442695
    %v532 = vpow.pop %v531
    %v533 = vadd.f32 %v532, 1.0
    %v534 = vrcp.pop %v533
    %v535 = vmul.f32 %v533, %v534
    %v536 = vsub.f32 1.0, %v535
    %v537 = vmul.f32 %v534, %v536
    %v538 = vadd.f32 %v534, %v537
    %vm539 = vweird.f32 %v533
    %vm540 = vweird.f32 %v534
    %vm541 = vmor %vm539, %vm540
    %v542 = vsel %vm541, %v534, %v538
    %v543 = vand.u32 2147483647, %v533
    %vm544 = vcmp.eq.f32.partialorder %v543, 8.507059e+37
    %v545 = vand.u32 %v533, 2147483648
    %v546 = vor.u32 1.1754944e-38, %v545
    %v547 = vsel %vm544, %v546, %v542
    %v548 = vmul.f32 1.0, %v547
    %v549 = vtanh.pop %v529
    %v550 = vmul.f32 %v548, %v497
    %552 = vrot.lane.b32.xlu0 %v549, 64
    %v553 = vpop.permute.xlu0 %552
    %v555 = vmul.f32 %v548, %v553
    %557 = vrot.lane.b32.xlu0 %v555, 32
    %v558 = vpop.permute.xlu0 %557
    %v560 = vadd.f32 %v550, %v558
    %v561 = vtanh.pop %v560
    %563 = vrot.lane.b32.xlu0 %v561, 64
    %v564 = vpop.permute.xlu0 %563
    %v566 = vmul.f32 %v548, %v564
    %568 = vrot.lane.b32.xlu0 %v566, 32
    %v569 = vpop.permute.xlu0 %568
    %v570 = vsel %vm379, %v569, 0
    %572 = vmatpush.msra.mxu0 0.0
    %573 = vmatpush.msra.mxu0 0.0
    %574 = vmatpush.msra.mxu0 0.0
    %575 = vmatpush.msra.mxu0 0.0
    %576 = vmatpush.msra.mxu0 0.0
    %577 = vmatpush.msra.mxu0 0.0
    %578 = vmatpush.msra.mxu0 0.0
    %579 = vmatpush.msra.mxu0 0.0
    %580 = vmatpush.msra.mxu0 0.0
    %581 = vmatpush.msra.mxu0 0.0
    %582 = vmatpush.msra.mxu0 0.0
    %583 = vmatpush.msra.mxu0 0.0
    %584 = vmatpush.msra.mxu0 %v378
    %585 = vmatpush.msra.mxu0 %v377
    %586 = vmatpush.msra.mxu0 %v376
    %587 = vmatpush.msra.mxu0 %v375
    %588 = vmatmul.f32.gmra.mxu0 %v570
    %v589 = vpop.f32.mrf.mxu0
    %v590 = vadd.f32 0.0, %v589
    %591 = vdwg.mxu0
    %v592 = vadd.f32 %v327, %v590
    %v593 = vxor.u32 %v592, 2147483648
    %v594 = vmul.f32 %v593, 1.442695
    %v595 = vpow.pop %v594
    %v596 = vadd.f32 %v595, 1.0
    %v597 = vrcp.pop %v596
    %v598 = vmul.f32 %v596, %v597
    %v599 = vsub.f32 1.0, %v598
    %v600 = vmul.f32 %v597, %v599
    %v601 = vadd.f32 %v597, %v600
    %vm602 = vweird.f32 %v596
    %vm603 = vweird.f32 %v597
    %vm604 = vmor %vm602, %vm603
    %v605 = vsel %vm604, %v597, %v601
    %v606 = vand.u32 2147483647, %v596
    %vm607 = vcmp.eq.f32.partialorder %v606, 8.507059e+37
    %v608 = vand.u32 %v596, 2147483648
    %v609 = vor.u32 1.1754944e-38, %v608
    %v610 = vsel %vm607, %v609, %v605
    %v611 = vmul.f32 1.0, %v610
    %v612 = vtanh.pop %v592
    %v613 = vmul.f32 %v611, %v560
    %615 = vrot.lane.b32.xlu0 %v612, 64
    %v616 = vpop.permute.xlu0 %615
    %v618 = vmul.f32 %v611, %v616
    %620 = vrot.lane.b32.xlu0 %v618, 32
    %v621 = vpop.permute.xlu0 %620
    %v623 = vadd.f32 %v613, %v621
    %v624 = vtanh.pop %v623
    %626 = vrot.lane.b32.xlu0 %v624, 64
    %v627 = vpop.permute.xlu0 %626
    %v629 = vmul.f32 %v611, %v627
    %631 = vrot.lane.b32.xlu0 %v629, 32
    %v632 = vpop.permute.xlu0 %631
    %v633 = vsel %vm379, %v632, 0
    %635 = vmatpush.msra.mxu0 0.0
    %636 = vmatpush.msra.mxu0 0.0
    %637 = vmatpush.msra.mxu0 0.0
    %638 = vmatpush.msra.mxu0 0.0
    %639 = vmatpush.msra.mxu0 0.0
    %640 = vmatpush.msra.mxu0 0.0
    %641 = vmatpush.msra.mxu0 0.0
    %642 = vmatpush.msra.mxu0 0.0
    %643 = vmatpush.msra.mxu0 0.0
    %644 = vmatpush.msra.mxu0 0.0
    %645 = vmatpush.msra.mxu0 0.0
    %646 = vmatpush.msra.mxu0 0.0
    %647 = vmatpush.msra.mxu0 %v378
    %648 = vmatpush.msra.mxu0 %v377
    %649 = vmatpush.msra.mxu0 %v376
    %650 = vmatpush.msra.mxu0 %v375
    %651 = vmatmul.f32.gmra.mxu0 %v633
    %v652 = vpop.f32.mrf.mxu0
    %v653 = vadd.f32 0.0, %v652
    %654 = vdwg.mxu0
    %v655 = vadd.f32 %v330, %v653
    %v656 = vxor.u32 %v655, 2147483648
    %v657 = vmul.f32 %v656, 1.442695
    %v658 = vpow.pop %v657
    %v659 = vadd.f32 %v658, 1.0
    %v660 = vrcp.pop %v659
    %v661 = vmul.f32 %v659, %v660
    %v662 = vsub.f32 1.0, %v661
    %v663 = vmul.f32 %v660, %v662
    %v664 = vadd.f32 %v660, %v663
    %vm665 = vweird.f32 %v659
    %vm666 = vweird.f32 %v660
    %vm667 = vmor %vm665, %vm666
    %v668 = vsel %vm667, %v660, %v664
    %v669 = vand.u32 2147483647, %v659
    %vm670 = vcmp.eq.f32.partialorder %v669, 8.507059e+37
    %v671 = vand.u32 %v659, 2147483648
    %v672 = vor.u32 1.1754944e-38, %v671
    %v673 = vsel %vm670, %v672, %v668
    %v674 = vmul.f32 1.0, %v673
    %v675 = vtanh.pop %v655
    %v676 = vmul.f32 %v674, %v623
    %678 = vrot.lane.b32.xlu0 %v675, 64
    %v679 = vpop.permute.xlu0 %678
    %v681 = vmul.f32 %v674, %v679
    %683 = vrot.lane.b32.xlu0 %v681, 32
    %v684 = vpop.permute.xlu0 %683
    %v686 = vadd.f32 %v676, %v684
    %v687 = vtanh.pop %v686
    %689 = vrot.lane.b32.xlu0 %v687, 64
    %v690 = vpop.permute.xlu0 %689
    %v692 = vmul.f32 %v674, %v690
    %694 = vrot.lane.b32.xlu0 %v692, 32
    %v695 = vpop.permute.xlu0 %694
    %v696 = vsel %vm379, %v695, 0
    %698 = vmatpush.msra.mxu0 0.0
    %699 = vmatpush.msra.mxu0 0.0
    %700 = vmatpush.msra.mxu0 0.0
    %701 = vmatpush.msra.mxu0 0.0
    %702 = vmatpush.msra.mxu0 0.0
    %703 = vmatpush.msra.mxu0 0.0
    %704 = vmatpush.msra.mxu0 0.0
    %705 = vmatpush.msra.mxu0 0.0
    %706 = vmatpush.msra.mxu0 0.0
    %707 = vmatpush.msra.mxu0 0.0
    %708 = vmatpush.msra.mxu0 0.0
    %709 = vmatpush.msra.mxu0 0.0
    %710 = vmatpush.msra.mxu0 %v378
    %711 = vmatpush.msra.mxu0 %v377
    %712 = vmatpush.msra.mxu0 %v376
    %713 = vmatpush.msra.mxu0 %v375
    %714 = vmatmul.f32.gmra.mxu0 %v696
    %v715 = vpop.f32.mrf.mxu0
    %v716 = vadd.f32 0.0, %v715
    %717 = vdwg.mxu0
    %v718 = vadd.f32 %v333, %v716
    %v719 = vxor.u32 %v718, 2147483648
    %v720 = vmul.f32 %v719, 1.442695
    %v721 = vpow.pop %v720
    %v722 = vadd.f32 %v721, 1.0
    %v723 = vrcp.pop %v722
    %v724 = vmul.f32 %v722, %v723
    %v725 = vsub.f32 1.0, %v724
    %v726 = vmul.f32 %v723, %v725
    %v727 = vadd.f32 %v723, %v726
    %vm728 = vweird.f32 %v722
    %vm729 = vweird.f32 %v723
    %vm730 = vmor %vm728, %vm729
    %v731 = vsel %vm730, %v723, %v727
    %v732 = vand.u32 2147483647, %v722
    %vm733 = vcmp.eq.f32.partialorder %v732, 8.507059e+37
    %v734 = vand.u32 %v722, 2147483648
    %v735 = vor.u32 1.1754944e-38, %v734
    %v736 = vsel %vm733, %v735, %v731
    %v737 = vmul.f32 1.0, %v736
    %v738 = vtanh.pop %v718
    %v739 = vmul.f32 %v737, %v686
    %741 = vrot.lane.b32.xlu0 %v738, 64
    %v742 = vpop.permute.xlu0 %741
    %v744 = vmul.f32 %v737, %v742
    %746 = vrot.lane.b32.xlu0 %v744, 32
    %v747 = vpop.permute.xlu0 %746
    %v749 = vadd.f32 %v739, %v747
    %v750 = vtanh.pop %v749
    %752 = vrot.lane.b32.xlu0 %v750, 64
    %v753 = vpop.permute.xlu0 %752
    %v755 = vmul.f32 %v737, %v753
    %757 = vrot.lane.b32.xlu0 %v755, 32
    %v758 = vpop.permute.xlu0 %757
    %v759 = vsel %vm379, %v758, 0
    %761 = vmatpush.msra.mxu0 0.0
    %762 = vmatpush.msra.mxu0 0.0
    %763 = vmatpush.msra.mxu0 0.0
    %764 = vmatpush.msra.mxu0 0.0
    %765 = vmatpush.msra.mxu0 0.0
    %766 = vmatpush.msra.mxu0 0.0
    %767 = vmatpush.msra.mxu0 0.0
    %768 = vmatpush.msra.mxu0 0.0
    %769 = vmatpush.msra.mxu0 0.0
    %770 = vmatpush.msra.mxu0 0.0
    %771 = vmatpush.msra.mxu0 0.0
    %772 = vmatpush.msra.mxu0 0.0
    %773 = vmatpush.msra.mxu0 %v378
    %774 = vmatpush.msra.mxu0 %v377
    %775 = vmatpush.msra.mxu0 %v376
    %776 = vmatpush.msra.mxu0 %v375
    %777 = vmatmul.f32.gmra.mxu0 %v759
    %v778 = vpop.f32.mrf.mxu0
    %v779 = vadd.f32 0.0, %v778
    %780 = vdwg.mxu0
    %v781 = vadd.f32 %v336, %v779
    %v782 = vxor.u32 %v781, 2147483648
    %v783 = vmul.f32 %v782, 1.442695
    %v784 = vpow.pop %v783
    %v785 = vadd.f32 %v784, 1.0
    %v786 = vrcp.pop %v785
    %v787 = vmul.f32 %v785, %v786
    %v788 = vsub.f32 1.0, %v787
    %v789 = vmul.f32 %v786, %v788
    %v790 = vadd.f32 %v786, %v789
    %vm791 = vweird.f32 %v785
    %vm792 = vweird.f32 %v786
    %vm793 = vmor %vm791, %vm792
    %v794 = vsel %vm793, %v786, %v790
    %v795 = vand.u32 2147483647, %v785
    %vm796 = vcmp.eq.f32.partialorder %v795, 8.507059e+37
    %v797 = vand.u32 %v785, 2147483648
    %v798 = vor.u32 1.1754944e-38, %v797
    %v799 = vsel %vm796, %v798, %v794
    %v800 = vmul.f32 1.0, %v799
    %v801 = vtanh.pop %v781
    %v802 = vmul.f32 %v800, %v749
    %804 = vrot.lane.b32.xlu0 %v801, 64
    %v805 = vpop.permute.xlu0 %804
    %v807 = vmul.f32 %v800, %v805
    %809 = vrot.lane.b32.xlu0 %v807, 32
    %v810 = vpop.permute.xlu0 %809
    %v812 = vadd.f32 %v802, %v810
    %v813 = vtanh.pop %v812
    %815 = vrot.lane.b32.xlu0 %v813, 64
    %v816 = vpop.permute.xlu0 %815
    %v818 = vmul.f32 %v800, %v816
    %820 = vrot.lane.b32.xlu0 %v818, 32
    %v821 = vpop.permute.xlu0 %820
    %v822 = vsel %vm379, %v821, 0
    %824 = vmatpush.msra.mxu0 0.0
    %825 = vmatpush.msra.mxu0 0.0
    %826 = vmatpush.msra.mxu0 0.0
    %827 = vmatpush.msra.mxu0 0.0
    %828 = vmatpush.msra.mxu0 0.0
    %829 = vmatpush.msra.mxu0 0.0
    %830 = vmatpush.msra.mxu0 0.0
    %831 = vmatpush.msra.mxu0 0.0
    %832 = vmatpush.msra.mxu0 0.0
    %833 = vmatpush.msra.mxu0 0.0
    %834 = vmatpush.msra.mxu0 0.0
    %835 = vmatpush.msra.mxu0 0.0
    %836 = vmatpush.msra.mxu0 %v378
    %837 = vmatpush.msra.mxu0 %v377
    %838 = vmatpush.msra.mxu0 %v376
    %839 = vmatpush.msra.mxu0 %v375
    %840 = vmatmul.f32.gmra.mxu0 %v822
    %v841 = vpop.f32.mrf.mxu0
    %v842 = vadd.f32 0.0, %v841
    %843 = vdwg.mxu0
    %v844 = vadd.f32 %v339, %v842
    %v845 = vxor.u32 %v844, 2147483648
    %v846 = vmul.f32 %v845, 1.442695
    %v847 = vpow.pop %v846
    %v848 = vadd.f32 %v847, 1.0
    %v849 = vrcp.pop %v848
    %v850 = vmul.f32 %v848, %v849
    %v851 = vsub.f32 1.0, %v850
    %v852 = vmul.f32 %v849, %v851
    %v853 = vadd.f32 %v849, %v852
    %vm854 = vweird.f32 %v848
    %vm855 = vweird.f32 %v849
    %vm856 = vmor %vm854, %vm855
    %v857 = vsel %vm856, %v849, %v853
    %v858 = vand.u32 2147483647, %v848
    %vm859 = vcmp.eq.f32.partialorder %v858, 8.507059e+37
    %v860 = vand.u32 %v848, 2147483648
    %v861 = vor.u32 1.1754944e-38, %v860
    %v862 = vsel %vm859, %v861, %v857
    %v863 = vmul.f32 1.0, %v862
    %v864 = vtanh.pop %v844
    %v865 = vmul.f32 %v863, %v812
    %867 = vrot.lane.b32.xlu0 %v864, 64
    %v868 = vpop.permute.xlu0 %867
    %v870 = vmul.f32 %v863, %v868
    %872 = vrot.lane.b32.xlu0 %v870, 32
    %v873 = vpop.permute.xlu0 %872
    %v875 = vadd.f32 %v865, %v873
    %v876 = vtanh.pop %v875
    %878 = vrot.lane.b32.xlu0 %v876, 64
    %v879 = vpop.permute.xlu0 %878
    %v881 = vmul.f32 %v863, %v879
    %v882 = vxor.u32 %v373, 2147483648
    %v883 = vmul.f32 %v882, 1.442695
    %v884 = vpow.pop %v883
    %v885 = vadd.f32 %v884, 1.0
    %v886 = vrcp.pop %v885
    %v887 = vmul.f32 %v885, %v886
    %v888 = vsub.f32 1.0, %v887
    %v889 = vmul.f32 %v886, %v888
    %v890 = vadd.f32 %v886, %v889
    %vm891 = vweird.f32 %v885
    %vm892 = vweird.f32 %v886
    %vm893 = vmor %vm891, %vm892
    %v894 = vsel %vm893, %v886, %v890
    %v895 = vand.u32 2147483647, %v885
    %vm896 = vcmp.eq.f32.partialorder %v895, 8.507059e+37
    %v897 = vand.u32 %v885, 2147483648
    %v898 = vor.u32 1.1754944e-38, %v897
    %v899 = vsel %vm896, %v898, %v894
    %v900 = vmul.f32 1.0, %v899
    %v901 = vtanh.pop %v373
    %903 = vrot.lane.b32.xlu0 %v901, 64
    %v904 = vpop.permute.xlu0 %903
    %v906 = vmul.f32 %v900, %v904
    %v907 = vtanh.pop %v906
    %909 = vrot.lane.b32.xlu0 %v907, 96
    %v910 = vpop.permute.xlu0 %909
    %v912 = vmul.f32 %v900, %v910
    %914 = vrot.lane.b32.xlu0 %v881, 32
    %v915 = vpop.permute.xlu0 %914
    %918 = vrot.lane.b32.xlu0 %v912, 64
    %v919 = vpop.permute.xlu0 %918
    %v921 = vsel %vm379, %v915, %v919
    %v922 = vld [vmem:[#allocation5 + $0xa0] sm:$0xff]
    %v923 = vld [vmem:[#allocation5 + $0xa8] sm:$0xff]
    %v924 = vld [vmem:[#allocation5 + $0xb0] sm:$0xff]
    %v925 = vld [vmem:[#allocation5 + $0xb8] sm:$0xff]
    %v926 = vld [vmem:[#allocation5 + $0xc0] sm:$0xff]
    %v927 = vld [vmem:[#allocation5 + $0xc8] sm:$0xff]
    %v928 = vld [vmem:[#allocation5 + $0xd0] sm:$0xff]
    %v929 = vld [vmem:[#allocation5 + $0xd8] sm:$0xff]
    %v930 = vld [vmem:[#allocation5 + $0xe0] sm:$0x1]
    %v931 = vperm.slane %v930, 0
    %vm932 = vcmask 523264
    %v934 = vsel %vm932, %v921, 0
    %936 = vmatpush.msra.mxu0 0.0
    %937 = vmatpush.msra.mxu0 0.0
    %938 = vmatpush.msra.mxu0 0.0
    %939 = vmatpush.msra.mxu0 0.0
    %940 = vmatpush.msra.mxu0 0.0
    %941 = vmatpush.msra.mxu0 0.0
    %942 = vmatpush.msra.mxu0 0.0
    %943 = vmatpush.msra.mxu0 0.0
    %944 = vmatpush.msra.mxu0 %v929
    %945 = vmatpush.msra.mxu0 %v928
    %946 = vmatpush.msra.mxu0 %v927
    %947 = vmatpush.msra.mxu0 %v926
    %948 = vmatpush.msra.mxu0 %v925
    %949 = vmatpush.msra.mxu0 %v924
    %950 = vmatpush.msra.mxu0 %v923
    %951 = vmatpush.msra.mxu0 %v922
    %952 = vmatmul.f32.gmra.mxu0 %v934
    %v953 = vpop.f32.mrf.mxu0
    %v954 = vadd.f32 %v931, %v953
    %955 = vdwg.mxu0
    %v956 = vmul.f32 %v954, 0.5
    %v957 = vmul.f32 %v956, 1.442695
    %v958 = vpow.pop %v957
    %v959 = vld [vmem:[%s3] sm:$0xff]
    %961 = vrot.lane.b32.xlu0 %v958, 112
    %v962 = vpop.permute.xlu0 %961
    %v964 = vmul.f32 %v959, %v962
    %v965 = vadd.f32 %v954, %v964
    %v966 = vlaneseq
    %v967 = vshrl.u32 %v966, 7
    %vm968 = vcmp.lt.s32.totalorder %v967, 2
    %v969 = vsel %vm968, 1, 0
    %v970 = vcvt.s32.f32 %v969
    %v971 = vmul.f32 %v954, %v954
    %973 = vrot.lane.b32.xlu0 %v971, 16
    %v974 = vpop.permute.xlu0 %973
    %v976 = vsub.f32 %v954, %v974
    %v977 = vmul.f32 %v954, 1.442695
    %v978 = vpow.pop %v977
    %v979 = vsub.f32 %v976, %v978
    %v980 = vadd.f32 %v979, 1.0
    %982 = vrot.lane.b32.xlu0 %v980, 112
    %v983 = vpop.permute.xlu0 %982
    %vm985 = vcmask 130048
    %v986 = vsel %vm985, %v983, 0.0
    %987 = vadd.xlane.f32.xlu0 %v986
    %v988 = vpop.xlane.xlu0 %987
    %v989 = vmul.f32 %v988, -0.5
    %v990 = vmul.f32 %v989, %v970
    %v991 = vrot.slane %v990, 4
    %v992 = vadd.f32 %v990, %v991
    %v993 = vrot.slane %v992, 2
    %v994 = vadd.f32 %v992, %v993
    %v995 = vrot.slane %v994, 1
    %v996 = vadd.f32 %v994, %v995
    %vm997 = vcmask 0
    %998 = vst.msk [vmem:[#allocation10] sm:$0x1] %vm997, %v996
    %v999 = vld [vmem:[#allocation5 + $0xe8] sm:$0xff]
    %v1000 = vld [vmem:[#allocation5 + $0xf0] sm:$0xff]
    %v1001 = vld [vmem:[#allocation5 + $0x108] sm:$0x1]
    %v1002 = vperm.slane %v1001, 0
    %v1004 = vsel %vm985, %v965, 0
    %1006 = vmatpush.msra.mxu0 0.0
    %1007 = vmatpush.msra.mxu0 0.0
    %1008 = vmatpush.msra.mxu0 0.0
    %1009 = vmatpush.msra.mxu0 0.0
    %1010 = vmatpush.msra.mxu0 0.0
    %1011 = vmatpush.msra.mxu0 0.0
    %1012 = vmatpush.msra.mxu0 0.0
    %1013 = vmatpush.msra.mxu0 0.0
    %1014 = vmatpush.msra.mxu0 0.0
    %1015 = vmatpush.msra.mxu0 0.0
    %1016 = vmatpush.msra.mxu0 0.0
    %1017 = vmatpush.msra.mxu0 0.0
    %1018 = vmatpush.msra.mxu0 0.0
    %1019 = vmatpush.msra.mxu0 0.0
    %1020 = vmatpush.msra.mxu0 %v1000
    %1021 = vmatpush.msra.mxu0 %v999
    %1022 = vmatmul.f32.gmra.mxu0 %v1004
    %v1023 = vpop.f32.mrf.mxu0
    %v1024 = vadd.f32 %v1002, %v1023
    %1025 = vdwg.mxu0
    %v1026 = vmax.f32 %v1024, 0.0
    %s1027 = smul.u32 8, 36
    %s1028 = smul.u32 %s1027, 2
    %s1029 = sshll.u32 %s1028, 4
    %1030 = dma.done [#allocation3], %s1029
    %v1031 = vld [vmem:[#allocation2 + $0x100] sm:$0xff]
    %v1032 = vld [vmem:[#allocation2 + $0x108] sm:$0xff]
    %v1033 = vld [vmem:[#allocation2 + $0x110] sm:$0xff]
    %v1034 = vld [vmem:[#allocation2 + $0x118] sm:$0xff]
    %v1035 = vld [vmem:[#allocation2] sm:$0xff]
    %v1036 = vld [vmem:[#allocation2 + $0x8] sm:$0xff]
    %v1037 = vld [vmem:[#allocation2 + $0x10] sm:$0xff]
    %v1038 = vld [vmem:[#allocation2 + $0x18] sm:$0xff]
    %v1039 = vld [vmem:[#allocation2 + $0x20] sm:$0xff]
    %v1040 = vld [vmem:[#allocation2 + $0x28] sm:$0xff]
    %v1041 = vld [vmem:[#allocation2 + $0x30] sm:$0xff]
    %v1042 = vld [vmem:[#allocation2 + $0x38] sm:$0xff]
    %v1043 = vld [vmem:[#allocation2 + $0x40] sm:$0xff]
    %v1044 = vld [vmem:[#allocation2 + $0x48] sm:$0xff]
    %v1045 = vld [vmem:[#allocation2 + $0x50] sm:$0xff]
    %v1046 = vld [vmem:[#allocation2 + $0x58] sm:$0xff]
    %v1047 = vld [vmem:[#allocation2 + $0x60] sm:$0xff]
    %v1048 = vld [vmem:[#allocation2 + $0x68] sm:$0xff]
    %v1049 = vld [vmem:[#allocation2 + $0x70] sm:$0xff]
    %v1050 = vld [vmem:[#allocation2 + $0x78] sm:$0xff]
    %v1051 = vld [vmem:[#allocation2 + $0x80] sm:$0xff]
    %v1052 = vld [vmem:[#allocation2 + $0x88] sm:$0xff]
    %v1053 = vld [vmem:[#allocation2 + $0x90] sm:$0xff]
    %v1054 = vld [vmem:[#allocation2 + $0x98] sm:$0xff]
    %v1055 = vld [vmem:[#allocation2 + $0xa0] sm:$0xff]
    %v1056 = vld [vmem:[#allocation2 + $0xa8] sm:$0xff]
    %v1057 = vld [vmem:[#allocation2 + $0xb0] sm:$0xff]
    %v1058 = vld [vmem:[#allocation2 + $0xb8] sm:$0xff]
    %v1059 = vld [vmem:[#allocation2 + $0xc0] sm:$0xff]
    %v1060 = vld [vmem:[#allocation2 + $0xc8] sm:$0xff]
    %v1061 = vld [vmem:[#allocation2 + $0xd0] sm:$0xff]
    %v1062 = vld [vmem:[#allocation2 + $0xd8] sm:$0xff]
    %v1063 = vld [vmem:[#allocation2 + $0xe0] sm:$0xff]
    %v1064 = vld [vmem:[#allocation2 + $0xe8] sm:$0xff]
    %v1065 = vld [vmem:[#allocation2 + $0xf0] sm:$0xff]
    %v1066 = vld [vmem:[#allocation2 + $0xf8] sm:$0xff]
    %s1067 = scalar_lea.vmem [#allocation2], 416
    %v1068 = vld [vmem:[%s1067] ss:$8 sm:$0x3]
    %v1070 = vsel %vm985, %v1026, 0
    %1072 = vmatpush.msra.mxu0 0.0
    %1073 = vmatpush.msra.mxu0 0.0
    %1074 = vmatpush.msra.mxu0 0.0
    %1075 = vmatpush.msra.mxu0 0.0
    %1076 = vmatpush.msra.mxu0 0.0
    %1077 = vmatpush.msra.mxu0 0.0
    %1078 = vmatpush.msra.mxu0 0.0
    %1079 = vmatpush.msra.mxu0 0.0
    %1080 = vmatpush.msra.mxu0 0.0
    %1081 = vmatpush.msra.mxu0 0.0
    %1082 = vmatpush.msra.mxu0 0.0
    %1083 = vmatpush.msra.mxu0 0.0
    %1084 = vmatpush.msra.mxu0 0.0
    %1085 = vmatpush.msra.mxu0 0.0
    %1086 = vmatpush.msra.mxu0 %v1033
    %1087 = vmatpush.msra.mxu0 %v1031
    %1088 = vmatmul.f32.gmra.mxu0 %v1070
    %v1089 = vpop.f32.mrf.mxu0
    %v1090 = vadd.f32 0.0, %v1089
    %1091 = vdwg.mxu0
    %1092 = vmatpush.msra.mxu0 0.0
    %1093 = vmatpush.msra.mxu0 0.0
    %1094 = vmatpush.msra.mxu0 0.0
    %1095 = vmatpush.msra.mxu0 0.0
    %1096 = vmatpush.msra.mxu0 0.0
    %1097 = vmatpush.msra.mxu0 0.0
    %1098 = vmatpush.msra.mxu0 0.0
    %1099 = vmatpush.msra.mxu0 0.0
    %1100 = vmatpush.msra.mxu0 0.0
    %1101 = vmatpush.msra.mxu0 0.0
    %1102 = vmatpush.msra.mxu0 0.0
    %1103 = vmatpush.msra.mxu0 0.0
    %1104 = vmatpush.msra.mxu0 0.0
    %1105 = vmatpush.msra.mxu0 0.0
    %1106 = vmatpush.msra.mxu0 %v1034
    %1107 = vmatpush.msra.mxu0 %v1032
    %1108 = vmatmul.f32.gmra.mxu0 %v1070
    %v1109 = vpop.f32.mrf.mxu0
    %v1110 = vadd.f32 0.0, %v1109
    %1111 = vdwg.mxu0
    %v1113 = vperm.slane %v1068, 0
    %v1114 = vperm.slane %v1068, 1
    %1117 = vmatpush.msra.mxu0 %v1065
    %1118 = vmatpush.msra.mxu0 %v1063
    %1119 = vmatpush.msra.mxu0 %v1061
    %1120 = vmatpush.msra.mxu0 %v1059
    %1121 = vmatpush.msra.mxu0 %v1057
    %1122 = vmatpush.msra.mxu0 %v1055
    %1123 = vmatpush.msra.mxu0 %v1053
    %1124 = vmatpush.msra.mxu0 %v1051
    %1125 = vmatpush.msra.mxu0 %v1049
    %1126 = vmatpush.msra.mxu0 %v1047
    %1127 = vmatpush.msra.mxu0 %v1045
    %1128 = vmatpush.msra.mxu0 %v1043
    %1129 = vmatpush.msra.mxu0 %v1041
    %1130 = vmatpush.msra.mxu0 %v1039
    %1131 = vmatpush.msra.mxu0 %v1037
    %1132 = vmatpush.msra.mxu0 %v1035
    %1133 = vmatmul.f32.gmra.mxu0 %v238
    %v1134 = vpop.f32.mrf.mxu0
    %v1135 = vadd.f32 %v1113, %v1134
    %1136 = vmatmul.f32.gmra.mxu0 %v241
    %v1137 = vpop.f32.mrf.mxu0
    %v1138 = vadd.f32 %v1113, %v1137
    %1139 = vmatmul.f32.gmra.mxu0 %v244
    %v1140 = vpop.f32.mrf.mxu0
    %v1141 = vadd.f32 %v1113, %v1140
    %1142 = vmatmul.f32.gmra.mxu0 %v247
    %v1143 = vpop.f32.mrf.mxu0
    %v1144 = vadd.f32 %v1113, %v1143
    %1145 = vmatmul.f32.gmra.mxu0 %v250
    %v1146 = vpop.f32.mrf.mxu0
    %v1147 = vadd.f32 %v1113, %v1146
    %1148 = vmatmul.f32.gmra.mxu0 %v253
    %v1149 = vpop.f32.mrf.mxu0
    %v1150 = vadd.f32 %v1113, %v1149
    %1151 = vmatmul.f32.gmra.mxu0 %v256
    %v1152 = vpop.f32.mrf.mxu0
    %v1153 = vadd.f32 %v1113, %v1152
    %1154 = vmatmul.f32.gmra.mxu0 %v259
    %v1155 = vpop.f32.mrf.mxu0
    %v1156 = vadd.f32 %v1113, %v1155
    %1157 = vdwg.mxu0
    %1158 = vmatpush.msra.mxu0 %v1066
    %1159 = vmatpush.msra.mxu0 %v1064
    %1160 = vmatpush.msra.mxu0 %v1062
    %1161 = vmatpush.msra.mxu0 %v1060
    %1162 = vmatpush.msra.mxu0 %v1058
    %1163 = vmatpush.msra.mxu0 %v1056
    %1164 = vmatpush.msra.mxu0 %v1054
    %1165 = vmatpush.msra.mxu0 %v1052
    %1166 = vmatpush.msra.mxu0 %v1050
    %1167 = vmatpush.msra.mxu0 %v1048
    %1168 = vmatpush.msra.mxu0 %v1046
    %1169 = vmatpush.msra.mxu0 %v1044
    %1170 = vmatpush.msra.mxu0 %v1042
    %1171 = vmatpush.msra.mxu0 %v1040
    %1172 = vmatpush.msra.mxu0 %v1038
    %1173 = vmatpush.msra.mxu0 %v1036
    %1174 = vmatmul.f32.gmra.mxu0 %v238
    %v1175 = vpop.f32.mrf.mxu0
    %v1176 = vadd.f32 %v1114, %v1175
    %1177 = vmatmul.f32.gmra.mxu0 %v241
    %v1178 = vpop.f32.mrf.mxu0
    %v1179 = vadd.f32 %v1114, %v1178
    %1180 = vmatmul.f32.gmra.mxu0 %v244
    %v1181 = vpop.f32.mrf.mxu0
    %v1182 = vadd.f32 %v1114, %v1181
    %1183 = vmatmul.f32.gmra.mxu0 %v247
    %v1184 = vpop.f32.mrf.mxu0
    %v1185 = vadd.f32 %v1114, %v1184
    %1186 = vmatmul.f32.gmra.mxu0 %v250
    %v1187 = vpop.f32.mrf.mxu0
    %v1188 = vadd.f32 %v1114, %v1187
    %1189 = vmatmul.f32.gmra.mxu0 %v253
    %v1190 = vpop.f32.mrf.mxu0
    %v1191 = vadd.f32 %v1114, %v1190
    %1192 = vmatmul.f32.gmra.mxu0 %v256
    %v1193 = vpop.f32.mrf.mxu0
    %v1194 = vadd.f32 %v1114, %v1193
    %1195 = vmatmul.f32.gmra.mxu0 %v259
    %v1196 = vpop.f32.mrf.mxu0
    %v1197 = vadd.f32 %v1114, %v1196
    %1198 = vdwg.mxu0
    %v1199 = vadd.f32 %v1135, %v1090
    %v1200 = vadd.f32 %v1176, %v1110
    %v1201 = vadd.f32 %v1138, %v1090
    %v1202 = vadd.f32 %v1179, %v1110
    %v1203 = vadd.f32 %v1141, %v1090
    %v1204 = vadd.f32 %v1182, %v1110
    %v1205 = vadd.f32 %v1144, %v1090
    %v1206 = vadd.f32 %v1185, %v1110
    %v1207 = vadd.f32 %v1147, %v1090
    %v1208 = vadd.f32 %v1188, %v1110
    %v1209 = vadd.f32 %v1150, %v1090
    %v1210 = vadd.f32 %v1191, %v1110
    %v1211 = vadd.f32 %v1153, %v1090
    %v1212 = vadd.f32 %v1194, %v1110
    %v1213 = vadd.f32 %v1156, %v1090
    %v1214 = vadd.f32 %v1197, %v1110
    %v1215 = vld [vmem:[#allocation2 + $0x120] sm:$0xff]
    %v1216 = vld [vmem:[#allocation2 + $0x128] sm:$0xff]
    %v1217 = vld [vmem:[#allocation2 + $0x130] sm:$0xff]
    %v1218 = vld [vmem:[#allocation2 + $0x138] sm:$0xff]
    %v1219 = vld [vmem:[#allocation2 + $0x140] sm:$0xff]
    %v1220 = vld [vmem:[#allocation2 + $0x148] sm:$0xff]
    %v1221 = vld [vmem:[#allocation2 + $0x150] sm:$0xff]
    %v1222 = vld [vmem:[#allocation2 + $0x158] sm:$0xff]
    %v1223 = vld [vmem:[#allocation2 + $0x160] sm:$0xff]
    %v1224 = vld [vmem:[#allocation2 + $0x168] sm:$0xff]
    %v1225 = vld [vmem:[#allocation2 + $0x170] sm:$0xff]
    %v1226 = vld [vmem:[#allocation2 + $0x178] sm:$0xff]
    %v1227 = vld [vmem:[#allocation2 + $0x180] sm:$0xff]
    %v1228 = vld [vmem:[#allocation2 + $0x188] sm:$0xff]
    %v1229 = vld [vmem:[#allocation2 + $0x190] sm:$0xff]
    %v1230 = vld [vmem:[#allocation2 + $0x198] sm:$0xff]
    %v1231 = vsel %vm932, 0.0, 0
    %1233 = vmatpush.msra.mxu0 0.0
    %1234 = vmatpush.msra.mxu0 0.0
    %1235 = vmatpush.msra.mxu0 0.0
    %1236 = vmatpush.msra.mxu0 0.0
    %1237 = vmatpush.msra.mxu0 0.0
    %1238 = vmatpush.msra.mxu0 0.0
    %1239 = vmatpush.msra.mxu0 0.0
    %1240 = vmatpush.msra.mxu0 0.0
    %1241 = vmatpush.msra.mxu0 %v1229
    %1242 = vmatpush.msra.mxu0 %v1227
    %1243 = vmatpush.msra.mxu0 %v1225
    %1244 = vmatpush.msra.mxu0 %v1223
    %1245 = vmatpush.msra.mxu0 %v1221
    %1246 = vmatpush.msra.mxu0 %v1219
    %1247 = vmatpush.msra.mxu0 %v1217
    %1248 = vmatpush.msra.mxu0 %v1215
    %1249 = vmatmul.f32.gmra.mxu0 %v1231
    %v1250 = vpop.f32.mrf.mxu0
    %v1251 = vadd.f32 0.0, %v1250
    %1252 = vdwg.mxu0
    %1253 = vmatpush.msra.mxu0 0.0
    %1254 = vmatpush.msra.mxu0 0.0
    %1255 = vmatpush.msra.mxu0 0.0
    %1256 = vmatpush.msra.mxu0 0.0
    %1257 = vmatpush.msra.mxu0 0.0
    %1258 = vmatpush.msra.mxu0 0.0
    %1259 = vmatpush.msra.mxu0 0.0
    %1260 = vmatpush.msra.mxu0 0.0
    %1261 = vmatpush.msra.mxu0 %v1230
    %1262 = vmatpush.msra.mxu0 %v1228
    %1263 = vmatpush.msra.mxu0 %v1226
    %1264 = vmatpush.msra.mxu0 %v1224
    %1265 = vmatpush.msra.mxu0 %v1222
    %1266 = vmatpush.msra.mxu0 %v1220
    %1267 = vmatpush.msra.mxu0 %v1218
    %1268 = vmatpush.msra.mxu0 %v1216
    %1269 = vmatmul.f32.gmra.mxu0 %v1231
    %v1270 = vpop.f32.mrf.mxu0
    %v1271 = vadd.f32 0.0, %v1270
    %1272 = vdwg.mxu0
    %v1273 = vadd.f32 %v1199, %v1251
    %v1274 = vadd.f32 %v1200, %v1271
    %v1275 = vxor.u32 %v1273, 2147483648
    %v1276 = vmul.f32 %v1275, 1.442695
    %v1277 = vpow.pop %v1276
    %v1278 = vadd.f32 %v1277, 1.0
    %v1279 = vrcp.pop %v1278
    %v1280 = vmul.f32 %v1278, %v1279
    %v1281 = vsub.f32 1.0, %v1280
    %v1282 = vmul.f32 %v1279, %v1281
    %v1283 = vadd.f32 %v1279, %v1282
    %vm1284 = vweird.f32 %v1278
    %vm1285 = vweird.f32 %v1279
    %vm1286 = vmor %vm1284, %vm1285
    %v1287 = vsel %vm1286, %v1279, %v1283
    %v1288 = vand.u32 2147483647, %v1278
    %vm1289 = vcmp.eq.f32.partialorder %v1288, 8.507059e+37
    %v1290 = vand.u32 %v1278, 2147483648
    %v1291 = vor.u32 1.1754944e-38, %v1290
    %v1292 = vsel %vm1289, %v1291, %v1287
    %v1293 = vmul.f32 1.0, %v1292
    %v1294 = vtanh.pop %v1274
    %v1295 = vxor.u32 %v1274, 2147483648
    %v1296 = vmul.f32 %v1295, 1.442695
    %v1297 = vpow.pop %v1296
    %v1298 = vadd.f32 %v1297, 1.0
    %v1299 = vrcp.pop %v1298
    %v1300 = vmul.f32 %v1298, %v1299
    %v1301 = vsub.f32 1.0, %v1300
    %v1302 = vmul.f32 %v1299, %v1301
    %v1303 = vadd.f32 %v1299, %v1302
    %vm1304 = vweird.f32 %v1298
    %vm1305 = vweird.f32 %v1299
    %vm1306 = vmor %vm1304, %vm1305
    %v1307 = vsel %vm1306, %v1299, %v1303
    %v1308 = vand.u32 2147483647, %v1298
    %vm1309 = vcmp.eq.f32.partialorder %v1308, 8.507059e+37
    %v1310 = vand.u32 %v1298, 2147483648
    %v1311 = vor.u32 1.1754944e-38, %v1310
    %v1312 = vsel %vm1309, %v1311, %v1307
    %v1313 = vmul.f32 1.0, %v1312
    %v1314 = vmul.f32 %v1293, 0.0
    %v1315 = vmul.f32 %v1293, %v1294
    %1317 = vrot.lane.b32.xlu0 %v1315, 64
    %v1318 = vpop.permute.xlu0 %1317
    %v1320 = vadd.f32 %v1314, %v1318
    %v1321 = vtanh.pop %v1320
    %v1322 = vmul.f32 %v1313, %v1321
    %1324 = vrot.lane.b32.xlu0 %v1322, 64
    %v1325 = vpop.permute.xlu0 %1324
    %1327 = vst.msk [vmem:[#allocation4] sm:$0xff] %vm932, %v1325
    %v1328 = vsel %vm932, %v1325, 0
    %1330 = vmatpush.msra.mxu0 0.0
    %1331 = vmatpush.msra.mxu0 0.0
    %1332 = vmatpush.msra.mxu0 0.0
    %1333 = vmatpush.msra.mxu0 0.0
    %1334 = vmatpush.msra.mxu0 0.0
    %1335 = vmatpush.msra.mxu0 0.0
    %1336 = vmatpush.msra.mxu0 0.0
    %1337 = vmatpush.msra.mxu0 0.0
    %1338 = vmatpush.msra.mxu0 %v1229
    %1339 = vmatpush.msra.mxu0 %v1227
    %1340 = vmatpush.msra.mxu0 %v1225
    %1341 = vmatpush.msra.mxu0 %v1223
    %1342 = vmatpush.msra.mxu0 %v1221
    %1343 = vmatpush.msra.mxu0 %v1219
    %1344 = vmatpush.msra.mxu0 %v1217
    %1345 = vmatpush.msra.mxu0 %v1215
    %1346 = vmatmul.f32.gmra.mxu0 %v1328
    %v1347 = vpop.f32.mrf.mxu0
    %v1348 = vadd.f32 0.0, %v1347
    %1349 = vdwg.mxu0
    %1350 = vmatpush.msra.mxu0 0.0
    %1351 = vmatpush.msra.mxu0 0.0
    %1352 = vmatpush.msra.mxu0 0.0
    %1353 = vmatpush.msra.mxu0 0.0
    %1354 = vmatpush.msra.mxu0 0.0
    %1355 = vmatpush.msra.mxu0 0.0
    %1356 = vmatpush.msra.mxu0 0.0
    %1357 = vmatpush.msra.mxu0 0.0
    %1358 = vmatpush.msra.mxu0 %v1230
    %1359 = vmatpush.msra.mxu0 %v1228
    %1360 = vmatpush.msra.mxu0 %v1226
    %1361 = vmatpush.msra.mxu0 %v1224
    %1362 = vmatpush.msra.mxu0 %v1222
    %1363 = vmatpush.msra.mxu0 %v1220
    %1364 = vmatpush.msra.mxu0 %v1218
    %1365 = vmatpush.msra.mxu0 %v1216
    %1366 = vmatmul.f32.gmra.mxu0 %v1328
    %v1367 = vpop.f32.mrf.mxu0
    %v1368 = vadd.f32 0.0, %v1367
    %1369 = vdwg.mxu0
    %v1370 = vadd.f32 %v1201, %v1348
    %v1371 = vadd.f32 %v1202, %v1368
    %v1372 = vxor.u32 %v1370, 2147483648
    %v1373 = vmul.f32 %v1372, 1.442695
    %v1374 = vpow.pop %v1373
    %v1375 = vadd.f32 %v1374, 1.0
    %v1376 = vrcp.pop %v1375
    %v1377 = vmul.f32 %v1375, %v1376
    %v1378 = vsub.f32 1.0, %v1377
    %v1379 = vmul.f32 %v1376, %v1378
    %v1380 = vadd.f32 %v1376, %v1379
    %vm1381 = vweird.f32 %v1375
    %vm1382 = vweird.f32 %v1376
    %vm1383 = vmor %vm1381, %vm1382
    %v1384 = vsel %vm1383, %v1376, %v1380
    %v1385 = vand.u32 2147483647, %v1375
    %vm1386 = vcmp.eq.f32.partialorder %v1385, 8.507059e+37
    %v1387 = vand.u32 %v1375, 2147483648
    %v1388 = vor.u32 1.1754944e-38, %v1387
    %v1389 = vsel %vm1386, %v1388, %v1384
    %v1390 = vmul.f32 1.0, %v1389
    %v1391 = vtanh.pop %v1371
    %v1392 = vxor.u32 %v1371, 2147483648
    %v1393 = vmul.f32 %v1392, 1.442695
    %v1394 = vpow.pop %v1393
    %v1395 = vadd.f32 %v1394, 1.0
    %v1396 = vrcp.pop %v1395
    %v1397 = vmul.f32 %v1395, %v1396
    %v1398 = vsub.f32 1.0, %v1397
    %v1399 = vmul.f32 %v1396, %v1398
    %v1400 = vadd.f32 %v1396, %v1399
    %vm1401 = vweird.f32 %v1395
    %vm1402 = vweird.f32 %v1396
    %vm1403 = vmor %vm1401, %vm1402
    %v1404 = vsel %vm1403, %v1396, %v1400
    %v1405 = vand.u32 2147483647, %v1395
    %vm1406 = vcmp.eq.f32.partialorder %v1405, 8.507059e+37
    %v1407 = vand.u32 %v1395, 2147483648
    %v1408 = vor.u32 1.1754944e-38, %v1407
    %v1409 = vsel %vm1406, %v1408, %v1404
    %v1410 = vmul.f32 1.0, %v1409
    %v1411 = vmul.f32 %v1390, %v1320
    %v1412 = vmul.f32 %v1390, %v1391
    %1414 = vrot.lane.b32.xlu0 %v1412, 64
    %v1415 = vpop.permute.xlu0 %1414
    %v1417 = vadd.f32 %v1411, %v1415
    %v1418 = vtanh.pop %v1417
    %v1419 = vmul.f32 %v1410, %v1418
    %1421 = vrot.lane.b32.xlu0 %v1419, 64
    %v1422 = vpop.permute.xlu0 %1421
    %1424 = vst.msk [vmem:[#allocation4 + $0x8] sm:$0xff] %vm932, %v1422
    %v1425 = vsel %vm932, %v1422, 0
    %1427 = vmatpush.msra.mxu0 0.0
    %1428 = vmatpush.msra.mxu0 0.0
    %1429 = vmatpush.msra.mxu0 0.0
    %1430 = vmatpush.msra.mxu0 0.0
    %1431 = vmatpush.msra.mxu0 0.0
    %1432 = vmatpush.msra.mxu0 0.0
    %1433 = vmatpush.msra.mxu0 0.0
    %1434 = vmatpush.msra.mxu0 0.0
    %1435 = vmatpush.msra.mxu0 %v1229
    %1436 = vmatpush.msra.mxu0 %v1227
    %1437 = vmatpush.msra.mxu0 %v1225
    %1438 = vmatpush.msra.mxu0 %v1223
    %1439 = vmatpush.msra.mxu0 %v1221
    %1440 = vmatpush.msra.mxu0 %v1219
    %1441 = vmatpush.msra.mxu0 %v1217
    %1442 = vmatpush.msra.mxu0 %v1215
    %1443 = vmatmul.f32.gmra.mxu0 %v1425
    %v1444 = vpop.f32.mrf.mxu0
    %v1445 = vadd.f32 0.0, %v1444
    %1446 = vdwg.mxu0
    %1447 = vmatpush.msra.mxu0 0.0
    %1448 = vmatpush.msra.mxu0 0.0
    %1449 = vmatpush.msra.mxu0 0.0
    %1450 = vmatpush.msra.mxu0 0.0
    %1451 = vmatpush.msra.mxu0 0.0
    %1452 = vmatpush.msra.mxu0 0.0
    %1453 = vmatpush.msra.mxu0 0.0
    %1454 = vmatpush.msra.mxu0 0.0
    %1455 = vmatpush.msra.mxu0 %v1230
    %1456 = vmatpush.msra.mxu0 %v1228
    %1457 = vmatpush.msra.mxu0 %v1226
    %1458 = vmatpush.msra.mxu0 %v1224
    %1459 = vmatpush.msra.mxu0 %v1222
    %1460 = vmatpush.msra.mxu0 %v1220
    %1461 = vmatpush.msra.mxu0 %v1218
    %1462 = vmatpush.msra.mxu0 %v1216
    %1463 = vmatmul.f32.gmra.mxu0 %v1425
    %v1464 = vpop.f32.mrf.mxu0
    %v1465 = vadd.f32 0.0, %v1464
    %1466 = vdwg.mxu0
    %v1467 = vadd.f32 %v1203, %v1445
    %v1468 = vadd.f32 %v1204, %v1465
    %v1469 = vxor.u32 %v1467, 2147483648
    %v1470 = vmul.f32 %v1469, 1.442695
    %v1471 = vpow.pop %v1470
    %v1472 = vadd.f32 %v1471, 1.0
    %v1473 = vrcp.pop %v1472
    %v1474 = vmul.f32 %v1472, %v1473
    %v1475 = vsub.f32 1.0, %v1474
    %v1476 = vmul.f32 %v1473, %v1475
    %v1477 = vadd.f32 %v1473, %v1476
    %vm1478 = vweird.f32 %v1472
    %vm1479 = vweird.f32 %v1473
    %vm1480 = vmor %vm1478, %vm1479
    %v1481 = vsel %vm1480, %v1473, %v1477
    %v1482 = vand.u32 2147483647, %v1472
    %vm1483 = vcmp.eq.f32.partialorder %v1482, 8.507059e+37
    %v1484 = vand.u32 %v1472, 2147483648
    %v1485 = vor.u32 1.1754944e-38, %v1484
    %v1486 = vsel %vm1483, %v1485, %v1481
    %v1487 = vmul.f32 1.0, %v1486
    %v1488 = vtanh.pop %v1468
    %v1489 = vxor.u32 %v1468, 2147483648
    %v1490 = vmul.f32 %v1489, 1.442695
    %v1491 = vpow.pop %v1490
    %v1492 = vadd.f32 %v1491, 1.0
    %v1493 = vrcp.pop %v1492
    %v1494 = vmul.f32 %v1492, %v1493
    %v1495 = vsub.f32 1.0, %v1494
    %v1496 = vmul.f32 %v1493, %v1495
    %v1497 = vadd.f32 %v1493, %v1496
    %vm1498 = vweird.f32 %v1492
    %vm1499 = vweird.f32 %v1493
    %vm1500 = vmor %vm1498, %vm1499
    %v1501 = vsel %vm1500, %v1493, %v1497
    %v1502 = vand.u32 2147483647, %v1492
    %vm1503 = vcmp.eq.f32.partialorder %v1502, 8.507059e+37
    %v1504 = vand.u32 %v1492, 2147483648
    %v1505 = vor.u32 1.1754944e-38, %v1504
    %v1506 = vsel %vm1503, %v1505, %v1501
    %v1507 = vmul.f32 1.0, %v1506
    %v1508 = vmul.f32 %v1487, %v1417
    %v1509 = vmul.f32 %v1487, %v1488
    %1511 = vrot.lane.b32.xlu0 %v1509, 64
    %v1512 = vpop.permute.xlu0 %1511
    %v1514 = vadd.f32 %v1508, %v1512
    %v1515 = vtanh.pop %v1514
    %v1516 = vmul.f32 %v1507, %v1515
    %1518 = vrot.lane.b32.xlu0 %v1516, 64
    %v1519 = vpop.permute.xlu0 %1518
    %1521 = vst.msk [vmem:[#allocation4 + $0x10] sm:$0xff] %vm932, %v1519
    %v1522 = vsel %vm932, %v1519, 0
    %1524 = vmatpush.msra.mxu0 0.0
    %1525 = vmatpush.msra.mxu0 0.0
    %1526 = vmatpush.msra.mxu0 0.0
    %1527 = vmatpush.msra.mxu0 0.0
    %1528 = vmatpush.msra.mxu0 0.0
    %1529 = vmatpush.msra.mxu0 0.0
    %1530 = vmatpush.msra.mxu0 0.0
    %1531 = vmatpush.msra.mxu0 0.0
    %1532 = vmatpush.msra.mxu0 %v1229
    %1533 = vmatpush.msra.mxu0 %v1227
    %1534 = vmatpush.msra.mxu0 %v1225
    %1535 = vmatpush.msra.mxu0 %v1223
    %1536 = vmatpush.msra.mxu0 %v1221
    %1537 = vmatpush.msra.mxu0 %v1219
    %1538 = vmatpush.msra.mxu0 %v1217
    %1539 = vmatpush.msra.mxu0 %v1215
    %1540 = vmatmul.f32.gmra.mxu0 %v1522
    %v1541 = vpop.f32.mrf.mxu0
    %v1542 = vadd.f32 0.0, %v1541
    %1543 = vdwg.mxu0
    %1544 = vmatpush.msra.mxu0 0.0
    %1545 = vmatpush.msra.mxu0 0.0
    %1546 = vmatpush.msra.mxu0 0.0
    %1547 = vmatpush.msra.mxu0 0.0
    %1548 = vmatpush.msra.mxu0 0.0
    %1549 = vmatpush.msra.mxu0 0.0
    %1550 = vmatpush.msra.mxu0 0.0
    %1551 = vmatpush.msra.mxu0 0.0
    %1552 = vmatpush.msra.mxu0 %v1230
    %1553 = vmatpush.msra.mxu0 %v1228
    %1554 = vmatpush.msra.mxu0 %v1226
    %1555 = vmatpush.msra.mxu0 %v1224
    %1556 = vmatpush.msra.mxu0 %v1222
    %1557 = vmatpush.msra.mxu0 %v1220
    %1558 = vmatpush.msra.mxu0 %v1218
    %1559 = vmatpush.msra.mxu0 %v1216
    %1560 = vmatmul.f32.gmra.mxu0 %v1522
    %v1561 = vpop.f32.mrf.mxu0
    %v1562 = vadd.f32 0.0, %v1561
    %1563 = vdwg.mxu0
    %v1564 = vadd.f32 %v1205, %v1542
    %v1565 = vadd.f32 %v1206, %v1562
    %v1566 = vxor.u32 %v1564, 2147483648
    %v1567 = vmul.f32 %v1566, 1.442695
    %v1568 = vpow.pop %v1567
    %v1569 = vadd.f32 %v1568, 1.0
    %v1570 = vrcp.pop %v1569
    %v1571 = vmul.f32 %v1569, %v1570
    %v1572 = vsub.f32 1.0, %v1571
    %v1573 = vmul.f32 %v1570, %v1572
    %v1574 = vadd.f32 %v1570, %v1573
    %vm1575 = vweird.f32 %v1569
    %vm1576 = vweird.f32 %v1570
    %vm1577 = vmor %vm1575, %vm1576
    %v1578 = vsel %vm1577, %v1570, %v1574
    %v1579 = vand.u32 2147483647, %v1569
    %vm1580 = vcmp.eq.f32.partialorder %v1579, 8.507059e+37
    %v1581 = vand.u32 %v1569, 2147483648
    %v1582 = vor.u32 1.1754944e-38, %v1581
    %v1583 = vsel %vm1580, %v1582, %v1578
    %v1584 = vmul.f32 1.0, %v1583
    %v1585 = vtanh.pop %v1565
    %v1586 = vxor.u32 %v1565, 2147483648
    %v1587 = vmul.f32 %v1586, 1.442695
    %v1588 = vpow.pop %v1587
    %v1589 = vadd.f32 %v1588, 1.0
    %v1590 = vrcp.pop %v1589
    %v1591 = vmul.f32 %v1589, %v1590
    %v1592 = vsub.f32 1.0, %v1591
    %v1593 = vmul.f32 %v1590, %v1592
    %v1594 = vadd.f32 %v1590, %v1593
    %vm1595 = vweird.f32 %v1589
    %vm1596 = vweird.f32 %v1590
    %vm1597 = vmor %vm1595, %vm1596
    %v1598 = vsel %vm1597, %v1590, %v1594
    %v1599 = vand.u32 2147483647, %v1589
    %vm1600 = vcmp.eq.f32.partialorder %v1599, 8.507059e+37
    %v1601 = vand.u32 %v1589, 2147483648
    %v1602 = vor.u32 1.1754944e-38, %v1601
    %v1603 = vsel %vm1600, %v1602, %v1598
    %v1604 = vmul.f32 1.0, %v1603
    %v1605 = vmul.f32 %v1584, %v1514
    %v1606 = vmul.f32 %v1584, %v1585
    %1608 = vrot.lane.b32.xlu0 %v1606, 64
    %v1609 = vpop.permute.xlu0 %1608
    %v1611 = vadd.f32 %v1605, %v1609
    %v1612 = vtanh.pop %v1611
    %v1613 = vmul.f32 %v1604, %v1612
    %1615 = vrot.lane.b32.xlu0 %v1613, 64
    %v1616 = vpop.permute.xlu0 %1615
    %1618 = vst.msk [vmem:[#allocation4 + $0x18] sm:$0xff] %vm932, %v1616
    %v1619 = vsel %vm932, %v1616, 0
    %1621 = vmatpush.msra.mxu0 0.0
    %1622 = vmatpush.msra.mxu0 0.0
    %1623 = vmatpush.msra.mxu0 0.0
    %1624 = vmatpush.msra.mxu0 0.0
    %1625 = vmatpush.msra.mxu0 0.0
    %1626 = vmatpush.msra.mxu0 0.0
    %1627 = vmatpush.msra.mxu0 0.0
    %1628 = vmatpush.msra.mxu0 0.0
    %1629 = vmatpush.msra.mxu0 %v1229
    %1630 = vmatpush.msra.mxu0 %v1227
    %1631 = vmatpush.msra.mxu0 %v1225
    %1632 = vmatpush.msra.mxu0 %v1223
    %1633 = vmatpush.msra.mxu0 %v1221
    %1634 = vmatpush.msra.mxu0 %v1219
    %1635 = vmatpush.msra.mxu0 %v1217
    %1636 = vmatpush.msra.mxu0 %v1215
    %1637 = vmatmul.f32.gmra.mxu0 %v1619
    %v1638 = vpop.f32.mrf.mxu0
    %v1639 = vadd.f32 0.0, %v1638
    %1640 = vdwg.mxu0
    %1641 = vmatpush.msra.mxu0 0.0
    %1642 = vmatpush.msra.mxu0 0.0
    %1643 = vmatpush.msra.mxu0 0.0
    %1644 = vmatpush.msra.mxu0 0.0
    %1645 = vmatpush.msra.mxu0 0.0
    %1646 = vmatpush.msra.mxu0 0.0
    %1647 = vmatpush.msra.mxu0 0.0
    %1648 = vmatpush.msra.mxu0 0.0
    %1649 = vmatpush.msra.mxu0 %v1230
    %1650 = vmatpush.msra.mxu0 %v1228
    %1651 = vmatpush.msra.mxu0 %v1226
    %1652 = vmatpush.msra.mxu0 %v1224
    %1653 = vmatpush.msra.mxu0 %v1222
    %1654 = vmatpush.msra.mxu0 %v1220
    %1655 = vmatpush.msra.mxu0 %v1218
    %1656 = vmatpush.msra.mxu0 %v1216
    %1657 = vmatmul.f32.gmra.mxu0 %v1619
    %v1658 = vpop.f32.mrf.mxu0
    %v1659 = vadd.f32 0.0, %v1658
    %1660 = vdwg.mxu0
    %v1661 = vadd.f32 %v1207, %v1639
    %v1662 = vadd.f32 %v1208, %v1659
    %v1663 = vxor.u32 %v1661, 2147483648
    %v1664 = vmul.f32 %v1663, 1.442695
    %v1665 = vpow.pop %v1664
    %v1666 = vadd.f32 %v1665, 1.0
    %v1667 = vrcp.pop %v1666
    %v1668 = vmul.f32 %v1666, %v1667
    %v1669 = vsub.f32 1.0, %v1668
    %v1670 = vmul.f32 %v1667, %v1669
    %v1671 = vadd.f32 %v1667, %v1670
    %vm1672 = vweird.f32 %v1666
    %vm1673 = vweird.f32 %v1667
    %vm1674 = vmor %vm1672, %vm1673
    %v1675 = vsel %vm1674, %v1667, %v1671
    %v1676 = vand.u32 2147483647, %v1666
    %vm1677 = vcmp.eq.f32.partialorder %v1676, 8.507059e+37
    %v1678 = vand.u32 %v1666, 2147483648
    %v1679 = vor.u32 1.1754944e-38, %v1678
    %v1680 = vsel %vm1677, %v1679, %v1675
    %v1681 = vmul.f32 1.0, %v1680
    %v1682 = vtanh.pop %v1662
    %v1683 = vxor.u32 %v1662, 2147483648
    %v1684 = vmul.f32 %v1683, 1.442695
    %v1685 = vpow.pop %v1684
    %v1686 = vadd.f32 %v1685, 1.0
    %v1687 = vrcp.pop %v1686
    %v1688 = vmul.f32 %v1686, %v1687
    %v1689 = vsub.f32 1.0, %v1688
    %v1690 = vmul.f32 %v1687, %v1689
    %v1691 = vadd.f32 %v1687, %v1690
    %vm1692 = vweird.f32 %v1686
    %vm1693 = vweird.f32 %v1687
    %vm1694 = vmor %vm1692, %vm1693
    %v1695 = vsel %vm1694, %v1687, %v1691
    %v1696 = vand.u32 2147483647, %v1686
    %vm1697 = vcmp.eq.f32.partialorder %v1696, 8.507059e+37
    %v1698 = vand.u32 %v1686, 2147483648
    %v1699 = vor.u32 1.1754944e-38, %v1698
    %v1700 = vsel %vm1697, %v1699, %v1695
    %v1701 = vmul.f32 1.0, %v1700
    %v1702 = vmul.f32 %v1681, %v1611
    %v1703 = vmul.f32 %v1681, %v1682
    %1705 = vrot.lane.b32.xlu0 %v1703, 64
    %v1706 = vpop.permute.xlu0 %1705
    %v1708 = vadd.f32 %v1702, %v1706
    %v1709 = vtanh.pop %v1708
    %v1710 = vmul.f32 %v1701, %v1709
    %1712 = vrot.lane.b32.xlu0 %v1710, 64
    %v1713 = vpop.permute.xlu0 %1712
    %1715 = vst.msk [vmem:[#allocation4 + $0x20] sm:$0xff] %vm932, %v1713
    %v1716 = vsel %vm932, %v1713, 0
    %1718 = vmatpush.msra.mxu0 0.0
    %1719 = vmatpush.msra.mxu0 0.0
    %1720 = vmatpush.msra.mxu0 0.0
    %1721 = vmatpush.msra.mxu0 0.0
    %1722 = vmatpush.msra.mxu0 0.0
    %1723 = vmatpush.msra.mxu0 0.0
    %1724 = vmatpush.msra.mxu0 0.0
    %1725 = vmatpush.msra.mxu0 0.0
    %1726 = vmatpush.msra.mxu0 %v1229
    %1727 = vmatpush.msra.mxu0 %v1227
    %1728 = vmatpush.msra.mxu0 %v1225
    %1729 = vmatpush.msra.mxu0 %v1223
    %1730 = vmatpush.msra.mxu0 %v1221
    %1731 = vmatpush.msra.mxu0 %v1219
    %1732 = vmatpush.msra.mxu0 %v1217
    %1733 = vmatpush.msra.mxu0 %v1215
    %1734 = vmatmul.f32.gmra.mxu0 %v1716
    %v1735 = vpop.f32.mrf.mxu0
    %v1736 = vadd.f32 0.0, %v1735
    %1737 = vdwg.mxu0
    %1738 = vmatpush.msra.mxu0 0.0
    %1739 = vmatpush.msra.mxu0 0.0
    %1740 = vmatpush.msra.mxu0 0.0
    %1741 = vmatpush.msra.mxu0 0.0
    %1742 = vmatpush.msra.mxu0 0.0
    %1743 = vmatpush.msra.mxu0 0.0
    %1744 = vmatpush.msra.mxu0 0.0
    %1745 = vmatpush.msra.mxu0 0.0
    %1746 = vmatpush.msra.mxu0 %v1230
    %1747 = vmatpush.msra.mxu0 %v1228
    %1748 = vmatpush.msra.mxu0 %v1226
    %1749 = vmatpush.msra.mxu0 %v1224
    %1750 = vmatpush.msra.mxu0 %v1222
    %1751 = vmatpush.msra.mxu0 %v1220
    %1752 = vmatpush.msra.mxu0 %v1218
    %1753 = vmatpush.msra.mxu0 %v1216
    %1754 = vmatmul.f32.gmra.mxu0 %v1716
    %v1755 = vpop.f32.mrf.mxu0
    %v1756 = vadd.f32 0.0, %v1755
    %1757 = vdwg.mxu0
    %v1758 = vadd.f32 %v1209, %v1736
    %v1759 = vadd.f32 %v1210, %v1756
    %v1760 = vxor.u32 %v1758, 2147483648
    %v1761 = vmul.f32 %v1760, 1.442695
    %v1762 = vpow.pop %v1761
    %v1763 = vadd.f32 %v1762, 1.0
    %v1764 = vrcp.pop %v1763
    %v1765 = vmul.f32 %v1763, %v1764
    %v1766 = vsub.f32 1.0, %v1765
    %v1767 = vmul.f32 %v1764, %v1766
    %v1768 = vadd.f32 %v1764, %v1767
    %vm1769 = vweird.f32 %v1763
    %vm1770 = vweird.f32 %v1764
    %vm1771 = vmor %vm1769, %vm1770
    %v1772 = vsel %vm1771, %v1764, %v1768
    %v1773 = vand.u32 2147483647, %v1763
    %vm1774 = vcmp.eq.f32.partialorder %v1773, 8.507059e+37
    %v1775 = vand.u32 %v1763, 2147483648
    %v1776 = vor.u32 1.1754944e-38, %v1775
    %v1777 = vsel %vm1774, %v1776, %v1772
    %v1778 = vmul.f32 1.0, %v1777
    %v1779 = vtanh.pop %v1759
    %v1780 = vxor.u32 %v1759, 2147483648
    %v1781 = vmul.f32 %v1780, 1.442695
    %v1782 = vpow.pop %v1781
    %v1783 = vadd.f32 %v1782, 1.0
    %v1784 = vrcp.pop %v1783
    %v1785 = vmul.f32 %v1783, %v1784
    %v1786 = vsub.f32 1.0, %v1785
    %v1787 = vmul.f32 %v1784, %v1786
    %v1788 = vadd.f32 %v1784, %v1787
    %vm1789 = vweird.f32 %v1783
    %vm1790 = vweird.f32 %v1784
    %vm1791 = vmor %vm1789, %vm1790
    %v1792 = vsel %vm1791, %v1784, %v1788
    %v1793 = vand.u32 2147483647, %v1783
    %vm1794 = vcmp.eq.f32.partialorder %v1793, 8.507059e+37
    %v1795 = vand.u32 %v1783, 2147483648
    %v1796 = vor.u32 1.1754944e-38, %v1795
    %v1797 = vsel %vm1794, %v1796, %v1792
    %v1798 = vmul.f32 1.0, %v1797
    %v1799 = vmul.f32 %v1778, %v1708
    %v1800 = vmul.f32 %v1778, %v1779
    %1802 = vrot.lane.b32.xlu0 %v1800, 64
    %v1803 = vpop.permute.xlu0 %1802
    %v1805 = vadd.f32 %v1799, %v1803
    %v1806 = vtanh.pop %v1805
    %v1807 = vmul.f32 %v1798, %v1806
    %1809 = vrot.lane.b32.xlu0 %v1807, 64
    %v1810 = vpop.permute.xlu0 %1809
    %1812 = vst.msk [vmem:[#allocation4 + $0x28] sm:$0xff] %vm932, %v1810
    %v1813 = vsel %vm932, %v1810, 0
    %1815 = vmatpush.msra.mxu0 0.0
    %1816 = vmatpush.msra.mxu0 0.0
    %1817 = vmatpush.msra.mxu0 0.0
    %1818 = vmatpush.msra.mxu0 0.0
    %1819 = vmatpush.msra.mxu0 0.0
    %1820 = vmatpush.msra.mxu0 0.0
    %1821 = vmatpush.msra.mxu0 0.0
    %1822 = vmatpush.msra.mxu0 0.0
    %1823 = vmatpush.msra.mxu0 %v1229
    %1824 = vmatpush.msra.mxu0 %v1227
    %1825 = vmatpush.msra.mxu0 %v1225
    %1826 = vmatpush.msra.mxu0 %v1223
    %1827 = vmatpush.msra.mxu0 %v1221
    %1828 = vmatpush.msra.mxu0 %v1219
    %1829 = vmatpush.msra.mxu0 %v1217
    %1830 = vmatpush.msra.mxu0 %v1215
    %1831 = vmatmul.f32.gmra.mxu0 %v1813
    %v1832 = vpop.f32.mrf.mxu0
    %v1833 = vadd.f32 0.0, %v1832
    %1834 = vdwg.mxu0
    %1835 = vmatpush.msra.mxu0 0.0
    %1836 = vmatpush.msra.mxu0 0.0
    %1837 = vmatpush.msra.mxu0 0.0
    %1838 = vmatpush.msra.mxu0 0.0
    %1839 = vmatpush.msra.mxu0 0.0
    %1840 = vmatpush.msra.mxu0 0.0
    %1841 = vmatpush.msra.mxu0 0.0
    %1842 = vmatpush.msra.mxu0 0.0
    %1843 = vmatpush.msra.mxu0 %v1230
    %1844 = vmatpush.msra.mxu0 %v1228
    %1845 = vmatpush.msra.mxu0 %v1226
    %1846 = vmatpush.msra.mxu0 %v1224
    %1847 = vmatpush.msra.mxu0 %v1222
    %1848 = vmatpush.msra.mxu0 %v1220
    %1849 = vmatpush.msra.mxu0 %v1218
    %1850 = vmatpush.msra.mxu0 %v1216
    %1851 = vmatmul.f32.gmra.mxu0 %v1813
    %v1852 = vpop.f32.mrf.mxu0
    %v1853 = vadd.f32 0.0, %v1852
    %1854 = vdwg.mxu0
    %v1855 = vadd.f32 %v1211, %v1833
    %v1856 = vadd.f32 %v1212, %v1853
    %v1857 = vxor.u32 %v1855, 2147483648
    %v1858 = vmul.f32 %v1857, 1.442695
    %v1859 = vpow.pop %v1858
    %v1860 = vadd.f32 %v1859, 1.0
    %v1861 = vrcp.pop %v1860
    %v1862 = vmul.f32 %v1860, %v1861
    %v1863 = vsub.f32 1.0, %v1862
    %v1864 = vmul.f32 %v1861, %v1863
    %v1865 = vadd.f32 %v1861, %v1864
    %vm1866 = vweird.f32 %v1860
    %vm1867 = vweird.f32 %v1861
    %vm1868 = vmor %vm1866, %vm1867
    %v1869 = vsel %vm1868, %v1861, %v1865
    %v1870 = vand.u32 2147483647, %v1860
    %vm1871 = vcmp.eq.f32.partialorder %v1870, 8.507059e+37
    %v1872 = vand.u32 %v1860, 2147483648
    %v1873 = vor.u32 1.1754944e-38, %v1872
    %v1874 = vsel %vm1871, %v1873, %v1869
    %v1875 = vmul.f32 1.0, %v1874
    %v1876 = vtanh.pop %v1856
    %v1877 = vxor.u32 %v1856, 2147483648
    %v1878 = vmul.f32 %v1877, 1.442695
    %v1879 = vpow.pop %v1878
    %v1880 = vadd.f32 %v1879, 1.0
    %v1881 = vrcp.pop %v1880
    %v1882 = vmul.f32 %v1880, %v1881
    %v1883 = vsub.f32 1.0, %v1882
    %v1884 = vmul.f32 %v1881, %v1883
    %v1885 = vadd.f32 %v1881, %v1884
    %vm1886 = vweird.f32 %v1880
    %vm1887 = vweird.f32 %v1881
    %vm1888 = vmor %vm1886, %vm1887
    %v1889 = vsel %vm1888, %v1881, %v1885
    %v1890 = vand.u32 2147483647, %v1880
    %vm1891 = vcmp.eq.f32.partialorder %v1890, 8.507059e+37
    %v1892 = vand.u32 %v1880, 2147483648
    %v1893 = vor.u32 1.1754944e-38, %v1892
    %v1894 = vsel %vm1891, %v1893, %v1889
    %v1895 = vmul.f32 1.0, %v1894
    %v1896 = vmul.f32 %v1875, %v1805
    %v1897 = vmul.f32 %v1875, %v1876
    %1899 = vrot.lane.b32.xlu0 %v1897, 64
    %v1900 = vpop.permute.xlu0 %1899
    %v1902 = vadd.f32 %v1896, %v1900
    %v1903 = vtanh.pop %v1902
    %v1904 = vmul.f32 %v1895, %v1903
    %1906 = vrot.lane.b32.xlu0 %v1904, 64
    %v1907 = vpop.permute.xlu0 %1906
    %1909 = vst.msk [vmem:[#allocation4 + $0x30] sm:$0xff] %vm932, %v1907
    %v1910 = vsel %vm932, %v1907, 0
    %1912 = vmatpush.msra.mxu0 0.0
    %1913 = vmatpush.msra.mxu0 0.0
    %1914 = vmatpush.msra.mxu0 0.0
    %1915 = vmatpush.msra.mxu0 0.0
    %1916 = vmatpush.msra.mxu0 0.0
    %1917 = vmatpush.msra.mxu0 0.0
    %1918 = vmatpush.msra.mxu0 0.0
    %1919 = vmatpush.msra.mxu0 0.0
    %1920 = vmatpush.msra.mxu0 %v1229
    %1921 = vmatpush.msra.mxu0 %v1227
    %1922 = vmatpush.msra.mxu0 %v1225
    %1923 = vmatpush.msra.mxu0 %v1223
    %1924 = vmatpush.msra.mxu0 %v1221
    %1925 = vmatpush.msra.mxu0 %v1219
    %1926 = vmatpush.msra.mxu0 %v1217
    %1927 = vmatpush.msra.mxu0 %v1215
    %1928 = vmatmul.f32.gmra.mxu0 %v1910
    %v1929 = vpop.f32.mrf.mxu0
    %v1930 = vadd.f32 0.0, %v1929
    %1931 = vdwg.mxu0
    %1932 = vmatpush.msra.mxu0 0.0
    %1933 = vmatpush.msra.mxu0 0.0
    %1934 = vmatpush.msra.mxu0 0.0
    %1935 = vmatpush.msra.mxu0 0.0
    %1936 = vmatpush.msra.mxu0 0.0
    %1937 = vmatpush.msra.mxu0 0.0
    %1938 = vmatpush.msra.mxu0 0.0
    %1939 = vmatpush.msra.mxu0 0.0
    %1940 = vmatpush.msra.mxu0 %v1230
    %1941 = vmatpush.msra.mxu0 %v1228
    %1942 = vmatpush.msra.mxu0 %v1226
    %1943 = vmatpush.msra.mxu0 %v1224
    %1944 = vmatpush.msra.mxu0 %v1222
    %1945 = vmatpush.msra.mxu0 %v1220
    %1946 = vmatpush.msra.mxu0 %v1218
    %1947 = vmatpush.msra.mxu0 %v1216
    %1948 = vmatmul.f32.gmra.mxu0 %v1910
    %v1949 = vpop.f32.mrf.mxu0
    %v1950 = vadd.f32 0.0, %v1949
    %1951 = vdwg.mxu0
    %v1952 = vadd.f32 %v1213, %v1930
    %v1953 = vadd.f32 %v1214, %v1950
    %v1954 = vxor.u32 %v1952, 2147483648
    %v1955 = vmul.f32 %v1954, 1.442695
    %v1956 = vpow.pop %v1955
    %v1957 = vadd.f32 %v1956, 1.0
    %v1958 = vrcp.pop %v1957
    %v1959 = vmul.f32 %v1957, %v1958
    %v1960 = vsub.f32 1.0, %v1959
    %v1961 = vmul.f32 %v1958, %v1960
    %v1962 = vadd.f32 %v1958, %v1961
    %vm1963 = vweird.f32 %v1957
    %vm1964 = vweird.f32 %v1958
    %vm1965 = vmor %vm1963, %vm1964
    %v1966 = vsel %vm1965, %v1958, %v1962
    %v1967 = vand.u32 2147483647, %v1957
    %vm1968 = vcmp.eq.f32.partialorder %v1967, 8.507059e+37
    %v1969 = vand.u32 %v1957, 2147483648
    %v1970 = vor.u32 1.1754944e-38, %v1969
    %v1971 = vsel %vm1968, %v1970, %v1966
    %v1972 = vmul.f32 1.0, %v1971
    %v1973 = vtanh.pop %v1953
    %v1974 = vxor.u32 %v1953, 2147483648
    %v1975 = vmul.f32 %v1974, 1.442695
    %v1976 = vpow.pop %v1975
    %v1977 = vadd.f32 %v1976, 1.0
    %v1978 = vrcp.pop %v1977
    %v1979 = vmul.f32 %v1977, %v1978
    %v1980 = vsub.f32 1.0, %v1979
    %v1981 = vmul.f32 %v1978, %v1980
    %v1982 = vadd.f32 %v1978, %v1981
    %vm1983 = vweird.f32 %v1977
    %vm1984 = vweird.f32 %v1978
    %vm1985 = vmor %vm1983, %vm1984
    %v1986 = vsel %vm1985, %v1978, %v1982
    %v1987 = vand.u32 2147483647, %v1977
    %vm1988 = vcmp.eq.f32.partialorder %v1987, 8.507059e+37
    %v1989 = vand.u32 %v1977, 2147483648
    %v1990 = vor.u32 1.1754944e-38, %v1989
    %v1991 = vsel %vm1988, %v1990, %v1986
    %v1992 = vmul.f32 1.0, %v1991
    %v1993 = vmul.f32 %v1972, %v1902
    %v1994 = vmul.f32 %v1972, %v1973
    %1996 = vrot.lane.b32.xlu0 %v1994, 64
    %v1997 = vpop.permute.xlu0 %1996
    %v1999 = vadd.f32 %v1993, %v1997
    %v2000 = vtanh.pop %v1999
    %v2001 = vmul.f32 %v1992, %v2000
    %2003 = vrot.lane.b32.xlu0 %v2001, 64
    %v2004 = vpop.permute.xlu0 %2003
    %2006 = vst.msk [vmem:[#allocation4 + $0x38] sm:$0xff] %vm932, %v2004
    %v2007 = vld [vmem:[#allocation2 + $0x1b0] sm:$0xff]
    %v2008 = vld [vmem:[#allocation2 + $0x1c0] sm:$0xff]
    %v2009 = vld [vmem:[#allocation2 + $0x1d0] sm:$0xff]
    %v2010 = vld [vmem:[#allocation2 + $0x1e0] sm:$0xff]
    %v2011 = vld [vmem:[#allocation2 + $0x1f0] sm:$0xff]
    %v2012 = vld [vmem:[#allocation2 + $0x200] sm:$0xff]
    %v2013 = vld [vmem:[#allocation2 + $0x210] sm:$0xff]
    %v2014 = vld [vmem:[#allocation2 + $0x220] sm:$0xff]
    %v2015 = vld [vmem:[#allocation2 + $0x230] ss:$0 sm:$0xff]
    %v2016 = vld [vmem:[#allocation4] sm:$0xff]
    %v2017 = vld [vmem:[#allocation4 + $0x8] sm:$0xff]
    %v2018 = vld [vmem:[#allocation4 + $0x10] sm:$0xff]
    %v2019 = vld [vmem:[#allocation4 + $0x18] sm:$0xff]
    %v2020 = vld [vmem:[#allocation4 + $0x20] sm:$0xff]
    %v2021 = vld [vmem:[#allocation4 + $0x28] sm:$0xff]
    %v2022 = vld [vmem:[#allocation4 + $0x30] sm:$0xff]
    %v2023 = vld [vmem:[#allocation4 + $0x38] sm:$0xff]
    %v2025 = vsel %vm932, %v2016, 0
    %v2028 = vsel %vm932, %v2017, 0
    %v2031 = vsel %vm932, %v2018, 0
    %v2034 = vsel %vm932, %v2019, 0
    %v2037 = vsel %vm932, %v2020, 0
    %v2040 = vsel %vm932, %v2021, 0
    %v2043 = vsel %vm932, %v2022, 0
    %v2046 = vsel %vm932, %v2023, 0
    %2048 = vmatpush.msra.mxu0 0.0
    %2049 = vmatpush.msra.mxu0 0.0
    %2050 = vmatpush.msra.mxu0 0.0
    %2051 = vmatpush.msra.mxu0 0.0
    %2052 = vmatpush.msra.mxu0 0.0
    %2053 = vmatpush.msra.mxu0 0.0
    %2054 = vmatpush.msra.mxu0 0.0
    %2055 = vmatpush.msra.mxu0 0.0
    %2056 = vmatpush.msra.mxu0 %v2014
    %2057 = vmatpush.msra.mxu0 %v2013
    %2058 = vmatpush.msra.mxu0 %v2012
    %2059 = vmatpush.msra.mxu0 %v2011
    %2060 = vmatpush.msra.mxu0 %v2010
    %2061 = vmatpush.msra.mxu0 %v2009
    %2062 = vmatpush.msra.mxu0 %v2008
    %2063 = vmatpush.msra.mxu0 %v2007
    %2064 = vmatmul.f32.gmra.mxu0 %v2025
    %v2065 = vpop.f32.mrf.mxu0
    %v2066 = vadd.f32 %v2015, %v2065
    %2067 = vmatmul.f32.gmra.mxu0 %v2028
    %v2068 = vpop.f32.mrf.mxu0
    %v2069 = vadd.f32 %v2015, %v2068
    %2070 = vmatmul.f32.gmra.mxu0 %v2031
    %v2071 = vpop.f32.mrf.mxu0
    %v2072 = vadd.f32 %v2015, %v2071
    %2073 = vmatmul.f32.gmra.mxu0 %v2034
    %v2074 = vpop.f32.mrf.mxu0
    %v2075 = vadd.f32 %v2015, %v2074
    %2076 = vmatmul.f32.gmra.mxu0 %v2037
    %v2077 = vpop.f32.mrf.mxu0
    %v2078 = vadd.f32 %v2015, %v2077
    %2079 = vmatmul.f32.gmra.mxu0 %v2040
    %v2080 = vpop.f32.mrf.mxu0
    %v2081 = vadd.f32 %v2015, %v2080
    %2082 = vmatmul.f32.gmra.mxu0 %v2043
    %v2083 = vpop.f32.mrf.mxu0
    %v2084 = vadd.f32 %v2015, %v2083
    %2085 = vmatmul.f32.gmra.mxu0 %v2046
    %v2086 = vpop.f32.mrf.mxu0
    %v2087 = vadd.f32 %v2015, %v2086
    %2088 = vdwg.mxu0
    %2089 = vst [vmem:[%s5] sm:$0xff] %v2066
    %2090 = vst [vmem:[%s5 + $0x8] sm:$0xff] %v2069
    %2091 = vst [vmem:[%s5 + $0x10] sm:$0xff] %v2072
    %2092 = vst [vmem:[%s5 + $0x18] sm:$0xff] %v2075
    %2093 = vst [vmem:[%s5 + $0x20] sm:$0xff] %v2078
    %2094 = vst [vmem:[%s5 + $0x28] sm:$0xff] %v2081
    %2095 = vst [vmem:[%s5 + $0x30] sm:$0xff] %v2084
    %2096 = vst [vmem:[%s5 + $0x38] sm:$0xff] %v2087
    // Predicated region
    $region30: #{lstm_vae_forward.1} parent=1 // pred_check
      _
    $region31: #{lstm_vae_forward.1} parent=1 // pred_check_branch
      %2098 = sbr.rel (0) target = $region33
    $region32: #{lstm_vae_forward.1} parent=1 // pred_region
      _
    $region33: #{lstm_vae_forward.1} parent=1 // pred_fallthru
      _
    // Predicated region
    $region34: #{lstm_vae_forward.1} parent=1 // pred_check
      _
    $region35: #{lstm_vae_forward.1} parent=1 // pred_check_branch
      %2100 = sbr.rel (0) target = $region37
    $region36: #{lstm_vae_forward.1} parent=1 // pred_region
      %2102 = vsyncadd [#allocation7], 0
      %s2104 = sshll.u32 [#allocation10], 4
      %s2105 = int_to_ptr.vmem [resolvable:$true] %s2104
      %s2106 = sshll.u32 %s6, 4
      %s2107 = int_to_ptr.hbm [resolvable:$true] %s2106
      %2109 = dma.vmem_to_hbm [thread:$0]  %s2105, 16, %s2107, [#allocation7]
    $region37: #{lstm_vae_forward.1} parent=1 // pred_fallthru
      _
    // Predicated region
    $region38: #{lstm_vae_forward.1} parent=1 // pred_check
      _
    $region39: #{lstm_vae_forward.1} parent=1 // pred_check_branch
      %2111 = sbr.rel (0) target = $region41
    $region40: #{lstm_vae_forward.1} parent=1 // pred_region
      _
    $region41: #{lstm_vae_forward.1} parent=1 // pred_fallthru
      _
    // Predicated region
    $region42: #{lstm_vae_forward.1} parent=1 // pred_check
      _
    $region43: #{lstm_vae_forward.1} parent=1 // pred_check_branch
      %2113 = sbr.rel (0) target = $region45
    $region44: #{lstm_vae_forward.1} parent=1 // pred_region
      %2115 = dma.done [#allocation7], 16
    $region45: #{lstm_vae_forward.1} parent=1 // pred_fallthru
      _
    %2116 = vsyncpa [#allocation6], 1
    %2117 = vsyncpa [#allocation9], 1
    %2118 = vsyncpa [#allocation7], 1
  %2119 = vsyncmov [#allocation3]
  %s2120 = vpop.sfrf %2119
  %p2121 = scmp.eq.s32.totalorder %s2120, 0
  %p2122 = pneg %p2121
  %2124 = shalt.err (%p2122)

</llo_original>
